<compile_context>
chip_gen: v5e
topology: v5e:2x2
jax: 0.10.0
libtpu: 0.0.40
codegen_flags: <defaults>
</compile_context>

<pallas_src>
import functools
import math

import jax
import jax.numpy as jnp
from jax.experimental import pallas as pl
from jax.experimental.pallas import tpu as pltpu


# --------------------------------------------------------------------------
# Pallas kernel
# --------------------------------------------------------------------------
def _cmg_kernel(pooled_ref,    # (TB, Cin)              pooled image features
                wenc_ref,      # (Cin, E)               encoder stand-in (bf16)
                benc_ref,      # (1, E)                 f32
                wfused_ref,    # (E, NSC+NMC+N*ADJ)     [sem | mask_code | folded codes]
                bfused_ref,    # (1, NSC+NMC+N*ADJ)     f32
                wlog_ref,      # (N, E, HWt)            folded per-group logits weight
                blog_ref,      # (N, HWt)               folded per-group logits bias
                feat_ref,      # out: (TB, E)           "feature_avg_pool"
                semmask_ref,   # out: (TB, NSC+NMC)     == module's "feature" slab
                mask_ref,      # out: (TB, N, HWt)      softmaxed masks
                cond_ref,      # out: (TB, ADJ, HWt)    condition map
                feats_scr,     # scratch (TB, E)        compute-dtype feats
                codes_scr,     # scratch (TB, N*ADJ)    f32 adjusted codes
                *, N, SC, MC, ADJ):
    f32 = jnp.float32
    cdt = wenc_ref.dtype
    NSC, NMC = N * SC, N * MC
    SMW = NSC + NMC

    # ---- batch-only work: encoder tail + one fused [sem | mask | codes] GEMM.
    # Runs once per batch tile (hw == 0); results persist in VMEM scratch and
    # in the (hw-resident) feat/semmask output blocks.
    @pl.when(pl.program_id(1) == 0)
    def _():
        feats = jnp.dot(pooled_ref[...].astype(cdt), wenc_ref[...],
                        preferred_element_type=f32) + benc_ref[...]     # (TB, E)
        feat_ref[...] = feats
        feats_scr[...] = feats.astype(cdt)
        fused = jnp.dot(feats.astype(cdt), wfused_ref[...],
                        preferred_element_type=f32) + bfused_ref[...]   # (TB, SMW+N*ADJ)
        semmask_ref[...] = fused[:, :SMW]          # module's `feature` output
        codes_scr[...] = fused[:, SMW:]            # folded semantic_decoder2 output

    feats_c = feats_scr[...]                       # (TB, E), compute dtype

    # ---- per-group mask logits: K = E GEMMs with a lane-dense (TB, HWt) output.
    logits = []
    for g in range(N):
        lg = jnp.dot(feats_c, wlog_ref[g], preferred_element_type=f32)
        logits.append(lg + blog_ref[g:g + 1, :])

    # ---- softmax across semantic groups (exact reciprocal: masks sum to 1).
    m = logits[0]
    for g in range(1, N):
        m = jnp.maximum(m, logits[g])
    exps = [jnp.exp(l - m) for l in logits]
    denom = exps[0]
    for g in range(1, N):
        denom = denom + exps[g]
    inv = pl.reciprocal(denom, approx=False)
    probs = [e * inv for e in exps]

    # ---- mask output directly in (B, N, HWm) layout (no wrapper transpose).
    for g in range(N):
        mask_ref[:, g, :] = probs[g]

    # ---- condition map: per-(group, adjust-dim) column FMAs on lane-dense
    # (TB, HWt) tiles; avoids lane->sublane relayouts and big temporaries.
    codes = codes_scr[...]                          # (TB, N*ADJ) f32
    for a in range(ADJ):
        acc = codes[:, a:a + 1] * probs[0]
        for g in range(1, N):
            acc = acc + codes[:, g * ADJ + a:g * ADJ + a + 1] * probs[g]
        cond_ref[:, a, :] = acc


# --------------------------------------------------------------------------
# Parameter packing (one-time, host/XLA side): torch layout -> kernel layout,
# with semantic_decoder2 / mask-generator folding done in f32.
# --------------------------------------------------------------------------
def pack_params(params, *, N, SC, MC, ADJ, matmul_dtype=jnp.bfloat16):
    f32 = jnp.float32
    wenc = params["w_enc"].astype(matmul_dtype)                        # (Cin, E)
    benc = params["b_enc"][None, :].astype(f32)                        # (1, E)

    W_sem = params["semantic_decoder1_w"].T.astype(f32)                # (E, N*SC)
    b_sem = params["semantic_decoder1_b"].astype(f32)                  # (N*SC,)
    W_msk = params["mask_decoder_w"].T.astype(f32)                     # (E, N*MC)
    b_msk = params["mask_decoder_b"].astype(f32)                       # (N*MC,)
    w2t = jnp.transpose(params["semantic_decoder2_w"], (0, 2, 1)).astype(f32)  # (N, SC, ADJ)
    b2 = params["semantic_decoder2_b"].astype(f32)                     # (N, ADJ)
    wgt = jnp.transpose(params["mask_generator_w"], (0, 2, 1)).astype(f32)     # (N, MC, HWm)
    bg = params["mask_generator_b"].astype(f32)                        # (N, HWm)

    E = W_sem.shape[0]
    # Fold semantic_decoder2 into the main decoder GEMM.
    W_codes = jnp.einsum("ens,nsa->ena", W_sem.reshape(E, N, SC), w2t).reshape(E, N * ADJ)
    b_codes = (jnp.einsum("ns,nsa->na", b_sem.reshape(N, SC), w2t) + b2).reshape(N * ADJ)
    wfused = jnp.concatenate([W_sem, W_msk, W_codes], axis=1).astype(matmul_dtype)
    bfused = jnp.concatenate([b_sem, b_msk, b_codes])[None, :].astype(f32)
    # Fold the (simplified) mask generator into a per-group K=E logits GEMM.
    wlog = jnp.einsum("enm,nmh->neh", W_msk.reshape(E, N, MC), wgt).astype(matmul_dtype)
    blog = (jnp.einsum("nm,nmh->nh", b_msk.reshape(N, MC), wgt) + bg).astype(f32)
    return dict(wenc=wenc, benc=benc, wfused=wfused, bfused=bfused,
                wlog=wlog, blog=blog)


def _vmem_budget_bytes():
    """~75% of physical VMEM (48 MiB v7x, 96 MiB v5e/v6e); conservative if unknown."""
    try:
        phys = int(pltpu.get_tpu_info().vmem_capacity_bytes)
    except Exception:
        phys = 64 * 1024 * 1024
    return max((phys * 3) // 4, 16 * 1024 * 1024)


# --------------------------------------------------------------------------
# Forward wrapper
# --------------------------------------------------------------------------
def content_mask_generator_forward(x, packed, *, semantic_group_num,
                                   semantic_code_dim, mask_code_dim,
                                   semantic_code_adjust_dim, img_size_gen):
    N, SC, MC, ADJ = (semantic_group_num, semantic_code_dim,
                      mask_code_dim, semantic_code_adjust_dim)
    B, Cin, Hin, Win = x.shape
    HWm = img_size_gen * img_size_gen
    E = packed["wenc"].shape[1]
    NSC, NMC = N * SC, N * MC
    SMW = NSC + NMC                     # width of the `feature` slab
    FW = SMW + N * ADJ                  # width of the fused GEMM-A output
    cdt = packed["wenc"].dtype
    cbytes = jnp.dtype(cdt).itemsize

    # Global average pool in the wrapper (f32 accumulation, no f32 image copy);
    # the stand-in encoder only needs the pooled (B, Cin) vector.
    pooled = jnp.mean(x, axis=(2, 3), dtype=jnp.float32)               # (B, Cin)

    weights = [packed["wenc"], packed["benc"], packed["wfused"], packed["bfused"],
               packed["wlog"], packed["blog"]]
    resident = weights[:4]              # wlog/blog are streamed per HWm tile
    w_res_bytes = sum(math.prod(a.shape) * jnp.dtype(a.dtype).itemsize
                      for a in resident)
    budget = _vmem_budget_bytes()

    # ---- VMEM-aware (TB, HWt) selection -------------------------------------
    def est(tb, hwt):
        db = 2                                           # double-buffered streams
        stream_in = db * (tb * Cin * 4 + N * E * hwt * cbytes + N * hwt * 4)
        stream_out = db * (tb * E * 4 + tb * SMW * 4
                           + tb * N * hwt * 4 + tb * ADJ * hwt * 4)
        scratch = tb * E * cbytes + tb * N * ADJ * 4
        live = (2 * N + 4) * tb * hwt * 4                # logits/exps/probs/acc
        return w_res_bytes + stream_in + stream_out + scratch + live + (2 << 20)

    if HWm % 128 == 0:
        hw_cands = ([t for t in (1024, 512, 256, 128) if t <= HWm and HWm % t == 0]
                    or [HWm])
    else:
        hw_cands = [HWm]                # block == full dim is always legal
    TB, HWt = 8, hw_cands[-1]
    chosen = False
    for hwt in hw_cands:
        for tb in (256, 192, 128, 96, 64, 32, 16, 8):
            if est(tb, hwt) <= budget:
                TB, HWt = tb, hwt
                chosen = True
                break
        if chosen:
            break

    # Pad batch to a sublane multiple and always give the "parallel" batch axis
    # >= 2 grid steps so both v7x TensorCores have work.
    Bp = ((B + 7) // 8) * 8
    if Bp <= TB:
        TB = max(8, ((Bp // 2 + 7) // 8) * 8)
        Bp = 2 * TB
    else:
        Bp = ((Bp + TB - 1) // TB) * TB
    if Bp != B:
        pooled = jnp.pad(pooled, ((0, Bp - B), (0, 0)))

    grid = (Bp // TB, HWm // HWt)

    def _run(single_buffer_weights):
        # Resident weights: constant index_map; request a single buffer.
        res_kw = {"pipeline_mode": pl.Buffered(1)} if single_buffer_weights else {}
        in_specs = [
            pl.BlockSpec((TB, Cin), lambda b, h: (b, 0)),
            pl.BlockSpec((Cin, E), lambda b, h: (0, 0), **res_kw),
            pl.BlockSpec((1, E), lambda b, h: (0, 0), **res_kw),
            pl.BlockSpec((E, FW), lambda b, h: (0, 0), **res_kw),
            pl.BlockSpec((1, FW), lambda b, h: (0, 0), **res_kw),
            pl.BlockSpec((N, E, HWt), lambda b, h: (0, 0, h)),
            pl.BlockSpec((N, HWt), lambda b, h: (0, h)),
        ]
        out_specs = (
            pl.BlockSpec((TB, E), lambda b, h: (b, 0)),
            pl.BlockSpec((TB, SMW), lambda b, h: (b, 0)),
            pl.BlockSpec((TB, N, HWt), lambda b, h: (b, 0, h)),
            pl.BlockSpec((TB, ADJ, HWt), lambda b, h: (b, 0, h)),
        )
        out_shape = (
            jax.ShapeDtypeStruct((Bp, E), jnp.float32),          # feature_avg_pool
            jax.ShapeDtypeStruct((Bp, SMW), jnp.float32),        # feature slab
            jax.ShapeDtypeStruct((Bp, N, HWm), jnp.float32),     # masks (B, N, HWm)
            jax.ShapeDtypeStruct((Bp, ADJ, HWm), jnp.float32),   # condition map
        )
        flops = 2 * Bp * (Cin * E + E * FW + N * E * HWm + N * ADJ * HWm)
        bytes_accessed = (pooled.size * 4 + w_res_bytes
                          + (Bp // TB) * (N * E * HWm * cbytes + N * HWm * 4)
                          + sum(math.prod(s.shape) * 4 for s in out_shape))
        cost = pl.CostEstimate(flops=int(flops),
                               transcendentals=int(Bp * (N + 1) * HWm),
                               bytes_accessed=int(bytes_accessed))
        kernel = functools.partial(_cmg_kernel, N=N, SC=SC, MC=MC, ADJ=ADJ)
        return pl.pallas_call(
            kernel,
            grid=grid,
            in_specs=in_specs,
            out_specs=out_specs,
            out_shape=out_shape,
            scratch_shapes=[pltpu.VMEM((TB, E), cdt),
                            pltpu.VMEM((TB, N * ADJ), jnp.float32)],
            compiler_params=pltpu.CompilerParams(
                dimension_semantics=("parallel", "arbitrary"),
                vmem_limit_bytes=int(budget)),
            cost_estimate=cost,
        )(pooled, *weights)

    try:
        # Block inside the try so compile/runtime failures trigger the fallback
        # (this wrapper is intended to be called eagerly).
        feats, semmask, masks, cond = jax.block_until_ready(_run(True))
    except Exception:
        # Fallback for JAX versions without single-buffer pipeline_mode support.
        feats, semmask, masks, cond = _run(False)

    feats, semmask, masks, cond = feats[:B], semmask[:B], masks[:B], cond[:B]
    sem = semmask[:, :NSC]
    mcode = semmask[:, NSC:].reshape(B, N, MC)
    return {
        "mask_code": mcode,
        "mask": masks.reshape(B, N, img_size_gen, img_size_gen),
        "semantic_code": [sem[:, g * SC:(g + 1) * SC] for g in range(N)],
        "condition_map": [cond.reshape(B, ADJ, img_size_gen, img_size_gen)],
        "feature": semmask,
        "feature_avg_pool": feats,
    }


# --------------------------------------------------------------------------
# Deterministic synthetic parameters (torch nn.Linear layout: weight (out, in)).
# --------------------------------------------------------------------------
def init_params(key, *, encoder_in_ch, encoder_out_dim, N, SC, MC, ADJ, img_size_gen):
    HWm = img_size_gen * img_size_gen
    ks = jax.random.split(key, 10)
    n = lambda k, shape, s=0.02: s * jax.random.normal(k, shape, jnp.float32)
    return {
        "w_enc": n(ks[0], (encoder_in_ch, encoder_out_dim)),
        "b_enc": n(ks[1], (encoder_out_dim,), 0.01),
        "semantic_decoder1_w": n(ks[2], (SC * N, encoder_out_dim)),
        "semantic_decoder1_b": n(ks[3], (SC * N,), 0.01),
        "semantic_decoder2_w": n(ks[4], (N, ADJ, SC)),
        "semantic_decoder2_b": n(ks[5], (N, ADJ), 0.01),
        "mask_decoder_w": n(ks[6], (MC * N, encoder_out_dim)),
        "mask_decoder_b": n(ks[7], (MC * N,), 0.01),
        "mask_generator_w": n(ks[8], (N, HWm, MC)),
        "mask_generator_b": n(ks[9], (N, HWm), 0.01),
    }


def reference_forward(x, params, *, N, SC, MC, ADJ):
    """Pure-f32 JAX reference mirroring the module semantics (for testing)."""
    B, Cin, H, W = x.shape
    pooled = jnp.mean(x.reshape(B, Cin, H * W), axis=-1)
    feats = pooled @ params["w_enc"] + params["b_enc"]
    sem = feats @ params["semantic_decoder1_w"].T + params["semantic_decoder1_b"]
    codes = jnp.einsum("bns,nas->bna", sem.reshape(B, N, SC),
                       params["semantic_decoder2_w"]) + params["semantic_decoder2_b"][None]
    mflat = feats @ params["mask_decoder_w"].T + params["mask_decoder_b"]
    logits = jnp.einsum("bnm,nhm->bnh", mflat.reshape(B, N, MC),
                        params["mask_generator_w"]) + params["mask_generator_b"][None]
    probs = jax.nn.softmax(logits, axis=1)
    cond = jnp.einsum("bna,bnh->bah", codes, probs)
    return dict(feats=feats, sem=sem, mflat=mflat, probs=probs, cond=cond)


if __name__ == "__main__":
    # Small, module-consistent config.
    B, Cin, Hin, Win = 2, 3, 16, 16
    N, SC, MC, ADJ = 2, 8, 8, 8     # groups, semantic / mask / adjusted code dims
    IMG = 16                        # img_size_gen
    E = 32                          # encoder_out_dim (stand-in for resnet18's 512)

    key = jax.random.PRNGKey(0)
    k_x, k_p = jax.random.split(key)
    x = jax.random.normal(k_x, (B, Cin, Hin, Win), jnp.float32)
    params = init_params(k_p, encoder_in_ch=Cin, encoder_out_dim=E,
                         N=N, SC=SC, MC=MC, ADJ=ADJ, img_size_gen=IMG)
    packed = pack_params(params, N=N, SC=SC, MC=MC, ADJ=ADJ,
                         matmul_dtype=jnp.bfloat16)

    out = content_mask_generator_forward(
        x, packed, semantic_group_num=N, semantic_code_dim=SC,
        mask_code_dim=MC, semantic_code_adjust_dim=ADJ, img_size_gen=IMG)
    out = jax.block_until_ready(out)

    # Shape checks (match the PyTorch module's return dict).
    assert out["mask"].shape == (B, N, IMG, IMG)
    assert out["condition_map"][0].shape == (B, ADJ, IMG, IMG)
    assert out["mask_code"].shape == (B, N, MC)
    assert out["feature"].shape == (B, N * SC + N * MC)
    assert out["feature_avg_pool"].shape == (B, E)
    assert len(out["semantic_code"]) == N and out["semantic_code"][0].shape == (B, SC)

    # Numerical checks vs. a pure-f32 JAX reference (kernel uses bf16 matmul
    # operands + host-side f32 weight folding, so tolerances are loosened).
    ref = reference_forward(x, params, N=N, SC=SC, MC=MC, ADJ=ADJ)
    tol = dict(rtol=1e-1, atol=5e-3)
    assert jnp.allclose(out["feature_avg_pool"], ref["feats"], **tol)
    assert jnp.allclose(out["feature"][:, :N * SC], ref["sem"], **tol)
    assert jnp.allclose(out["feature"][:, N * SC:], ref["mflat"], **tol)
    assert jnp.allclose(out["mask"].reshape(B, N, IMG * IMG), ref["probs"], **tol)
    assert jnp.allclose(out["condition_map"][0].reshape(B, ADJ, IMG * IMG),
                        ref["cond"], **tol)
    mask_sum = jnp.sum(out["mask"], axis=1)
    assert jnp.allclose(mask_sum, jnp.ones_like(mask_sum), atol=1e-3)

    print("KERNEL_OK")
</pallas_src>

<mosaic_0001>
module attributes {stable_mosaic.version = 11 : i64} {
  func.func @_cmg_kernel(%arg0: i32, %arg1: i32, %arg2: memref<8x3xf32, #tpu.memory_space<vmem>>, %arg3: memref<3x32xbf16, #tpu.memory_space<vmem>>, %arg4: memref<1x32xf32, #tpu.memory_space<vmem>>, %arg5: memref<32x48xbf16, #tpu.memory_space<vmem>>, %arg6: memref<1x48xf32, #tpu.memory_space<vmem>>, %arg7: memref<2x32x256xbf16, #tpu.memory_space<vmem>>, %arg8: memref<2x256xf32, #tpu.memory_space<vmem>>, %arg9: memref<8x32xf32, #tpu.memory_space<vmem>>, %arg10: memref<8x32xf32, #tpu.memory_space<vmem>>, %arg11: memref<8x2x256xf32, #tpu.memory_space<vmem>>, %arg12: memref<8x8x256xf32, #tpu.memory_space<vmem>>, %arg13: memref<8x32xbf16, #tpu.memory_space<vmem>>, %arg14: memref<8x16xf32, #tpu.memory_space<vmem>>) attributes {dimension_semantics = [#tpu.dimension_semantics<parallel>, #tpu.dimension_semantics<arbitrary>], iteration_bounds = array<i64: 2, 1>, scalar_prefetch = 0 : i64, scratch_operands = 2 : i64, tpu.core_type = #tpu.core_type<tc>, window_params = [{transform_indices = @transform_0, window_bounds = array<i64: 8, 3>}, {pipeline_mode = #tpu.pipeline_mode<synchronous>, transform_indices = @transform_1, window_bounds = array<i64: 3, 32>}, {pipeline_mode = #tpu.pipeline_mode<synchronous>, transform_indices = @transform_2, window_bounds = array<i64: 1, 32>}, {pipeline_mode = #tpu.pipeline_mode<synchronous>, transform_indices = @transform_3, window_bounds = array<i64: 32, 48>}, {pipeline_mode = #tpu.pipeline_mode<synchronous>, transform_indices = @transform_4, window_bounds = array<i64: 1, 48>}, {transform_indices = @transform_5, window_bounds = array<i64: 2, 32, 256>}, {transform_indices = @transform_6, window_bounds = array<i64: 2, 256>}, {transform_indices = @transform_7, window_bounds = array<i64: 8, 32>}, {transform_indices = @transform_8, window_bounds = array<i64: 8, 32>}, {transform_indices = @transform_9, window_bounds = array<i64: 8, 2, 256>}, {transform_indices = @transform_10, window_bounds = array<i64: 8, 8, 256>}]} {
    %c0_i32 = arith.constant 0 : i32
    %0 = arith.cmpi eq, %arg1, %c0_i32 : i32
    %1 = arith.extui %0 : i1 to i32
    %c0_i32_0 = arith.constant 0 : i32
    %2 = arith.cmpi ne, %1, %c0_i32_0 : i32
    scf.if %2 {
      %c0_38 = arith.constant 0 : index
      %c0_39 = arith.constant 0 : index
      %112 = vector.load %arg2[%c0_38, %c0_39] : memref<8x3xf32, #tpu.memory_space<vmem>>, vector<8x3xf32>
      %113 = arith.truncf %112 : vector<8x3xf32> to vector<8x3xbf16>
      %c0_40 = arith.constant 0 : index
      %c0_41 = arith.constant 0 : index
      %114 = vector.load %arg3[%c0_40, %c0_41] : memref<3x32xbf16, #tpu.memory_space<vmem>>, vector<3x32xbf16>
      %cst_42 = arith.constant dense<0.000000e+00> : vector<8x32xf32>
      %115 = tpu.matmul %113, %114, %cst_42 {dimension_numbers = #tpu.dot_dimension_numbers<[1], [0], [0], [1], [0, 0, 1, 1], [], []>} : vector<8x3xbf16>, vector<3x32xbf16>, vector<8x32xf32> -> vector<8x32xf32>
      %c0_43 = arith.constant 0 : index
      %c0_44 = arith.constant 0 : index
      %116 = vector.load %arg4[%c0_43, %c0_44] : memref<1x32xf32, #tpu.memory_space<vmem>>, vector<1x32xf32>
      %117 = vector.broadcast %116 : vector<1x32xf32> to vector<8x32xf32>
      %118 = arith.addf %115, %117 : vector<8x32xf32>
      %c0_45 = arith.constant 0 : index
      %c0_46 = arith.constant 0 : index
      %119 = vector.load %arg9[%c0_45, %c0_46] : memref<8x32xf32, #tpu.memory_space<vmem>>, vector<8x32xf32>
      tpu.vector_store %arg9[%c0_45, %c0_46], %118 {strides = array<i32>} : memref<8x32xf32, #tpu.memory_space<vmem>>, vector<8x32xf32>,
      %120 = arith.truncf %118 : vector<8x32xf32> to vector<8x32xbf16>
      %c0_47 = arith.constant 0 : index
      %c0_48 = arith.constant 0 : index
      %121 = vector.load %arg13[%c0_47, %c0_48] : memref<8x32xbf16, #tpu.memory_space<vmem>>, vector<8x32xbf16>
      tpu.vector_store %arg13[%c0_47, %c0_48], %120 {strides = array<i32>} : memref<8x32xbf16, #tpu.memory_space<vmem>>, vector<8x32xbf16>,
      %122 = arith.truncf %118 : vector<8x32xf32> to vector<8x32xbf16>
      %c0_49 = arith.constant 0 : index
      %c0_50 = arith.constant 0 : index
      %123 = vector.load %arg5[%c0_49, %c0_50] : memref<32x48xbf16, #tpu.memory_space<vmem>>, vector<32x48xbf16>
      %cst_51 = arith.constant dense<0.000000e+00> : vector<8x48xf32>
      %124 = tpu.matmul %122, %123, %cst_51 {dimension_numbers = #tpu.dot_dimension_numbers<[1], [0], [0], [1], [0, 0, 1, 1], [], []>} : vector<8x32xbf16>, vector<32x48xbf16>, vector<8x48xf32> -> vector<8x48xf32>
      %c0_52 = arith.constant 0 : index
      %c0_53 = arith.constant 0 : index
      %125 = vector.load %arg6[%c0_52, %c0_53] : memref<1x48xf32, #tpu.memory_space<vmem>>, vector<1x48xf32>
      %126 = vector.broadcast %125 : vector<1x48xf32> to vector<8x48xf32>
      %127 = arith.addf %124, %126 : vector<8x48xf32>
      %128 = vector.extract_strided_slice %127 {offsets = [0, 0], sizes = [8, 32], strides = [1, 1]} : vector<8x48xf32> to vector<8x32xf32>
      %c0_54 = arith.constant 0 : index
      %c0_55 = arith.constant 0 : index
      %129 = vector.load %arg10[%c0_54, %c0_55] : memref<8x32xf32, #tpu.memory_space<vmem>>, vector<8x32xf32>
      tpu.vector_store %arg10[%c0_54, %c0_55], %128 {strides = array<i32>} : memref<8x32xf32, #tpu.memory_space<vmem>>, vector<8x32xf32>,
      %130 = vector.extract_strided_slice %127 {offsets = [0, 32], sizes = [8, 16], strides = [1, 1]} : vector<8x48xf32> to vector<8x16xf32>
      %c0_56 = arith.constant 0 : index
      %c0_57 = arith.constant 0 : index
      %131 = vector.load %arg14[%c0_56, %c0_57] : memref<8x16xf32, #tpu.memory_space<vmem>>, vector<8x16xf32>
      tpu.vector_store %arg14[%c0_56, %c0_57], %130 {strides = array<i32>} : memref<8x16xf32, #tpu.memory_space<vmem>>, vector<8x16xf32>,
    } else {
    }
    %c0 = arith.constant 0 : index
    %c0_1 = arith.constant 0 : index
    %3 = vector.load %arg13[%c0, %c0_1] : memref<8x32xbf16, #tpu.memory_space<vmem>>, vector<8x32xbf16>
    %c0_2 = arith.constant 0 : index
    %c0_3 = arith.constant 0 : index
    %c0_4 = arith.constant 0 : index
    %4 = vector.load %arg7[%c0_2, %c0_3, %c0_4] : memref<2x32x256xbf16, #tpu.memory_space<vmem>>, vector<1x32x256xbf16>
    %5 = vector.shape_cast %4 : vector<1x32x256xbf16> to vector<32x256xbf16>
    %cst = arith.constant dense<0.000000e+00> : vector<8x256xf32>
    %6 = tpu.matmul %3, %5, %cst {dimension_numbers = #tpu.dot_dimension_numbers<[1], [0], [0], [1], [0, 0, 1, 1], [], []>} : vector<8x32xbf16>, vector<32x256xbf16>, vector<8x256xf32> -> vector<8x256xf32>
    %c0_5 = arith.constant 0 : index
    %c0_6 = arith.constant 0 : index
    %7 = vector.load %arg8[%c0_5, %c0_6] : memref<2x256xf32, #tpu.memory_space<vmem>>, vector<1x256xf32>
    %8 = vector.broadcast %7 : vector<1x256xf32> to vector<8x256xf32>
    %9 = arith.addf %6, %8 : vector<8x256xf32>
    %c1 = arith.constant 1 : index
    %c0_7 = arith.constant 0 : index
    %c0_8 = arith.constant 0 : index
    %10 = vector.load %arg7[%c1, %c0_7, %c0_8] : memref<2x32x256xbf16, #tpu.memory_space<vmem>>, vector<1x32x256xbf16>
    %11 = vector.shape_cast %10 : vector<1x32x256xbf16> to vector<32x256xbf16>
    %cst_9 = arith.constant dense<0.000000e+00> : vector<8x256xf32>
    %12 = tpu.matmul %3, %11, %cst_9 {dimension_numbers = #tpu.dot_dimension_numbers<[1], [0], [0], [1], [0, 0, 1, 1], [], []>} : vector<8x32xbf16>, vector<32x256xbf16>, vector<8x256xf32> -> vector<8x256xf32>
    %c1_10 = arith.constant 1 : index
    %c0_11 = arith.constant 0 : index
    %13 = vector.load %arg8[%c1_10, %c0_11] : memref<2x256xf32, #tpu.memory_space<vmem>>, vector<1x256xf32>
    %14 = vector.broadcast %13 : vector<1x256xf32> to vector<8x256xf32>
    %15 = arith.addf %12, %14 : vector<8x256xf32>
    %16 = arith.maximumf %9, %15 : vector<8x256xf32>
    %17 = arith.subf %9, %16 : vector<8x256xf32>
    %18 = math.exp %17 : vector<8x256xf32>
    %19 = arith.subf %15, %16 : vector<8x256xf32>
    %20 = math.exp %19 : vector<8x256xf32>
    %21 = arith.addf %18, %20 : vector<8x256xf32>
    %22 = tpu.reciprocal %21 : vector<8x256xf32> -> vector<8x256xf32>
    %23 = arith.mulf %18, %22 : vector<8x256xf32>
    %24 = arith.mulf %20, %22 : vector<8x256xf32>
    %c0_12 = arith.constant 0 : index
    %c0_13 = arith.constant 0 : index
    %c0_14 = arith.constant 0 : index
    %25 = vector.load %arg11[%c0_12, %c0_13, %c0_14] : memref<8x2x256xf32, #tpu.memory_space<vmem>>, vector<8x1x256xf32>
    %26 = vector.shape_cast %25 : vector<8x1x256xf32> to vector<8x256xf32>
    %27 = vector.shape_cast %23 : vector<8x256xf32> to vector<8x1x256xf32>
    tpu.vector_store %arg11[%c0_12, %c0_13, %c0_14], %27 {strides = array<i32>} : memref<8x2x256xf32, #tpu.memory_space<vmem>>, vector<8x1x256xf32>,
    %c0_15 = arith.constant 0 : index
    %c1_16 = arith.constant 1 : index
    %c0_17 = arith.constant 0 : index
    %28 = vector.load %arg11[%c0_15, %c1_16, %c0_17] : memref<8x2x256xf32, #tpu.memory_space<vmem>>, vector<8x1x256xf32>
    %29 = vector.shape_cast %28 : vector<8x1x256xf32> to vector<8x256xf32>
    %30 = vector.shape_cast %24 : vector<8x256xf32> to vector<8x1x256xf32>
    tpu.vector_store %arg11[%c0_15, %c1_16, %c0_17], %30 {strides = array<i32>} : memref<8x2x256xf32, #tpu.memory_space<vmem>>, vector<8x1x256xf32>,
    %c0_18 = arith.constant 0 : index
    %c0_19 = arith.constant 0 : index
    %31 = vector.load %arg14[%c0_18, %c0_19] : memref<8x16xf32, #tpu.memory_space<vmem>>, vector<8x16xf32>
    %32 = vector.extract_strided_slice %31 {offsets = [0, 0], sizes = [8, 1], strides = [1, 1]} : vector<8x16xf32> to vector<8x1xf32>
    %33 = vector.broadcast %32 : vector<8x1xf32> to vector<8x256xf32>
    %34 = arith.mulf %33, %23 : vector<8x256xf32>
    %35 = vector.extract_strided_slice %31 {offsets = [0, 8], sizes = [8, 1], strides = [1, 1]} : vector<8x16xf32> to vector<8x1xf32>
    %36 = vector.broadcast %35 : vector<8x1xf32> to vector<8x256xf32>
    %37 = arith.mulf %36, %24 : vector<8x256xf32>
    %38 = arith.addf %34, %37 : vector<8x256xf32>
    %c0_20 = arith.constant 0 : index
    %c0_21 = arith.constant 0 : index
    %c0_22 = arith.constant 0 : index
    %39 = vector.load %arg12[%c0_20, %c0_21, %c0_22] : memref<8x8x256xf32, #tpu.memory_space<vmem>>, vector<8x1x256xf32>
    %40 = vector.shape_cast %39 : vector<8x1x256xf32> to vector<8x256xf32>
    %41 = vector.shape_cast %38 : vector<8x256xf32> to vector<8x1x256xf32>
    tpu.vector_store %arg12[%c0_20, %c0_21, %c0_22], %41 {strides = array<i32>} : memref<8x8x256xf32, #tpu.memory_space<vmem>>, vector<8x1x256xf32>,
    %42 = vector.extract_strided_slice %31 {offsets = [0, 1], sizes = [8, 1], strides = [1, 1]} : vector<8x16xf32> to vector<8x1xf32>
    %43 = vector.broadcast %42 : vector<8x1xf32> to vector<8x256xf32>
    %44 = arith.mulf %43, %23 : vector<8x256xf32>
    %45 = vector.extract_strided_slice %31 {offsets = [0, 9], sizes = [8, 1], strides = [1, 1]} : vector<8x16xf32> to vector<8x1xf32>
    %46 = vector.broadcast %45 : vector<8x1xf32> to vector<8x256xf32>
    %47 = arith.mulf %46, %24 : vector<8x256xf32>
    %48 = arith.addf %44, %47 : vector<8x256xf32>
    %c0_23 = arith.constant 0 : index
    %c1_24 = arith.constant 1 : index
    %c0_25 = arith.constant 0 : index
    %49 = vector.load %arg12[%c0_23, %c1_24, %c0_25] : memref<8x8x256xf32, #tpu.memory_space<vmem>>, vector<8x1x256xf32>
    %50 = vector.shape_cast %49 : vector<8x1x256xf32> to vector<8x256xf32>
    %51 = vector.shape_cast %48 : vector<8x256xf32> to vector<8x1x256xf32>
    tpu.vector_store %arg12[%c0_23, %c1_24, %c0_25], %51 {strides = array<i32>} : memref<8x8x256xf32, #tpu.memory_space<vmem>>, vector<8x1x256xf32>,
    %52 = vector.extract_strided_slice %31 {offsets = [0, 2], sizes = [8, 1], strides = [1, 1]} : vector<8x16xf32> to vector<8x1xf32>
    %53 = vector.broadcast %52 : vector<8x1xf32> to vector<8x256xf32>
    %54 = arith.mulf %53, %23 : vector<8x256xf32>
    %55 = vector.extract_strided_slice %31 {offsets = [0, 10], sizes = [8, 1], strides = [1, 1]} : vector<8x16xf32> to vector<8x1xf32>
    %56 = vector.broadcast %55 : vector<8x1xf32> to vector<8x256xf32>
    %57 = arith.mulf %56, %24 : vector<8x256xf32>
    %58 = arith.addf %54, %57 : vector<8x256xf32>
    %c0_26 = arith.constant 0 : index
    %c2 = arith.constant 2 : index
    %c0_27 = arith.constant 0 : index
    %59 = vector.load %arg12[%c0_26, %c2, %c0_27] : memref<8x8x256xf32, #tpu.memory_space<vmem>>, vector<8x1x256xf32>
    %60 = vector.shape_cast %59 : vector<8x1x256xf32> to vector<8x256xf32>
    %61 = vector.shape_cast %58 : vector<8x256xf32> to vector<8x1x256xf32>
    tpu.vector_store %arg12[%c0_26, %c2, %c0_27], %61 {strides = array<i32>} : memref<8x8x256xf32, #tpu.memory_space<vmem>>, vector<8x1x256xf32>,
    %62 = vector.extract_strided_slice %31 {offsets = [0, 3], sizes = [8, 1], strides = [1, 1]} : vector<8x16xf32> to vector<8x1xf32>
    %63 = vector.broadcast %62 : vector<8x1xf32> to vector<8x256xf32>
    %64 = arith.mulf %63, %23 : vector<8x256xf32>
    %65 = vector.extract_strided_slice %31 {offsets = [0, 11], sizes = [8, 1], strides = [1, 1]} : vector<8x16xf32> to vector<8x1xf32>
    %66 = vector.broadcast %65 : vector<8x1xf32> to vector<8x256xf32>
    %67 = arith.mulf %66, %24 : vector<8x256xf32>
    %68 = arith.addf %64, %67 : vector<8x256xf32>
    %c0_28 = arith.constant 0 : index
    %c3 = arith.constant 3 : index
    %c0_29 = arith.constant 0 : index
    %69 = vector.load %arg12[%c0_28, %c3, %c0_29] : memref<8x8x256xf32, #tpu.memory_space<vmem>>, vector<8x1x256xf32>
    %70 = vector.shape_cast %69 : vector<8x1x256xf32> to vector<8x256xf32>
    %71 = vector.shape_cast %68 : vector<8x256xf32> to vector<8x1x256xf32>
    tpu.vector_store %arg12[%c0_28, %c3, %c0_29], %71 {strides = array<i32>} : memref<8x8x256xf32, #tpu.memory_space<vmem>>, vector<8x1x256xf32>,
    %72 = vector.extract_strided_slice %31 {offsets = [0, 4], sizes = [8, 1], strides = [1, 1]} : vector<8x16xf32> to vector<8x1xf32>
    %73 = vector.broadcast %72 : vector<8x1xf32> to vector<8x256xf32>
    %74 = arith.mulf %73, %23 : vector<8x256xf32>
    %75 = vector.extract_strided_slice %31 {offsets = [0, 12], sizes = [8, 1], strides = [1, 1]} : vector<8x16xf32> to vector<8x1xf32>
    %76 = vector.broadcast %75 : vector<8x1xf32> to vector<8x256xf32>
    %77 = arith.mulf %76, %24 : vector<8x256xf32>
    %78 = arith.addf %74, %77 : vector<8x256xf32>
    %c0_30 = arith.constant 0 : index
    %c4 = arith.constant 4 : index
    %c0_31 = arith.constant 0 : index
    %79 = vector.load %arg12[%c0_30, %c4, %c0_31] : memref<8x8x256xf32, #tpu.memory_space<vmem>>, vector<8x1x256xf32>
    %80 = vector.shape_cast %79 : vector<8x1x256xf32> to vector<8x256xf32>
    %81 = vector.shape_cast %78 : vector<8x256xf32> to vector<8x1x256xf32>
    tpu.vector_store %arg12[%c0_30, %c4, %c0_31], %81 {strides = array<i32>} : memref<8x8x256xf32, #tpu.memory_space<vmem>>, vector<8x1x256xf32>,
    %82 = vector.extract_strided_slice %31 {offsets = [0, 5], sizes = [8, 1], strides = [1, 1]} : vector<8x16xf32> to vector<8x1xf32>
    %83 = vector.broadcast %82 : vector<8x1xf32> to vector<8x256xf32>
    %84 = arith.mulf %83, %23 : vector<8x256xf32>
    %85 = vector.extract_strided_slice %31 {offsets = [0, 13], sizes = [8, 1], strides = [1, 1]} : vector<8x16xf32> to vector<8x1xf32>
    %86 = vector.broadcast %85 : vector<8x1xf32> to vector<8x256xf32>
    %87 = arith.mulf %86, %24 : vector<8x256xf32>
    %88 = arith.addf %84, %87 : vector<8x256xf32>
    %c0_32 = arith.constant 0 : index
    %c5 = arith.constant 5 : index
    %c0_33 = arith.constant 0 : index
    %89 = vector.load %arg12[%c0_32, %c5, %c0_33] : memref<8x8x256xf32, #tpu.memory_space<vmem>>, vector<8x1x256xf32>
    %90 = vector.shape_cast %89 : vector<8x1x256xf32> to vector<8x256xf32>
    %91 = vector.shape_cast %88 : vector<8x256xf32> to vector<8x1x256xf32>
    tpu.vector_store %arg12[%c0_32, %c5, %c0_33], %91 {strides = array<i32>} : memref<8x8x256xf32, #tpu.memory_space<vmem>>, vector<8x1x256xf32>,
    %92 = vector.extract_strided_slice %31 {offsets = [0, 6], sizes = [8, 1], strides = [1, 1]} : vector<8x16xf32> to vector<8x1xf32>
    %93 = vector.broadcast %92 : vector<8x1xf32> to vector<8x256xf32>
    %94 = arith.mulf %93, %23 : vector<8x256xf32>
    %95 = vector.extract_strided_slice %31 {offsets = [0, 14], sizes = [8, 1], strides = [1, 1]} : vector<8x16xf32> to vector<8x1xf32>
    %96 = vector.broadcast %95 : vector<8x1xf32> to vector<8x256xf32>
    %97 = arith.mulf %96, %24 : vector<8x256xf32>
    %98 = arith.addf %94, %97 : vector<8x256xf32>
    %c0_34 = arith.constant 0 : index
    %c6 = arith.constant 6 : index
    %c0_35 = arith.constant 0 : index
    %99 = vector.load %arg12[%c0_34, %c6, %c0_35] : memref<8x8x256xf32, #tpu.memory_space<vmem>>, vector<8x1x256xf32>
    %100 = vector.shape_cast %99 : vector<8x1x256xf32> to vector<8x256xf32>
    %101 = vector.shape_cast %98 : vector<8x256xf32> to vector<8x1x256xf32>
    tpu.vector_store %arg12[%c0_34, %c6, %c0_35], %101 {strides = array<i32>} : memref<8x8x256xf32, #tpu.memory_space<vmem>>, vector<8x1x256xf32>,
    %102 = vector.extract_strided_slice %31 {offsets = [0, 7], sizes = [8, 1], strides = [1, 1]} : vector<8x16xf32> to vector<8x1xf32>
    %103 = vector.broadcast %102 : vector<8x1xf32> to vector<8x256xf32>
    %104 = arith.mulf %103, %23 : vector<8x256xf32>
    %105 = vector.extract_strided_slice %31 {offsets = [0, 15], sizes = [8, 1], strides = [1, 1]} : vector<8x16xf32> to vector<8x1xf32>
    %106 = vector.broadcast %105 : vector<8x1xf32> to vector<8x256xf32>
    %107 = arith.mulf %106, %24 : vector<8x256xf32>
    %108 = arith.addf %104, %107 : vector<8x256xf32>
    %c0_36 = arith.constant 0 : index
    %c7 = arith.constant 7 : index
    %c0_37 = arith.constant 0 : index
    %109 = vector.load %arg12[%c0_36, %c7, %c0_37] : memref<8x8x256xf32, #tpu.memory_space<vmem>>, vector<8x1x256xf32>
    %110 = vector.shape_cast %109 : vector<8x1x256xf32> to vector<8x256xf32>
    %111 = vector.shape_cast %108 : vector<8x256xf32> to vector<8x1x256xf32>
    tpu.vector_store %arg12[%c0_36, %c7, %c0_37], %111 {strides = array<i32>} : memref<8x8x256xf32, #tpu.memory_space<vmem>>, vector<8x1x256xf32>,
    return
  }
  func.func @transform_0(%arg0: i32, %arg1: i32) -> (i32, i32) {
    %c0_i32 = arith.constant 0 : i32
    %c0_i32_0 = arith.constant 0 : i32
    return %arg0, %c0_i32 : i32, i32
  }
  func.func @transform_1(%arg0: i32, %arg1: i32) -> (i32, i32) {
    %c0_i32 = arith.constant 0 : i32
    %c0_i32_0 = arith.constant 0 : i32
    %c0_i32_1 = arith.constant 0 : i32
    return %c0_i32, %c0_i32_0 : i32, i32
  }
  func.func @transform_2(%arg0: i32, %arg1: i32) -> (i32, i32) {
    %c0_i32 = arith.constant 0 : i32
    %c0_i32_0 = arith.constant 0 : i32
    %c0_i32_1 = arith.constant 0 : i32
    return %c0_i32, %c0_i32_0 : i32, i32
  }
  func.func @transform_3(%arg0: i32, %arg1: i32) -> (i32, i32) {
    %c0_i32 = arith.constant 0 : i32
    %c0_i32_0 = arith.constant 0 : i32
    %c0_i32_1 = arith.constant 0 : i32
    return %c0_i32, %c0_i32_0 : i32, i32
  }
  func.func @transform_4(%arg0: i32, %arg1: i32) -> (i32, i32) {
    %c0_i32 = arith.constant 0 : i32
    %c0_i32_0 = arith.constant 0 : i32
    %c0_i32_1 = arith.constant 0 : i32
    return %c0_i32, %c0_i32_0 : i32, i32
  }
  func.func @transform_5(%arg0: i32, %arg1: i32) -> (i32, i32, i32) {
    %c0_i32 = arith.constant 0 : i32
    %c0_i32_0 = arith.constant 0 : i32
    %c0_i32_1 = arith.constant 0 : i32
    return %c0_i32, %c0_i32_0, %arg1 : i32, i32, i32
  }
  func.func @transform_6(%arg0: i32, %arg1: i32) -> (i32, i32) {
    %c0_i32 = arith.constant 0 : i32
    %c0_i32_0 = arith.constant 0 : i32
    return %c0_i32, %arg1 : i32, i32
  }
  func.func @transform_7(%arg0: i32, %arg1: i32) -> (i32, i32) {
    %c0_i32 = arith.constant 0 : i32
    %c0_i32_0 = arith.constant 0 : i32
    return %arg0, %c0_i32 : i32, i32
  }
  func.func @transform_8(%arg0: i32, %arg1: i32) -> (i32, i32) {
    %c0_i32 = arith.constant 0 : i32
    %c0_i32_0 = arith.constant 0 : i32
    return %arg0, %c0_i32 : i32, i32
  }
  func.func @transform_9(%arg0: i32, %arg1: i32) -> (i32, i32, i32) {
    %c0_i32 = arith.constant 0 : i32
    %c0_i32_0 = arith.constant 0 : i32
    return %arg0, %c0_i32, %arg1 : i32, i32, i32
  }
  func.func @transform_10(%arg0: i32, %arg1: i32) -> (i32, i32, i32) {
    %c0_i32 = arith.constant 0 : i32
    %c0_i32_0 = arith.constant 0 : i32
    return %arg0, %c0_i32, %arg1 : i32, i32, i32
  }
}

module attributes {stable_mosaic.version = 11 : i64} {
  func.func @_cmg_kernel(%arg0: i32, %arg1: i32, %arg2: memref<8x3xf32, #tpu.memory_space<vmem>>, %arg3: memref<3x32xbf16, #tpu.memory_space<vmem>>, %arg4: memref<1x32xf32, #tpu.memory_space<vmem>>, %arg5: memref<32x48xbf16, #tpu.memory_space<vmem>>, %arg6: memref<1x48xf32, #tpu.memory_space<vmem>>, %arg7: memref<2x32x256xbf16, #tpu.memory_space<vmem>>, %arg8: memref<2x256xf32, #tpu.memory_space<vmem>>, %arg9: memref<8x32xf32, #tpu.memory_space<vmem>>, %arg10: memref<8x32xf32, #tpu.memory_space<vmem>>, %arg11: memref<8x2x256xf32, #tpu.memory_space<vmem>>, %arg12: memref<8x8x256xf32, #tpu.memory_space<vmem>>, %arg13: memref<8x32xbf16, #tpu.memory_space<vmem>>, %arg14: memref<8x16xf32, #tpu.memory_space<vmem>>) attributes {dimension_semantics = [#tpu.dimension_semantics<parallel>, #tpu.dimension_semantics<arbitrary>], iteration_bounds = array<i64: 2, 1>, scalar_prefetch = 0 : i64, scratch_operands = 2 : i64, tpu.core_type = #tpu.core_type<tc>, window_params = [{transform_indices = @transform_0, window_bounds = array<i64: 8, 3>}, {pipeline_mode = #tpu.pipeline_mode<synchronous>, transform_indices = @transform_1, window_bounds = array<i64: 3, 32>}, {pipeline_mode = #tpu.pipeline_mode<synchronous>, transform_indices = @transform_2, window_bounds = array<i64: 1, 32>}, {pipeline_mode = #tpu.pipeline_mode<synchronous>, transform_indices = @transform_3, window_bounds = array<i64: 32, 48>}, {pipeline_mode = #tpu.pipeline_mode<synchronous>, transform_indices = @transform_4, window_bounds = array<i64: 1, 48>}, {transform_indices = @transform_5, window_bounds = array<i64: 2, 32, 256>}, {transform_indices = @transform_6, window_bounds = array<i64: 2, 256>}, {transform_indices = @transform_7, window_bounds = array<i64: 8, 32>}, {transform_indices = @transform_8, window_bounds = array<i64: 8, 32>}, {transform_indices = @transform_9, window_bounds = array<i64: 8, 2, 256>}, {transform_indices = @transform_10, window_bounds = array<i64: 8, 8, 256>}]} {
    %c0_i32 = arith.constant 0 : i32
    %0 = arith.cmpi eq, %arg1, %c0_i32 : i32
    %1 = arith.extui %0 : i1 to i32
    %c0_i32_0 = arith.constant 0 : i32
    %2 = arith.cmpi ne, %1, %c0_i32_0 : i32
    scf.if %2 {
      %c0_38 = arith.constant 0 : index
      %c0_39 = arith.constant 0 : index
      %112 = vector.load %arg2[%c0_38, %c0_39] : memref<8x3xf32, #tpu.memory_space<vmem>>, vector<8x3xf32>
      %113 = arith.truncf %112 : vector<8x3xf32> to vector<8x3xbf16>
      %c0_40 = arith.constant 0 : index
      %c0_41 = arith.constant 0 : index
      %114 = vector.load %arg3[%c0_40, %c0_41] : memref<3x32xbf16, #tpu.memory_space<vmem>>, vector<3x32xbf16>
      %cst_42 = arith.constant dense<0.000000e+00> : vector<8x32xf32>
      %115 = tpu.matmul %113, %114, %cst_42 {dimension_numbers = #tpu.dot_dimension_numbers<[1], [0], [0], [1], [0, 0, 1, 1], [], []>} : vector<8x3xbf16>, vector<3x32xbf16>, vector<8x32xf32> -> vector<8x32xf32>
      %c0_43 = arith.constant 0 : index
      %c0_44 = arith.constant 0 : index
      %116 = vector.load %arg4[%c0_43, %c0_44] : memref<1x32xf32, #tpu.memory_space<vmem>>, vector<1x32xf32>
      %117 = vector.broadcast %116 : vector<1x32xf32> to vector<8x32xf32>
      %118 = arith.addf %115, %117 : vector<8x32xf32>
      %c0_45 = arith.constant 0 : index
      %c0_46 = arith.constant 0 : index
      %119 = vector.load %arg9[%c0_45, %c0_46] : memref<8x32xf32, #tpu.memory_space<vmem>>, vector<8x32xf32>
      tpu.vector_store %arg9[%c0_45, %c0_46], %118 {strides = array<i32>} : memref<8x32xf32, #tpu.memory_space<vmem>>, vector<8x32xf32>,
      %120 = arith.truncf %118 : vector<8x32xf32> to vector<8x32xbf16>
      %c0_47 = arith.constant 0 : index
      %c0_48 = arith.constant 0 : index
      %121 = vector.load %arg13[%c0_47, %c0_48] : memref<8x32xbf16, #tpu.memory_space<vmem>>, vector<8x32xbf16>
      tpu.vector_store %arg13[%c0_47, %c0_48], %120 {strides = array<i32>} : memref<8x32xbf16, #tpu.memory_space<vmem>>, vector<8x32xbf16>,
      %122 = arith.truncf %118 : vector<8x32xf32> to vector<8x32xbf16>
      %c0_49 = arith.constant 0 : index
      %c0_50 = arith.constant 0 : index
      %123 = vector.load %arg5[%c0_49, %c0_50] : memref<32x48xbf16, #tpu.memory_space<vmem>>, vector<32x48xbf16>
      %cst_51 = arith.constant dense<0.000000e+00> : vector<8x48xf32>
      %124 = tpu.matmul %122, %123, %cst_51 {dimension_numbers = #tpu.dot_dimension_numbers<[1], [0], [0], [1], [0, 0, 1, 1], [], []>} : vector<8x32xbf16>, vector<32x48xbf16>, vector<8x48xf32> -> vector<8x48xf32>
      %c0_52 = arith.constant 0 : index
      %c0_53 = arith.constant 0 : index
      %125 = vector.load %arg6[%c0_52, %c0_53] : memref<1x48xf32, #tpu.memory_space<vmem>>, vector<1x48xf32>
      %126 = vector.broadcast %125 : vector<1x48xf32> to vector<8x48xf32>
      %127 = arith.addf %124, %126 : vector<8x48xf32>
      %128 = vector.extract_strided_slice %127 {offsets = [0, 0], sizes = [8, 32], strides = [1, 1]} : vector<8x48xf32> to vector<8x32xf32>
      %c0_54 = arith.constant 0 : index
      %c0_55 = arith.constant 0 : index
      %129 = vector.load %arg10[%c0_54, %c0_55] : memref<8x32xf32, #tpu.memory_space<vmem>>, vector<8x32xf32>
      tpu.vector_store %arg10[%c0_54, %c0_55], %128 {strides = array<i32>} : memref<8x32xf32, #tpu.memory_space<vmem>>, vector<8x32xf32>,
      %130 = vector.extract_strided_slice %127 {offsets = [0, 32], sizes = [8, 16], strides = [1, 1]} : vector<8x48xf32> to vector<8x16xf32>
      %c0_56 = arith.constant 0 : index
      %c0_57 = arith.constant 0 : index
      %131 = vector.load %arg14[%c0_56, %c0_57] : memref<8x16xf32, #tpu.memory_space<vmem>>, vector<8x16xf32>
      tpu.vector_store %arg14[%c0_56, %c0_57], %130 {strides = array<i32>} : memref<8x16xf32, #tpu.memory_space<vmem>>, vector<8x16xf32>,
    } else {
    }
    %c0 = arith.constant 0 : index
    %c0_1 = arith.constant 0 : index
    %3 = vector.load %arg13[%c0, %c0_1] : memref<8x32xbf16, #tpu.memory_space<vmem>>, vector<8x32xbf16>
    %c0_2 = arith.constant 0 : index
    %c0_3 = arith.constant 0 : index
    %c0_4 = arith.constant 0 : index
    %4 = vector.load %arg7[%c0_2, %c0_3, %c0_4] : memref<2x32x256xbf16, #tpu.memory_space<vmem>>, vector<1x32x256xbf16>
    %5 = vector.shape_cast %4 : vector<1x32x256xbf16> to vector<32x256xbf16>
    %cst = arith.constant dense<0.000000e+00> : vector<8x256xf32>
    %6 = tpu.matmul %3, %5, %cst {dimension_numbers = #tpu.dot_dimension_numbers<[1], [0], [0], [1], [0, 0, 1, 1], [], []>} : vector<8x32xbf16>, vector<32x256xbf16>, vector<8x256xf32> -> vector<8x256xf32>
    %c0_5 = arith.constant 0 : index
    %c0_6 = arith.constant 0 : index
    %7 = vector.load %arg8[%c0_5, %c0_6] : memref<2x256xf32, #tpu.memory_space<vmem>>, vector<1x256xf32>
    %8 = vector.broadcast %7 : vector<1x256xf32> to vector<8x256xf32>
    %9 = arith.addf %6, %8 : vector<8x256xf32>
    %c1 = arith.constant 1 : index
    %c0_7 = arith.constant 0 : index
    %c0_8 = arith.constant 0 : index
    %10 = vector.load %arg7[%c1, %c0_7, %c0_8] : memref<2x32x256xbf16, #tpu.memory_space<vmem>>, vector<1x32x256xbf16>
    %11 = vector.shape_cast %10 : vector<1x32x256xbf16> to vector<32x256xbf16>
    %cst_9 = arith.constant dense<0.000000e+00> : vector<8x256xf32>
    %12 = tpu.matmul %3, %11, %cst_9 {dimension_numbers = #tpu.dot_dimension_numbers<[1], [0], [0], [1], [0, 0, 1, 1], [], []>} : vector<8x32xbf16>, vector<32x256xbf16>, vector<8x256xf32> -> vector<8x256xf32>
    %c1_10 = arith.constant 1 : index
    %c0_11 = arith.constant 0 : index
    %13 = vector.load %arg8[%c1_10, %c0_11] : memref<2x256xf32, #tpu.memory_space<vmem>>, vector<1x256xf32>
    %14 = vector.broadcast %13 : vector<1x256xf32> to vector<8x256xf32>
    %15 = arith.addf %12, %14 : vector<8x256xf32>
    %16 = arith.maximumf %9, %15 : vector<8x256xf32>
    %17 = arith.subf %9, %16 : vector<8x256xf32>
    %18 = math.exp %17 : vector<8x256xf32>
    %19 = arith.subf %15, %16 : vector<8x256xf32>
    %20 = math.exp %19 : vector<8x256xf32>
    %21 = arith.addf %18, %20 : vector<8x256xf32>
    %22 = tpu.reciprocal %21 : vector<8x256xf32> -> vector<8x256xf32>
    %23 = arith.mulf %18, %22 : vector<8x256xf32>
    %24 = arith.mulf %20, %22 : vector<8x256xf32>
    %c0_12 = arith.constant 0 : index
    %c0_13 = arith.constant 0 : index
    %c0_14 = arith.constant 0 : index
    %25 = vector.load %arg11[%c0_12, %c0_13, %c0_14] : memref<8x2x256xf32, #tpu.memory_space<vmem>>, vector<8x1x256xf32>
    %26 = vector.shape_cast %25 : vector<8x1x256xf32> to vector<8x256xf32>
    %27 = vector.shape_cast %23 : vector<8x256xf32> to vector<8x1x256xf32>
    tpu.vector_store %arg11[%c0_12, %c0_13, %c0_14], %27 {strides = array<i32>} : memref<8x2x256xf32, #tpu.memory_space<vmem>>, vector<8x1x256xf32>,
    %c0_15 = arith.constant 0 : index
    %c1_16 = arith.constant 1 : index
    %c0_17 = arith.constant 0 : index
    %28 = vector.load %arg11[%c0_15, %c1_16, %c0_17] : memref<8x2x256xf32, #tpu.memory_space<vmem>>, vector<8x1x256xf32>
    %29 = vector.shape_cast %28 : vector<8x1x256xf32> to vector<8x256xf32>
    %30 = vector.shape_cast %24 : vector<8x256xf32> to vector<8x1x256xf32>
    tpu.vector_store %arg11[%c0_15, %c1_16, %c0_17], %30 {strides = array<i32>} : memref<8x2x256xf32, #tpu.memory_space<vmem>>, vector<8x1x256xf32>,
    %c0_18 = arith.constant 0 : index
    %c0_19 = arith.constant 0 : index
    %31 = vector.load %arg14[%c0_18, %c0_19] : memref<8x16xf32, #tpu.memory_space<vmem>>, vector<8x16xf32>
    %32 = vector.extract_strided_slice %31 {offsets = [0, 0], sizes = [8, 1], strides = [1, 1]} : vector<8x16xf32> to vector<8x1xf32>
    %33 = vector.broadcast %32 : vector<8x1xf32> to vector<8x256xf32>
    %34 = arith.mulf %33, %23 : vector<8x256xf32>
    %35 = vector.extract_strided_slice %31 {offsets = [0, 8], sizes = [8, 1], strides = [1, 1]} : vector<8x16xf32> to vector<8x1xf32>
    %36 = vector.broadcast %35 : vector<8x1xf32> to vector<8x256xf32>
    %37 = arith.mulf %36, %24 : vector<8x256xf32>
    %38 = arith.addf %34, %37 : vector<8x256xf32>
    %c0_20 = arith.constant 0 : index
    %c0_21 = arith.constant 0 : index
    %c0_22 = arith.constant 0 : index
    %39 = vector.load %arg12[%c0_20, %c0_21, %c0_22] : memref<8x8x256xf32, #tpu.memory_space<vmem>>, vector<8x1x256xf32>
    %40 = vector.shape_cast %39 : vector<8x1x256xf32> to vector<8x256xf32>
    %41 = vector.shape_cast %38 : vector<8x256xf32> to vector<8x1x256xf32>
    tpu.vector_store %arg12[%c0_20, %c0_21, %c0_22], %41 {strides = array<i32>} : memref<8x8x256xf32, #tpu.memory_space<vmem>>, vector<8x1x256xf32>,
    %42 = vector.extract_strided_slice %31 {offsets = [0, 1], sizes = [8, 1], strides = [1, 1]} : vector<8x16xf32> to vector<8x1xf32>
    %43 = vector.broadcast %42 : vector<8x1xf32> to vector<8x256xf32>
    %44 = arith.mulf %43, %23 : vector<8x256xf32>
    %45 = vector.extract_strided_slice %31 {offsets = [0, 9], sizes = [8, 1], strides = [1, 1]} : vector<8x16xf32> to vector<8x1xf32>
    %46 = vector.broadcast %45 : vector<8x1xf32> to vector<8x256xf32>
    %47 = arith.mulf %46, %24 : vector<8x256xf32>
    %48 = arith.addf %44, %47 : vector<8x256xf32>
    %c0_23 = arith.constant 0 : index
    %c1_24 = arith.constant 1 : index
    %c0_25 = arith.constant 0 : index
    %49 = vector.load %arg12[%c0_23, %c1_24, %c0_25] : memref<8x8x256xf32, #tpu.memory_space<vmem>>, vector<8x1x256xf32>
    %50 = vector.shape_cast %49 : vector<8x1x256xf32> to vector<8x256xf32>
    %51 = vector.shape_cast %48 : vector<8x256xf32> to vector<8x1x256xf32>
    tpu.vector_store %arg12[%c0_23, %c1_24, %c0_25], %51 {strides = array<i32>} : memref<8x8x256xf32, #tpu.memory_space<vmem>>, vector<8x1x256xf32>,
    %52 = vector.extract_strided_slice %31 {offsets = [0, 2], sizes = [8, 1], strides = [1, 1]} : vector<8x16xf32> to vector<8x1xf32>
    %53 = vector.broadcast %52 : vector<8x1xf32> to vector<8x256xf32>
    %54 = arith.mulf %53, %23 : vector<8x256xf32>
    %55 = vector.extract_strided_slice %31 {offsets = [0, 10], sizes = [8, 1], strides = [1, 1]} : vector<8x16xf32> to vector<8x1xf32>
    %56 = vector.broadcast %55 : vector<8x1xf32> to vector<8x256xf32>
    %57 = arith.mulf %56, %24 : vector<8x256xf32>
    %58 = arith.addf %54, %57 : vector<8x256xf32>
    %c0_26 = arith.constant 0 : index
    %c2 = arith.constant 2 : index
    %c0_27 = arith.constant 0 : index
    %59 = vector.load %arg12[%c0_26, %c2, %c0_27] : memref<8x8x256xf32, #tpu.memory_space<vmem>>, vector<8x1x256xf32>
    %60 = vector.shape_cast %59 : vector<8x1x256xf32> to vector<8x256xf32>
    %61 = vector.shape_cast %58 : vector<8x256xf32> to vector<8x1x256xf32>
    tpu.vector_store %arg12[%c0_26, %c2, %c0_27], %61 {strides = array<i32>} : memref<8x8x256xf32, #tpu.memory_space<vmem>>, vector<8x1x256xf32>,
    %62 = vector.extract_strided_slice %31 {offsets = [0, 3], sizes = [8, 1], strides = [1, 1]} : vector<8x16xf32> to vector<8x1xf32>
    %63 = vector.broadcast %62 : vector<8x1xf32> to vector<8x256xf32>
    %64 = arith.mulf %63, %23 : vector<8x256xf32>
    %65 = vector.extract_strided_slice %31 {offsets = [0, 11], sizes = [8, 1], strides = [1, 1]} : vector<8x16xf32> to vector<8x1xf32>
    %66 = vector.broadcast %65 : vector<8x1xf32> to vector<8x256xf32>
    %67 = arith.mulf %66, %24 : vector<8x256xf32>
    %68 = arith.addf %64, %67 : vector<8x256xf32>
    %c0_28 = arith.constant 0 : index
    %c3 = arith.constant 3 : index
    %c0_29 = arith.constant 0 : index
    %69 = vector.load %arg12[%c0_28, %c3, %c0_29] : memref<8x8x256xf32, #tpu.memory_space<vmem>>, vector<8x1x256xf32>
    %70 = vector.shape_cast %69 : vector<8x1x256xf32> to vector<8x256xf32>
    %71 = vector.shape_cast %68 : vector<8x256xf32> to vector<8x1x256xf32>
    tpu.vector_store %arg12[%c0_28, %c3, %c0_29], %71 {strides = array<i32>} : memref<8x8x256xf32, #tpu.memory_space<vmem>>, vector<8x1x256xf32>,
    %72 = vector.extract_strided_slice %31 {offsets = [0, 4], sizes = [8, 1], strides = [1, 1]} : vector<8x16xf32> to vector<8x1xf32>
    %73 = vector.broadcast %72 : vector<8x1xf32> to vector<8x256xf32>
    %74 = arith.mulf %73, %23 : vector<8x256xf32>
    %75 = vector.extract_strided_slice %31 {offsets = [0, 12], sizes = [8, 1], strides = [1, 1]} : vector<8x16xf32> to vector<8x1xf32>
    %76 = vector.broadcast %75 : vector<8x1xf32> to vector<8x256xf32>
    %77 = arith.mulf %76, %24 : vector<8x256xf32>
    %78 = arith.addf %74, %77 : vector<8x256xf32>
    %c0_30 = arith.constant 0 : index
    %c4 = arith.constant 4 : index
    %c0_31 = arith.constant 0 : index
    %79 = vector.load %arg12[%c0_30, %c4, %c0_31] : memref<8x8x256xf32, #tpu.memory_space<vmem>>, vector<8x1x256xf32>
    %80 = vector.shape_cast %79 : vector<8x1x256xf32> to vector<8x256xf32>
    %81 = vector.shape_cast %78 : vector<8x256xf32> to vector<8x1x256xf32>
    tpu.vector_store %arg12[%c0_30, %c4, %c0_31], %81 {strides = array<i32>} : memref<8x8x256xf32, #tpu.memory_space<vmem>>, vector<8x1x256xf32>,
    %82 = vector.extract_strided_slice %31 {offsets = [0, 5], sizes = [8, 1], strides = [1, 1]} : vector<8x16xf32> to vector<8x1xf32>
    %83 = vector.broadcast %82 : vector<8x1xf32> to vector<8x256xf32>
    %84 = arith.mulf %83, %23 : vector<8x256xf32>
    %85 = vector.extract_strided_slice %31 {offsets = [0, 13], sizes = [8, 1], strides = [1, 1]} : vector<8x16xf32> to vector<8x1xf32>
    %86 = vector.broadcast %85 : vector<8x1xf32> to vector<8x256xf32>
    %87 = arith.mulf %86, %24 : vector<8x256xf32>
    %88 = arith.addf %84, %87 : vector<8x256xf32>
    %c0_32 = arith.constant 0 : index
    %c5 = arith.constant 5 : index
    %c0_33 = arith.constant 0 : index
    %89 = vector.load %arg12[%c0_32, %c5, %c0_33] : memref<8x8x256xf32, #tpu.memory_space<vmem>>, vector<8x1x256xf32>
    %90 = vector.shape_cast %89 : vector<8x1x256xf32> to vector<8x256xf32>
    %91 = vector.shape_cast %88 : vector<8x256xf32> to vector<8x1x256xf32>
    tpu.vector_store %arg12[%c0_32, %c5, %c0_33], %91 {strides = array<i32>} : memref<8x8x256xf32, #tpu.memory_space<vmem>>, vector<8x1x256xf32>,
    %92 = vector.extract_strided_slice %31 {offsets = [0, 6], sizes = [8, 1], strides = [1, 1]} : vector<8x16xf32> to vector<8x1xf32>
    %93 = vector.broadcast %92 : vector<8x1xf32> to vector<8x256xf32>
    %94 = arith.mulf %93, %23 : vector<8x256xf32>
    %95 = vector.extract_strided_slice %31 {offsets = [0, 14], sizes = [8, 1], strides = [1, 1]} : vector<8x16xf32> to vector<8x1xf32>
    %96 = vector.broadcast %95 : vector<8x1xf32> to vector<8x256xf32>
    %97 = arith.mulf %96, %24 : vector<8x256xf32>
    %98 = arith.addf %94, %97 : vector<8x256xf32>
    %c0_34 = arith.constant 0 : index
    %c6 = arith.constant 6 : index
    %c0_35 = arith.constant 0 : index
    %99 = vector.load %arg12[%c0_34, %c6, %c0_35] : memref<8x8x256xf32, #tpu.memory_space<vmem>>, vector<8x1x256xf32>
    %100 = vector.shape_cast %99 : vector<8x1x256xf32> to vector<8x256xf32>
    %101 = vector.shape_cast %98 : vector<8x256xf32> to vector<8x1x256xf32>
    tpu.vector_store %arg12[%c0_34, %c6, %c0_35], %101 {strides = array<i32>} : memref<8x8x256xf32, #tpu.memory_space<vmem>>, vector<8x1x256xf32>,
    %102 = vector.extract_strided_slice %31 {offsets = [0, 7], sizes = [8, 1], strides = [1, 1]} : vector<8x16xf32> to vector<8x1xf32>
    %103 = vector.broadcast %102 : vector<8x1xf32> to vector<8x256xf32>
    %104 = arith.mulf %103, %23 : vector<8x256xf32>
    %105 = vector.extract_strided_slice %31 {offsets = [0, 15], sizes = [8, 1], strides = [1, 1]} : vector<8x16xf32> to vector<8x1xf32>
    %106 = vector.broadcast %105 : vector<8x1xf32> to vector<8x256xf32>
    %107 = arith.mulf %106, %24 : vector<8x256xf32>
    %108 = arith.addf %104, %107 : vector<8x256xf32>
    %c0_36 = arith.constant 0 : index
    %c7 = arith.constant 7 : index
    %c0_37 = arith.constant 0 : index
    %109 = vector.load %arg12[%c0_36, %c7, %c0_37] : memref<8x8x256xf32, #tpu.memory_space<vmem>>, vector<8x1x256xf32>
    %110 = vector.shape_cast %109 : vector<8x1x256xf32> to vector<8x256xf32>
    %111 = vector.shape_cast %108 : vector<8x256xf32> to vector<8x1x256xf32>
    tpu.vector_store %arg12[%c0_36, %c7, %c0_37], %111 {strides = array<i32>} : memref<8x8x256xf32, #tpu.memory_space<vmem>>, vector<8x1x256xf32>,
    return
  }
  func.func @transform_0(%arg0: i32, %arg1: i32) -> (i32, i32) {
    %c0_i32 = arith.constant 0 : i32
    %c0_i32_0 = arith.constant 0 : i32
    return %arg0, %c0_i32 : i32, i32
  }
  func.func @transform_1(%arg0: i32, %arg1: i32) -> (i32, i32) {
    %c0_i32 = arith.constant 0 : i32
    %c0_i32_0 = arith.constant 0 : i32
    %c0_i32_1 = arith.constant 0 : i32
    return %c0_i32, %c0_i32_0 : i32, i32
  }
  func.func @transform_2(%arg0: i32, %arg1: i32) -> (i32, i32) {
    %c0_i32 = arith.constant 0 : i32
    %c0_i32_0 = arith.constant 0 : i32
    %c0_i32_1 = arith.constant 0 : i32
    return %c0_i32, %c0_i32_0 : i32, i32
  }
  func.func @transform_3(%arg0: i32, %arg1: i32) -> (i32, i32) {
    %c0_i32 = arith.constant 0 : i32
    %c0_i32_0 = arith.constant 0 : i32
    %c0_i32_1 = arith.constant 0 : i32
    return %c0_i32, %c0_i32_0 : i32, i32
  }
  func.func @transform_4(%arg0: i32, %arg1: i32) -> (i32, i32) {
    %c0_i32 = arith.constant 0 : i32
    %c0_i32_0 = arith.constant 0 : i32
    %c0_i32_1 = arith.constant 0 : i32
    return %c0_i32, %c0_i32_0 : i32, i32
  }
  func.func @transform_5(%arg0: i32, %arg1: i32) -> (i32, i32, i32) {
    %c0_i32 = arith.constant 0 : i32
    %c0_i32_0 = arith.constant 0 : i32
    %c0_i32_1 = arith.constant 0 : i32
    return %c0_i32, %c0_i32_0, %arg1 : i32, i32, i32
  }
  func.func @transform_6(%arg0: i32, %arg1: i32) -> (i32, i32) {
    %c0_i32 = arith.constant 0 : i32
    %c0_i32_0 = arith.constant 0 : i32
    return %c0_i32, %arg1 : i32, i32
  }
  func.func @transform_7(%arg0: i32, %arg1: i32) -> (i32, i32) {
    %c0_i32 = arith.constant 0 : i32
    %c0_i32_0 = arith.constant 0 : i32
    return %arg0, %c0_i32 : i32, i32
  }
  func.func @transform_8(%arg0: i32, %arg1: i32) -> (i32, i32) {
    %c0_i32 = arith.constant 0 : i32
    %c0_i32_0 = arith.constant 0 : i32
    return %arg0, %c0_i32 : i32, i32
  }
  func.func @transform_9(%arg0: i32, %arg1: i32) -> (i32, i32, i32) {
    %c0_i32 = arith.constant 0 : i32
    %c0_i32_0 = arith.constant 0 : i32
    return %arg0, %c0_i32, %arg1 : i32, i32, i32
  }
  func.func @transform_10(%arg0: i32, %arg1: i32) -> (i32, i32, i32) {
    %c0_i32 = arith.constant 0 : i32
    %c0_i32_0 = arith.constant 0 : i32
    return %arg0, %c0_i32, %arg1 : i32, i32, i32
  }
}

</mosaic_0001>

<llo_original>
// kernel: tpu_custom_call.1
$region0: #{tpu_custom_call.1}
  #allocation0 [shape = 'u32[]', space=smem, size = 0x4, offset = 0x4, fixed_abs, tag = 'smem constant byte address 0x4 - core index']
  #allocation1 [shape = 'u32[72,128]{1,0:T(1,128)}', space=vmem, size = 0x9000, scoped, tag = 'internal scratch']
  #allocation2 [shape = 'bf16[8,32]{1,0:T(8,128)(2,1)}', space=vmem, size = 0x800, scoped, tag = 'scratch operand']
  #allocation3 [shape = 'f32[8,16]{1,0:T(8,128)}', space=vmem, size = 0x1000, scoped, tag = 'scratch operand']
  %s0 = inlined_call_operand.vmem [shape: f32[16,3], index: 0, kind: input, shape index: {}]
  %s1 = inlined_call_operand.vmem [shape: bf16[3,32], index: 1, kind: input, shape index: {}]
  %s2 = inlined_call_operand.hbm [shape: f32[1,32], index: 2, kind: input, shape index: {}]
  %s3 = inlined_call_operand.vmem [shape: bf16[32,48], index: 3, kind: input, shape index: {}]
  %s4 = inlined_call_operand.vmem [shape: f32[1,48], index: 4, kind: input, shape index: {}]
  %s5 = inlined_call_operand.hbm [shape: bf16[2,32,256], index: 5, kind: input, shape index: {}]
  %s6 = inlined_call_operand.vmem [shape: f32[2,256], index: 6, kind: input, shape index: {}]
  %s7 = inlined_call_operand.hbm [shape: f32[16,32], index: 7, kind: output, shape index: {0}]
  %s8 = inlined_call_operand.hbm [shape: f32[16,32], index: 8, kind: output, shape index: {1}]
  %s9 = inlined_call_operand.hbm [shape: f32[16,2,256], index: 9, kind: output, shape index: {2}]
  %s10 = inlined_call_operand.hbm [shape: f32[16,8,256], index: 10, kind: output, shape index: {3}]
  %11 = xla_tuple %s7, %s8, %s9, %s10
  %s12 = sld [smem:[#allocation0]]
  $region97: #{tpu_custom_call.1} parent=0
    _
  %s14 = ssub.s32 1, %s12
  %s15 = scalar_select 0, %s14, %s12
  $region1: #{tpu_custom_call.1} parent=0
    #allocation4 [shape = 'u8[512]{0}', space=vmem, size = 0x400, scoped, tag = 'input window, operand 2, single buffered']
    #allocation5 [shape = 's32[2]{0}', space=sflag, size = 0x8, scoped, tag = 'scoped memory for tpu_custom_call.1']
    #allocation6 [shape = 's32[2]{0}', space=sflag, size = 0x8, scoped, tag = 'scoped memory for tpu_custom_call.1']
    #allocation7 [shape = 'u8[32768]{0}', space=vmem, size = 0x8000, scoped, tag = 'input window, operand 5, single buffered']
    #allocation8 [shape = 's32[1]{0}', space=sflag, size = 0x4, scoped, tag = 'scoped memory for tpu_custom_call.1']
    #allocation9 [shape = 'u8[8192]{0}', space=vmem, size = 0x2000, scoped, tag = 'output window, operand 0']
    #allocation10 [shape = 'u8[8192]{0}', space=vmem, size = 0x2000, scoped, tag = 'output window, operand 1']
    #allocation11 [shape = 's32[2]{0}', space=sflag, size = 0x8, scoped, tag = 'scoped memory for tpu_custom_call.1']
    #allocation12 [shape = 'u8[32768]{0}', space=vmem, size = 0x8000, scoped, tag = 'output window, operand 2']
    #allocation13 [shape = 'u8[131072]{0}', space=vmem, size = 0x20000, scoped, tag = 'output window, operand 3']
    #allocation14 [shape = 's32[2]{0}', space=sflag, size = 0x8, scoped, tag = 'scoped memory for tpu_custom_call.1']
    %16 = vsyncpa [#allocation5], 0
    %17 = vsyncpa [#allocation8], 0
    %18 = vsyncpa [#allocation6], 0
    %s19 = scalar_lea.sflag [#allocation6], 1
    %20 = vsyncpa %s19, 0
    %21 = vsyncpa [#allocation11], 0
    %s22 = scalar_lea.sflag [#allocation11], 1
    %23 = vsyncpa %s22, 0
    %24 = vsyncpa [#allocation14], 0
    %s25 = scalar_lea.sflag [#allocation14], 1
    %26 = vsyncpa %s25, 0
    loop: start=0, step=1, limit=4
    $region2: #{tpu_custom_call.1} parent=1 // loop_pre_header
      _
    $region3: #{tpu_custom_call.1} parent=1 // loop_header
      %s28 = sphi 0, %s32
      %p29 = scmp.ge.s32.totalorder %s28, 4
      %s35 = sphi 0, %s47
      %s36 = sphi 0, %s43
      %s37 = sphi 0, %s35
      %s38 = sphi 0, %s36
      %s39 = sphi 0, %s37
      %s40 = sphi 0, %s38
      %s50 = sphi 0, %s52
      %s53 = sphi 0, %s50
      %s54 = sphi 0, %s53
      %s70 = sphi 0, %s54
      %s74 = sphi 0, %s74
      %s76 = sphi 0, %s74
      %s77 = sphi 0, %s76
      %s91 = sphi 0, %s77
      %s95 = sphi 0, %s95
      %s97 = sphi 0, %s95
      %s98 = sphi 0, %s97
      %s112 = sphi 0, %s98
      %s116 = sphi 0, %s116
      %s118 = sphi 0, %s116
      %s119 = sphi 0, %s118
      %s133 = sphi 0, %s119
      %s137 = sphi 0, %s137
      %s139 = sphi 0, %s137
      %s140 = sphi 0, %s139
      %s154 = sphi 0, %s140
      %s160 = sphi 0, %s162
      %s163 = sphi 0, %s160
      %s164 = sphi 0, %s163
      %s180 = sphi 0, %s164
      %s186 = sphi 0, %s188
      %s189 = sphi 0, %s186
      %s190 = sphi 0, %s189
      %s206 = sphi 0, %s190
      %s212 = sphi 0, %s214
      %s215 = sphi 0, %s212
      %s216 = sphi 0, %s215
      %s232 = sphi 0, %s216
      %s238 = sphi 0, %s240
      %s241 = sphi 0, %s238
      %s242 = sphi 0, %s241
      %s258 = sphi 0, %s242
      %s266 = sphi 0, %s268
      %s269 = sphi 0, %s266
      %s270 = sphi 0, %s269
      %s286 = sphi 0, %s270
      %s294 = sphi 0, %s296
      %s297 = sphi 0, %s294
      %s298 = sphi 0, %s297
      %s314 = sphi 0, %s298
    $region4: #{tpu_custom_call.1} parent=1 // loop_header_branch
      %31 = sbr.rel (%p29) target = $region8
    $region5: #{tpu_custom_call.1} parent=1 // loop_body
      %s33 = ssub.s32 %s28, 1
      %s34 = ssub.s32 %s28, 2
      %s41 = sadd.s32 1, %s36
      %p42 = scmp.ge.s32.totalorder %s41, 1
      %s43 = scalar_select %p42, 0, %s41
      %s44 = sadd.s32 1, %s35
      %s45 = scalar_select %p42, %s44, %s35
      %p46 = scmp.ge.s32.totalorder %s45, 2
      %s47 = scalar_select %p46, 0, %s45
      %s48 = ssub.s32 %s35, %s47
      %p49 = scmp.eq.s32.totalorder %s48, 0
      %s51 = sadd.s32 %s50, 1
      %s52 = scalar_select %p49, %s50, %s51
      %p55 = pneg %p49
      %p56 = scmp.eq.s32.totalorder %s28, 1
      %p57 = por %p55, %p56
      %p58 = scmp.ne.s32.totalorder %s50, %s53
      %p59 = scmp.eq.s32.totalorder %s28, 0
      %p60 = por %p58, %p59
      %p61 = scmp.ne.s32.totalorder %s50, %s53
      %p62 = scmp.eq.s32.totalorder %s33, 1
      %p63 = por %p61, %p62
      %p64 = scmp.ne.s32.totalorder %s53, %s54
      %p65 = scmp.eq.s32.totalorder %s33, 0
      %p66 = por %p64, %p65
      %p67 = scmp.ne.s32.totalorder %s53, %s54
      %p68 = scmp.eq.s32.totalorder %s34, 1
      %p69 = por %p67, %p68
      %p71 = scmp.ne.s32.totalorder %s54, %s70
      %p72 = scmp.eq.s32.totalorder %s34, 0
      %p73 = por %p71, %p72
      %s75 = sadd.s32 %s74, 1
      %p78 = scmp.eq.s32.totalorder %s28, 1
      %p79 = scmp.ne.s32.totalorder %s74, %s76
      %p80 = scmp.eq.s32.totalorder %s28, 0
      %p81 = por %p79, %p80
      %p82 = scmp.ne.s32.totalorder %s74, %s76
      %p83 = scmp.eq.s32.totalorder %s33, 1
      %p84 = por %p82, %p83
      %p85 = scmp.ne.s32.totalorder %s76, %s77
      %p86 = scmp.eq.s32.totalorder %s33, 0
      %p87 = por %p85, %p86
      %p88 = scmp.ne.s32.totalorder %s76, %s77
      %p89 = scmp.eq.s32.totalorder %s34, 1
      %p90 = por %p88, %p89
      %p92 = scmp.ne.s32.totalorder %s77, %s91
      %p93 = scmp.eq.s32.totalorder %s34, 0
      %p94 = por %p92, %p93
      %s96 = sadd.s32 %s95, 1
      %p99 = scmp.eq.s32.totalorder %s28, 1
      %p100 = scmp.ne.s32.totalorder %s95, %s97
      %p101 = scmp.eq.s32.totalorder %s28, 0
      %p102 = por %p100, %p101
      %p103 = scmp.ne.s32.totalorder %s95, %s97
      %p104 = scmp.eq.s32.totalorder %s33, 1
      %p105 = por %p103, %p104
      %p106 = scmp.ne.s32.totalorder %s97, %s98
      %p107 = scmp.eq.s32.totalorder %s33, 0
      %p108 = por %p106, %p107
      %p109 = scmp.ne.s32.totalorder %s97, %s98
      %p110 = scmp.eq.s32.totalorder %s34, 1
      %p111 = por %p109, %p110
      %p113 = scmp.ne.s32.totalorder %s98, %s112
      %p114 = scmp.eq.s32.totalorder %s34, 0
      %p115 = por %p113, %p114
      %s117 = sadd.s32 %s116, 1
      %p120 = scmp.eq.s32.totalorder %s28, 1
      %p121 = scmp.ne.s32.totalorder %s116, %s118
      %p122 = scmp.eq.s32.totalorder %s28, 0
      %p123 = por %p121, %p122
      %p124 = scmp.ne.s32.totalorder %s116, %s118
      %p125 = scmp.eq.s32.totalorder %s33, 1
      %p126 = por %p124, %p125
      %p127 = scmp.ne.s32.totalorder %s118, %s119
      %p128 = scmp.eq.s32.totalorder %s33, 0
      %p129 = por %p127, %p128
      %p130 = scmp.ne.s32.totalorder %s118, %s119
      %p131 = scmp.eq.s32.totalorder %s34, 1
      %p132 = por %p130, %p131
      %p134 = scmp.ne.s32.totalorder %s119, %s133
      %p135 = scmp.eq.s32.totalorder %s34, 0
      %p136 = por %p134, %p135
      %s138 = sadd.s32 %s137, 1
      %p141 = scmp.eq.s32.totalorder %s28, 1
      %p142 = scmp.ne.s32.totalorder %s137, %s139
      %p143 = scmp.eq.s32.totalorder %s28, 0
      %p144 = por %p142, %p143
      %p145 = scmp.ne.s32.totalorder %s137, %s139
      %p146 = scmp.eq.s32.totalorder %s33, 1
      %p147 = por %p145, %p146
      %p148 = scmp.ne.s32.totalorder %s139, %s140
      %p149 = scmp.eq.s32.totalorder %s33, 0
      %p150 = por %p148, %p149
      %p151 = scmp.ne.s32.totalorder %s139, %s140
      %p152 = scmp.eq.s32.totalorder %s34, 1
      %p153 = por %p151, %p152
      %p155 = scmp.ne.s32.totalorder %s140, %s154
      %p156 = scmp.eq.s32.totalorder %s34, 0
      %p157 = por %p155, %p156
      %s158 = ssub.s32 %s36, %s43
      %p159 = scmp.eq.s32.totalorder %s158, 0
      %s161 = sadd.s32 %s160, 1
      %s162 = scalar_select %p159, %s160, %s161
      %p165 = pneg %p159
      %p166 = scmp.eq.s32.totalorder %s28, 1
      %p167 = por %p165, %p166
      %p168 = scmp.ne.s32.totalorder %s160, %s163
      %p169 = scmp.eq.s32.totalorder %s28, 0
      %p170 = por %p168, %p169
      %p171 = scmp.ne.s32.totalorder %s160, %s163
      %p172 = scmp.eq.s32.totalorder %s33, 1
      %p173 = por %p171, %p172
      %p174 = scmp.ne.s32.totalorder %s163, %s164
      %p175 = scmp.eq.s32.totalorder %s33, 0
      %p176 = por %p174, %p175
      %p177 = scmp.ne.s32.totalorder %s163, %s164
      %p178 = scmp.eq.s32.totalorder %s34, 1
      %p179 = por %p177, %p178
      %p181 = scmp.ne.s32.totalorder %s164, %s180
      %p182 = scmp.eq.s32.totalorder %s34, 0
      %p183 = por %p181, %p182
      %s184 = ssub.s32 %s36, %s43
      %p185 = scmp.eq.s32.totalorder %s184, 0
      %s187 = sadd.s32 %s186, 1
      %s188 = scalar_select %p185, %s186, %s187
      %p191 = pneg %p185
      %p192 = scmp.eq.s32.totalorder %s28, 1
      %p193 = por %p191, %p192
      %p194 = scmp.ne.s32.totalorder %s186, %s189
      %p195 = scmp.eq.s32.totalorder %s28, 0
      %p196 = por %p194, %p195
      %p197 = scmp.ne.s32.totalorder %s186, %s189
      %p198 = scmp.eq.s32.totalorder %s33, 1
      %p199 = por %p197, %p198
      %p200 = scmp.ne.s32.totalorder %s189, %s190
      %p201 = scmp.eq.s32.totalorder %s33, 0
      %p202 = por %p200, %p201
      %p203 = scmp.ne.s32.totalorder %s189, %s190
      %p204 = scmp.eq.s32.totalorder %s34, 1
      %p205 = por %p203, %p204
      %p207 = scmp.ne.s32.totalorder %s190, %s206
      %p208 = scmp.eq.s32.totalorder %s34, 0
      %p209 = por %p207, %p208
      %s210 = ssub.s32 %s35, %s47
      %p211 = scmp.eq.s32.totalorder %s210, 0
      %s213 = sadd.s32 %s212, 1
      %s214 = scalar_select %p211, %s212, %s213
      %p217 = pneg %p211
      %p218 = scmp.eq.s32.totalorder %s28, 1
      %p219 = por %p217, %p218
      %p220 = scmp.ne.s32.totalorder %s212, %s215
      %p221 = scmp.eq.s32.totalorder %s28, 0
      %p222 = por %p220, %p221
      %p223 = scmp.ne.s32.totalorder %s212, %s215
      %p224 = scmp.eq.s32.totalorder %s33, 1
      %p225 = por %p223, %p224
      %p226 = scmp.ne.s32.totalorder %s215, %s216
      %p227 = scmp.eq.s32.totalorder %s33, 0
      %p228 = por %p226, %p227
      %p229 = scmp.ne.s32.totalorder %s215, %s216
      %p230 = scmp.eq.s32.totalorder %s34, 1
      %p231 = por %p229, %p230
      %p233 = scmp.ne.s32.totalorder %s216, %s232
      %p234 = scmp.eq.s32.totalorder %s34, 0
      %p235 = por %p233, %p234
      %s236 = ssub.s32 %s35, %s47
      %p237 = scmp.eq.s32.totalorder %s236, 0
      %s239 = sadd.s32 %s238, 1
      %s240 = scalar_select %p237, %s238, %s239
      %p243 = pneg %p237
      %p244 = scmp.eq.s32.totalorder %s28, 1
      %p245 = por %p243, %p244
      %p246 = scmp.ne.s32.totalorder %s238, %s241
      %p247 = scmp.eq.s32.totalorder %s28, 0
      %p248 = por %p246, %p247
      %p249 = scmp.ne.s32.totalorder %s238, %s241
      %p250 = scmp.eq.s32.totalorder %s33, 1
      %p251 = por %p249, %p250
      %p252 = scmp.ne.s32.totalorder %s241, %s242
      %p253 = scmp.eq.s32.totalorder %s33, 0
      %p254 = por %p252, %p253
      %p255 = scmp.ne.s32.totalorder %s241, %s242
      %p256 = scmp.eq.s32.totalorder %s34, 1
      %p257 = por %p255, %p256
      %p259 = scmp.ne.s32.totalorder %s242, %s258
      %p260 = scmp.eq.s32.totalorder %s34, 0
      %p261 = por %p259, %p260
      %s262 = ssub.s32 %s35, %s47
      %s263 = ssub.s32 %s36, %s43
      %s264 = sor.u32 %s262, %s263
      %p265 = scmp.eq.s32.totalorder %s264, 0
      %s267 = sadd.s32 %s266, 1
      %s268 = scalar_select %p265, %s266, %s267
      %p271 = pneg %p265
      %p272 = scmp.eq.s32.totalorder %s28, 1
      %p273 = por %p271, %p272
      %p274 = scmp.ne.s32.totalorder %s266, %s269
      %p275 = scmp.eq.s32.totalorder %s28, 0
      %p276 = por %p274, %p275
      %p277 = scmp.ne.s32.totalorder %s266, %s269
      %p278 = scmp.eq.s32.totalorder %s33, 1
      %p279 = por %p277, %p278
      %p280 = scmp.ne.s32.totalorder %s269, %s270
      %p281 = scmp.eq.s32.totalorder %s33, 0
      %p282 = por %p280, %p281
      %p283 = scmp.ne.s32.totalorder %s269, %s270
      %p284 = scmp.eq.s32.totalorder %s34, 1
      %p285 = por %p283, %p284
      %p287 = scmp.ne.s32.totalorder %s270, %s286
      %p288 = scmp.eq.s32.totalorder %s34, 0
      %p289 = por %p287, %p288
      %s290 = ssub.s32 %s35, %s47
      %s291 = ssub.s32 %s36, %s43
      %s292 = sor.u32 %s290, %s291
      %p293 = scmp.eq.s32.totalorder %s292, 0
      %s295 = sadd.s32 %s294, 1
      %s296 = scalar_select %p293, %s294, %s295
      %p299 = pneg %p293
      %p300 = scmp.eq.s32.totalorder %s28, 1
      %p301 = por %p299, %p300
      %p302 = scmp.ne.s32.totalorder %s294, %s297
      %p303 = scmp.eq.s32.totalorder %s28, 0
      %p304 = por %p302, %p303
      %p305 = scmp.ne.s32.totalorder %s294, %s297
      %p306 = scmp.eq.s32.totalorder %s33, 1
      %p307 = por %p305, %p306
      %p308 = scmp.ne.s32.totalorder %s297, %s298
      %p309 = scmp.eq.s32.totalorder %s33, 0
      %p310 = por %p308, %p309
      %p311 = scmp.ne.s32.totalorder %s297, %s298
      %p312 = scmp.eq.s32.totalorder %s34, 1
      %p313 = por %p311, %p312
      %p315 = scmp.ne.s32.totalorder %s298, %s314
      %p316 = scmp.eq.s32.totalorder %s34, 0
      %p317 = por %p315, %p316
      %p318 = scmp.le.s32.totalorder 1, %s28
      %p319 = scmp.lt.s32.totalorder %s28, 3
      %p320 = pnand %p318, %p319
      %p321 = pneg %p320
      // Predicated region
      $region9: #{tpu_custom_call.1} parent=5 // pred_check
        _
      $region10: #{tpu_custom_call.1} parent=5 // pred_check_branch
        %323 = sbr.rel (%p320) target = $region12
      $region11: #{tpu_custom_call.1} parent=5 // pred_region
        %s324 = ssub.s32 %s28, 1
        // Predicated region
        $region13: #{tpu_custom_call.1} parent=11 // pred_check
          %p325 = pneg %p87
        $region14: #{tpu_custom_call.1} parent=11 // pred_check_branch
          %327 = sbr.rel (%p325) target = $region16
        $region15: #{tpu_custom_call.1} parent=11 // pred_region
          _
        $region16: #{tpu_custom_call.1} parent=11 // pred_fallthru
          _
        // Predicated region
        $region17: #{tpu_custom_call.1} parent=11 // pred_check
          %p328 = pneg %p108
        $region18: #{tpu_custom_call.1} parent=11 // pred_check_branch
          %330 = sbr.rel (%p328) target = $region20
        $region19: #{tpu_custom_call.1} parent=11 // pred_region
          %332 = vsyncadd [#allocation5], 0
          %s334 = sshll.u32 %s2, 4
          %s335 = int_to_ptr.hbm [resolvable:$true] %s334
          %s336 = sshll.u32 [#allocation4], 4
          %s337 = int_to_ptr.vmem [resolvable:$true] %s336
          %339 = dma.hbm_to_vmem [thread:$0]  %s335, 16, %s337, [#allocation5]
        $region20: #{tpu_custom_call.1} parent=11 // pred_fallthru
          _
        // Predicated region
        $region21: #{tpu_custom_call.1} parent=11 // pred_check
          %p340 = pneg %p129
        $region22: #{tpu_custom_call.1} parent=11 // pred_check_branch
          %342 = sbr.rel (%p340) target = $region24
        $region23: #{tpu_custom_call.1} parent=11 // pred_region
          _
        $region24: #{tpu_custom_call.1} parent=11 // pred_fallthru
          _
        // Predicated region
        $region25: #{tpu_custom_call.1} parent=11 // pred_check
          %p343 = pneg %p150
        $region26: #{tpu_custom_call.1} parent=11 // pred_check_branch
          %345 = sbr.rel (%p343) target = $region28
        $region27: #{tpu_custom_call.1} parent=11 // pred_region
          _
        $region28: #{tpu_custom_call.1} parent=11 // pred_fallthru
          _
        // Predicated region
        $region29: #{tpu_custom_call.1} parent=11 // pred_check
          %p346 = pneg %p176
        $region30: #{tpu_custom_call.1} parent=11 // pred_check_branch
          %348 = sbr.rel (%p346) target = $region32
        $region31: #{tpu_custom_call.1} parent=11 // pred_region
          %s349 = smul.u32 2, %s38
          %351 = vsyncadd [#allocation8], 0
          %s352 = smul.addr %s349, 4
          %s353 = scalar_lea.hbm %s5, %s352
          %s354 = sshll.u32 %s353, 4
          %s355 = int_to_ptr.hbm [resolvable:$true] %s354
          %s356 = sshll.u32 [#allocation7], 4
          %s357 = int_to_ptr.vmem [resolvable:$true] %s356
          %362 = dma.hbm_to_vmem [thread:$0]  %s355, 1024, %s357, [#allocation8], 128, 128, 8
        $region32: #{tpu_custom_call.1} parent=11 // pred_fallthru
          _
        // Predicated region
        $region33: #{tpu_custom_call.1} parent=11 // pred_check
          %p363 = pneg %p202
        $region34: #{tpu_custom_call.1} parent=11 // pred_check_branch
          %365 = sbr.rel (%p363) target = $region36
        $region35: #{tpu_custom_call.1} parent=11 // pred_region
          %s366 = smul.u32 2, %s38
          %p367 = scmp.lt.s32.totalorder %s366, 1
          %s368 = scalar_select %p367, %s366, 1
          %s369 = smul.addr %s368, 2
          %s370 = scalar_lea.vmem %s6, %s369
          %s371 = smul.u32 2, %s38
        $region36: #{tpu_custom_call.1} parent=11 // pred_fallthru
          _
      $region12: #{tpu_custom_call.1} parent=5 // pred_fallthru
        _
      %p372 = scmp.lt.s32.totalorder %s28, 2
      // Predicated region
      $region37: #{tpu_custom_call.1} parent=5 // pred_check
        %p373 = pneg %p372
      $region38: #{tpu_custom_call.1} parent=5 // pred_check_branch
        %375 = sbr.rel (%p373) target = $region40
      $region39: #{tpu_custom_call.1} parent=5 // pred_region
        // Predicated region
        $region41: #{tpu_custom_call.1} parent=39 // pred_check
          %p376 = pneg %p60
        $region42: #{tpu_custom_call.1} parent=39 // pred_check_branch
          %378 = sbr.rel (%p376) target = $region44
        $region43: #{tpu_custom_call.1} parent=39 // pred_region
          %p379 = scmp.lt.s32.totalorder %s35, 1
          %s380 = scalar_select %p379, %s35, 1
          %s381 = smul.addr %s380, 8
          %s382 = scalar_lea.vmem %s0, %s381
        $region44: #{tpu_custom_call.1} parent=39 // pred_fallthru
          _
      $region40: #{tpu_custom_call.1} parent=5 // pred_fallthru
        _
      %p383 = scmp.le.s32.totalorder 1, %s28
      %p384 = scmp.lt.s32.totalorder %s28, 3
      %p385 = pnand %p383, %p384
      %p386 = pneg %p385
      // Predicated region
      $region45: #{tpu_custom_call.1} parent=5 // pred_check
        _
      $region46: #{tpu_custom_call.1} parent=5 // pred_check_branch
        %388 = sbr.rel (%p385) target = $region48
      $region47: #{tpu_custom_call.1} parent=5 // pred_region
        %s389 = ssub.s32 %s28, 1
        // Predicated region
        $region49: #{tpu_custom_call.1} parent=47 // pred_check
          %p390 = pneg %p108
        $region50: #{tpu_custom_call.1} parent=47 // pred_check_branch
          %392 = sbr.rel (%p390) target = $region52
        $region51: #{tpu_custom_call.1} parent=47 // pred_region
          %394 = dma.done [#allocation5], 16
        $region52: #{tpu_custom_call.1} parent=47 // pred_fallthru
          _
        // Predicated region
        $region53: #{tpu_custom_call.1} parent=47 // pred_check
          %p395 = pneg %p176
        $region54: #{tpu_custom_call.1} parent=47 // pred_check_branch
          %397 = sbr.rel (%p395) target = $region56
        $region55: #{tpu_custom_call.1} parent=47 // pred_region
          %399 = dma.done [#allocation8], 1024
        $region56: #{tpu_custom_call.1} parent=47 // pred_fallthru
          _
        %p400 = scmp.lt.s32.totalorder %s37, 1
        %s401 = scalar_select %p400, %s37, 1
        %s402 = smul.addr %s401, 8
        %s403 = scalar_lea.vmem %s0, %s402
        %p404 = pneg %p66
        %p405 = pneg %p63
        %p406 = pneg %p87
        %p407 = pneg %p84
        %p408 = pneg %p108
        %p409 = pneg %p105
        %p410 = pneg %p129
        %p411 = pneg %p126
        %p412 = pneg %p150
        %p413 = pneg %p147
        %p414 = pneg %p176
        %p415 = pneg %p173
        %s416 = smul.u32 2, %s38
        %p417 = scmp.lt.s32.totalorder %s416, 1
        %s418 = scalar_select %p417, %s416, 1
        %s419 = smul.addr %s418, 2
        %s420 = scalar_lea.vmem %s6, %s419
        %p421 = pneg %p202
        %p422 = pneg %p199
        %p423 = pneg %p228
        %p424 = pneg %p225
        %s425 = sand.u32 %s215, 1
        %s426 = scalar_lea.sflag [#allocation6], %s425
        %s427 = sand.u32 %s215, 1
        %s428 = smul.addr %s427, 8
        %s429 = scalar_lea.vmem [#allocation9], %s428
        %p430 = pneg %p254
        %p431 = pneg %p251
        %s432 = sand.u32 %s33, 1
        %s433 = scalar_lea.sflag [#allocation11], %s432
        %s434 = sand.u32 %s241, 1
        %s435 = smul.addr %s434, 8
        %s436 = scalar_lea.vmem [#allocation10], %s435
        %p437 = pneg %p282
        %p438 = pneg %p279
        %s439 = sand.u32 %s33, 1
        %s440 = scalar_lea.sflag [#allocation11], %s439
        %s441 = sand.u32 %s269, 1
        %s442 = smul.addr %s441, 32
        %s443 = scalar_lea.vmem [#allocation12], %s442
        %p444 = pneg %p310
        %p445 = pneg %p307
        %s446 = sand.u32 %s297, 1
        %s447 = scalar_lea.sflag [#allocation14], %s446
        %s448 = sand.u32 %s297, 1
        %s449 = smul.addr %s448, 128
        %s450 = scalar_lea.vmem [#allocation13], %s449
        %p451 = scmp.lt.s32.totalorder %s37, 1
        %s452 = scalar_select %p451, %s37, 1
        %s453 = smul.addr %s452, 8
        %s454 = scalar_lea.vmem %s0, %s453
        %s455 = smul.u32 2, %s38
        %s456 = smul.u32 2, %s38
        %p457 = scmp.lt.s32.totalorder %s456, 1
        %s458 = scalar_select %p457, %s456, 1
        %s459 = smul.addr %s458, 2
        %s460 = scalar_lea.vmem %s6, %s459
        %s461 = smul.u32 2, %s38
        %s462 = smul.u32 8, %s37
        %s463 = smul.u32 2, %s38
        %s464 = smul.u32 8, %s37
        %s465 = smul.u32 2, %s38
        %p467 = scmp.eq.s32.totalorder %s38, 0
        // Predicated region
        $region57: #{tpu_custom_call.1} parent=47 // pred_check
          %p468 = pneg %p467
        $region58: #{tpu_custom_call.1} parent=47 // pred_check_branch
          %470 = sbr.rel (%p468) target = $region60
        $region59: #{tpu_custom_call.1} parent=47 // pred_region
          %v471 = vld [vmem:[%s454] sm:$0xff]
          %v472 = vpack.c.bf16 %v471, %v471
          %v473 = vld [vmem:[%s1] sm:$0x3]
          %v474 = vld [vmem:[#allocation4] sm:$0x1]
          %v476 = vperm.slane %v474, 0
          %vm478 = vcmask 23552
          %v480 = vsel %vm478, %v472, 0
          %vm482 = vcmask 1040384
          %vm483 = vcmask 1041408
          %v484 = vsel %vm482, 4294967295, 65535
          %v485 = vsel %vm483, %v484, 0
          %v487 = vand.u32 %v473, %v485
          %489 = vmatpush.bf16.msra.mxu0 0
          %490 = vmatpush.bf16.msra.mxu0 0
          %491 = vmatpush.bf16.msra.mxu0 0
          %492 = vmatpush.bf16.msra.mxu0 0
          %493 = vmatpush.bf16.msra.mxu0 0
          %494 = vmatpush.bf16.msra.mxu0 0
          %495 = vmatpush.bf16.msra.mxu0 0
          %496 = vmatpush.bf16.msra.mxu0 %v487
          %497 = vmatmul.bf16.gmra.mxu0 %v480
          %v498 = vpop.f32.mrf.mxu0
          %v499 = vadd.f32 %v476, %v498
          %v500 = vpop.f32.mrf.mxu0
          %501 = vdwg.mxu0
          %vm502 = vcmask 261120
          %503 = vst.msk [vmem:[%s429] sm:$0xff] %vm502, %v499
          %v504 = vpack.c.bf16 %v499, %v499
          %vm505 = vcmask 257024
          %506 = vst.msk [vmem:[#allocation2] sm:$0xf] %vm505, %v504
          %v507 = vld [vmem:[%s3] sm:$0xf]
          %v508 = vld [vmem:[%s3 + $0x4] sm:$0xf]
          %v509 = vld [vmem:[%s3 + $0x8] sm:$0xf]
          %v510 = vld [vmem:[%s3 + $0xc] sm:$0xf]
          %v511 = vld [vmem:[%s4] sm:$0x1]
          %v513 = vperm.slane %v511, 0
          %v519 = vunpack.c.l.b16 %v507
          %v520 = vunpack.c.l.b16 %v508
          %v521 = vunpack.c.l.b16 %v509
          %v522 = vunpack.c.l.b16 %v510
          %v523 = vpack.c.b16 %v520, %v519
          %v524 = vpack.c.b16 %v522, %v521
          %v528 = vsel %vm502, %v504, 0
          %530 = vmatpush.bf16.msra.mxu0 0
          %531 = vmatpush.bf16.msra.mxu0 0
          %532 = vmatpush.bf16.msra.mxu0 0
          %533 = vmatpush.bf16.msra.mxu0 0
          %534 = vmatpush.bf16.msra.mxu0 0
          %535 = vmatpush.bf16.msra.mxu0 0
          %536 = vmatpush.bf16.msra.mxu0 %v524
          %537 = vmatpush.bf16.msra.mxu0 %v523
          %538 = vmatmul.bf16.gmra.mxu0 %v528
          %v539 = vpop.f32.mrf.mxu0
          %v540 = vadd.f32 %v513, %v539
          %v541 = vpop.f32.mrf.mxu0
          %542 = vdwg.mxu0
          %543 = vst.msk [vmem:[%s436] sm:$0xff] %vm502, %v540
          %545 = vrot.lane.b32.xlu0 %v540, 96
          %v546 = vpop.permute.xlu0 %545
          %vm548 = vcmask 130048
          %549 = vst.msk [vmem:[#allocation3] sm:$0xff] %vm548, %v546
        $region60: #{tpu_custom_call.1} parent=47 // pred_fallthru
          _
        %v550 = vld [vmem:[#allocation2] sm:$0xf]
        %v551 = vld [vmem:[#allocation7] sm:$0xff]
        %v552 = vld [vmem:[#allocation7 + $0x8] sm:$0xff]
        %v553 = vld [vmem:[#allocation7 + $0x10] sm:$0xff]
        %v554 = vld [vmem:[#allocation7 + $0x18] sm:$0xff]
        %v555 = vld [vmem:[%s460] ss:$2 sm:$0x3]
        %v557 = vperm.slane %v555, 0
        %v558 = vperm.slane %v555, 1
        %v565 = vunpack.c.l.b16 %v551
        %v566 = vunpack.c.h.b16 %v551
        %v567 = vunpack.c.l.b16 %v552
        %v568 = vunpack.c.h.b16 %v552
        %v569 = vunpack.c.l.b16 %v553
        %v570 = vunpack.c.h.b16 %v553
        %v571 = vunpack.c.l.b16 %v554
        %v572 = vunpack.c.h.b16 %v554
        %v573 = vpack.c.b16 %v567, %v565
        %v574 = vpack.c.b16 %v568, %v566
        %v575 = vpack.c.b16 %v571, %v569
        %v576 = vpack.c.b16 %v572, %v570
        %vm581 = vcmask 261120
        %v583 = vsel %vm581, %v550, 0
        %585 = vmatpush.bf16.msra.mxu0 0
        %586 = vmatpush.bf16.msra.mxu0 0
        %587 = vmatpush.bf16.msra.mxu0 0
        %588 = vmatpush.bf16.msra.mxu0 0
        %589 = vmatpush.bf16.msra.mxu0 0
        %590 = vmatpush.bf16.msra.mxu0 0
        %591 = vmatpush.bf16.msra.mxu0 %v575
        %592 = vmatpush.bf16.msra.mxu0 %v573
        %593 = vmatmul.bf16.gmra.mxu0 %v583
        %v594 = vpop.f32.mrf.mxu0
        %v595 = vadd.f32 %v557, %v594
        %v596 = vpop.f32.mrf.mxu0
        %597 = vdwg.mxu0
        %598 = vmatpush.bf16.msra.mxu0 0
        %599 = vmatpush.bf16.msra.mxu0 0
        %600 = vmatpush.bf16.msra.mxu0 0
        %601 = vmatpush.bf16.msra.mxu0 0
        %602 = vmatpush.bf16.msra.mxu0 0
        %603 = vmatpush.bf16.msra.mxu0 0
        %604 = vmatpush.bf16.msra.mxu0 %v576
        %605 = vmatpush.bf16.msra.mxu0 %v574
        %606 = vmatmul.bf16.gmra.mxu0 %v583
        %v607 = vpop.f32.mrf.mxu0
        %v608 = vadd.f32 %v558, %v607
        %v609 = vpop.f32.mrf.mxu0
        %610 = vdwg.mxu0
        %s611 = scalar_lea.vmem [#allocation7], 32
        %v612 = vld [vmem:[%s611] sm:$0xff]
        %v613 = vld [vmem:[%s611 + $0x8] sm:$0xff]
        %v614 = vld [vmem:[%s611 + $0x10] sm:$0xff]
        %v615 = vld [vmem:[%s611 + $0x18] sm:$0xff]
        %s616 = scalar_lea.vmem %s460, 1
        %v617 = vld [vmem:[%s616] ss:$2 sm:$0x3]
        %v619 = vperm.slane %v617, 0
        %v620 = vperm.slane %v617, 1
        %v627 = vunpack.c.l.b16 %v612
        %v628 = vunpack.c.h.b16 %v612
        %v629 = vunpack.c.l.b16 %v613
        %v630 = vunpack.c.h.b16 %v613
        %v631 = vunpack.c.l.b16 %v614
        %v632 = vunpack.c.h.b16 %v614
        %v633 = vunpack.c.l.b16 %v615
        %v634 = vunpack.c.h.b16 %v615
        %v635 = vpack.c.b16 %v629, %v627
        %v636 = vpack.c.b16 %v630, %v628
        %v637 = vpack.c.b16 %v633, %v631
        %v638 = vpack.c.b16 %v634, %v632
        %643 = vmatpush.bf16.msra.mxu0 0
        %644 = vmatpush.bf16.msra.mxu0 0
        %645 = vmatpush.bf16.msra.mxu0 0
        %646 = vmatpush.bf16.msra.mxu0 0
        %647 = vmatpush.bf16.msra.mxu0 0
        %648 = vmatpush.bf16.msra.mxu0 0
        %649 = vmatpush.bf16.msra.mxu0 %v637
        %650 = vmatpush.bf16.msra.mxu0 %v635
        %651 = vmatmul.bf16.gmra.mxu0 %v583
        %v652 = vpop.f32.mrf.mxu0
        %v653 = vadd.f32 %v619, %v652
        %v654 = vpop.f32.mrf.mxu0
        %655 = vdwg.mxu0
        %656 = vmatpush.bf16.msra.mxu0 0
        %657 = vmatpush.bf16.msra.mxu0 0
        %658 = vmatpush.bf16.msra.mxu0 0
        %659 = vmatpush.bf16.msra.mxu0 0
        %660 = vmatpush.bf16.msra.mxu0 0
        %661 = vmatpush.bf16.msra.mxu0 0
        %662 = vmatpush.bf16.msra.mxu0 %v638
        %663 = vmatpush.bf16.msra.mxu0 %v636
        %664 = vmatmul.bf16.gmra.mxu0 %v583
        %v665 = vpop.f32.mrf.mxu0
        %v666 = vadd.f32 %v620, %v665
        %v667 = vpop.f32.mrf.mxu0
        %668 = vdwg.mxu0
        %v669 = vmax.f32 %v595, %v653
        %v670 = vmax.f32 %v608, %v666
        %v671 = vsub.f32 %v595, %v669
        %v672 = vsub.f32 %v608, %v670
        %v673 = vmul.f32 %v671, 1.442695
        %v674 = vpow.pop %v673
        %v675 = vmul.f32 %v672, 1.442695
        %v676 = vpow.pop %v675
        %v677 = vsub.f32 %v653, %v669
        %v678 = vsub.f32 %v666, %v670
        %v679 = vmul.f32 %v677, 1.442695
        %v680 = vpow.pop %v679
        %v681 = vmul.f32 %v678, 1.442695
        %v682 = vpow.pop %v681
        %v683 = vadd.f32 %v674, %v680
        %v684 = vadd.f32 %v676, %v682
        %v685 = vrcp.pop %v683
        %v686 = vmul.f32 %v683, %v685
        %v687 = vsub.f32 1.0, %v686
        %v688 = vmul.f32 %v685, %v687
        %v689 = vadd.f32 %v685, %v688
        %vm690 = vweird.f32 %v683
        %vm691 = vweird.f32 %v685
        %vm692 = vmor %vm690, %vm691
        %v693 = vsel %vm692, %v685, %v689
        %v694 = vand.u32 2147483647, %v683
        %vm695 = vcmp.eq.f32.partialorder %v694, 8.507059e+37
        %v696 = vand.u32 %v683, 2147483648
        %v697 = vor.u32 1.1754944e-38, %v696
        %v698 = vsel %vm695, %v697, %v693
        %v699 = vrcp.pop %v684
        %v700 = vmul.f32 %v684, %v699
        %v701 = vsub.f32 1.0, %v700
        %v702 = vmul.f32 %v699, %v701
        %v703 = vadd.f32 %v699, %v702
        %vm704 = vweird.f32 %v684
        %vm705 = vweird.f32 %v699
        %vm706 = vmor %vm704, %vm705
        %v707 = vsel %vm706, %v699, %v703
        %v708 = vand.u32 2147483647, %v684
        %vm709 = vcmp.eq.f32.partialorder %v708, 8.507059e+37
        %v710 = vand.u32 %v684, 2147483648
        %v711 = vor.u32 1.1754944e-38, %v710
        %v712 = vsel %vm709, %v711, %v707
        %v713 = vmul.f32 %v674, %v698
        %v714 = vmul.f32 %v676, %v712
        %v715 = vmul.f32 %v680, %v698
        %v716 = vmul.f32 %v682, %v712
        %v719 = vrot.slane %v714, 7
        %vm720 = vcmask 1040384
        %v721 = vsel %vm720, %v713, %v719
        %vm722 = vcmask 1041409
        %v723 = vsel %vm722, %v713, %v719
        %v724 = vrot.slane %v723, 1
        %vm725 = vcmask 1042434
        %v726 = vsel %vm725, %v713, %v719
        %v727 = vrot.slane %v726, 2
        %vm728 = vcmask 1043459
        %v729 = vsel %vm728, %v713, %v719
        %v730 = vrot.slane %v729, 3
        %vm731 = vcmask 1044484
        %v732 = vsel %vm731, %v713, %v719
        %v733 = vrot.slane %v732, 4
        %vm734 = vcmask 1045509
        %v735 = vsel %vm734, %v713, %v719
        %v736 = vrot.slane %v735, 5
        %vm737 = vcmask 1046534
        %v738 = vsel %vm737, %v713, %v719
        %v739 = vrot.slane %v738, 6
        %vm740 = vcmask 1046528
        %v741 = vsel %vm740, %v719, %v713
        %v742 = vrot.slane %v741, 7
        %v751 = vlaneseq
        %vm752 = vcmp.ge.s32.totalorder %v751, 0
        %vm753 = vcmp.lt.s32.totalorder %v751, 256
        %vm754 = vmand %vm752, %vm753
        %755 = vst.msk [vmem:[%s443] ss:$2 sm:$0x3] %vm754, %v721
        %s756 = scalar_lea.vmem %s443, 4 [#allocation12]
        %757 = vst.msk [vmem:[%s756] ss:$2 sm:$0x3] %vm754, %v724
        %s758 = scalar_lea.vmem %s443, 8 [#allocation12]
        %759 = vst.msk [vmem:[%s758] ss:$2 sm:$0x3] %vm754, %v727
        %s760 = scalar_lea.vmem %s443, 12 [#allocation12]
        %761 = vst.msk [vmem:[%s760] ss:$2 sm:$0x3] %vm754, %v730
        %s762 = scalar_lea.vmem %s443, 16 [#allocation12]
        %763 = vst.msk [vmem:[%s762] ss:$2 sm:$0x3] %vm754, %v733
        %s764 = scalar_lea.vmem %s443, 20 [#allocation12]
        %765 = vst.msk [vmem:[%s764] ss:$2 sm:$0x3] %vm754, %v736
        %s766 = scalar_lea.vmem %s443, 24 [#allocation12]
        %767 = vst.msk [vmem:[%s766] ss:$2 sm:$0x3] %vm754, %v739
        %s768 = scalar_lea.vmem %s443, 28 [#allocation12]
        %769 = vst.msk [vmem:[%s768] ss:$2 sm:$0x3] %vm754, %v742
        %v772 = vrot.slane %v716, 7
        %v773 = vsel %vm720, %v715, %v772
        %v774 = vsel %vm722, %v715, %v772
        %v775 = vrot.slane %v774, 1
        %v776 = vsel %vm725, %v715, %v772
        %v777 = vrot.slane %v776, 2
        %v778 = vsel %vm728, %v715, %v772
        %v779 = vrot.slane %v778, 3
        %v780 = vsel %vm731, %v715, %v772
        %v781 = vrot.slane %v780, 4
        %v782 = vsel %vm734, %v715, %v772
        %v783 = vrot.slane %v782, 5
        %v784 = vsel %vm737, %v715, %v772
        %v785 = vrot.slane %v784, 6
        %v786 = vsel %vm740, %v772, %v715
        %v787 = vrot.slane %v786, 7
        %s796 = scalar_lea.vmem %s443, 1 [#allocation12]
        %797 = vst.msk [vmem:[%s796] ss:$2 sm:$0x3] %vm754, %v773
        %s798 = scalar_lea.vmem %s443, 5 [#allocation12]
        %799 = vst.msk [vmem:[%s798] ss:$2 sm:$0x3] %vm754, %v775
        %s800 = scalar_lea.vmem %s443, 9 [#allocation12]
        %801 = vst.msk [vmem:[%s800] ss:$2 sm:$0x3] %vm754, %v777
        %s802 = scalar_lea.vmem %s443, 13 [#allocation12]
        %803 = vst.msk [vmem:[%s802] ss:$2 sm:$0x3] %vm754, %v779
        %s804 = scalar_lea.vmem %s443, 17 [#allocation12]
        %805 = vst.msk [vmem:[%s804] ss:$2 sm:$0x3] %vm754, %v781
        %s806 = scalar_lea.vmem %s443, 21 [#allocation12]
        %807 = vst.msk [vmem:[%s806] ss:$2 sm:$0x3] %vm754, %v783
        %s808 = scalar_lea.vmem %s443, 25 [#allocation12]
        %809 = vst.msk [vmem:[%s808] ss:$2 sm:$0x3] %vm754, %v785
        %s810 = scalar_lea.vmem %s443, 29 [#allocation12]
        %811 = vst.msk [vmem:[%s810] ss:$2 sm:$0x3] %vm754, %v787
        %v812 = vld [vmem:[#allocation3] sm:$0xff]
        %814 = vset.pattern.permute.xlu0 0
        %815 = vperm.xlu0 %814, %v812
        %v816 = vpop.permute.xlu0 %815
        %v818 = vmul.f32 %v816, %v713
        %v819 = vmul.f32 %v816, %v714
        %820 = vset.pattern.permute.xlu0 8
        %821 = vperm.xlu0 %820, %v812
        %v822 = vpop.permute.xlu0 %821
        %v824 = vmul.f32 %v822, %v715
        %v825 = vmul.f32 %v822, %v716
        %v826 = vadd.f32 %v818, %v824
        %v827 = vadd.f32 %v819, %v825
        %v830 = vrot.slane %v827, 7
        %v831 = vsel %vm720, %v826, %v830
        %v832 = vsel %vm722, %v826, %v830
        %v833 = vrot.slane %v832, 1
        %v834 = vsel %vm725, %v826, %v830
        %v835 = vrot.slane %v834, 2
        %v836 = vsel %vm728, %v826, %v830
        %v837 = vrot.slane %v836, 3
        %v838 = vsel %vm731, %v826, %v830
        %v839 = vrot.slane %v838, 4
        %v840 = vsel %vm734, %v826, %v830
        %v841 = vrot.slane %v840, 5
        %v842 = vsel %vm737, %v826, %v830
        %v843 = vrot.slane %v842, 6
        %v844 = vsel %vm740, %v830, %v826
        %v845 = vrot.slane %v844, 7
        %854 = vst.msk [vmem:[%s450] ss:$8 sm:$0x3] %vm754, %v831
        %855 = vst.msk [vmem:[%s450] ss:$8 sm:$0x0] %vm754, %v831
        %s856 = scalar_lea.vmem %s450, 16 [#allocation13]
        %857 = vst.msk [vmem:[%s856] ss:$8 sm:$0x3] %vm754, %v833
        %858 = vst.msk [vmem:[%s856] ss:$8 sm:$0x0] %vm754, %v833
        %s859 = scalar_lea.vmem %s450, 32 [#allocation13]
        %860 = vst.msk [vmem:[%s859] ss:$8 sm:$0x3] %vm754, %v835
        %861 = vst.msk [vmem:[%s859] ss:$8 sm:$0x0] %vm754, %v835
        %s862 = scalar_lea.vmem %s450, 48 [#allocation13]
        %863 = vst.msk [vmem:[%s862] ss:$8 sm:$0x3] %vm754, %v837
        %864 = vst.msk [vmem:[%s862] ss:$8 sm:$0x0] %vm754, %v837
        %s865 = scalar_lea.vmem %s450, 64 [#allocation13]
        %866 = vst.msk [vmem:[%s865] ss:$8 sm:$0x3] %vm754, %v839
        %867 = vst.msk [vmem:[%s865] ss:$8 sm:$0x0] %vm754, %v839
        %s868 = scalar_lea.vmem %s450, 80 [#allocation13]
        %869 = vst.msk [vmem:[%s868] ss:$8 sm:$0x3] %vm754, %v841
        %870 = vst.msk [vmem:[%s868] ss:$8 sm:$0x0] %vm754, %v841
        %s871 = scalar_lea.vmem %s450, 96 [#allocation13]
        %872 = vst.msk [vmem:[%s871] ss:$8 sm:$0x3] %vm754, %v843
        %873 = vst.msk [vmem:[%s871] ss:$8 sm:$0x0] %vm754, %v843
        %s874 = scalar_lea.vmem %s450, 112 [#allocation13]
        %875 = vst.msk [vmem:[%s874] ss:$8 sm:$0x3] %vm754, %v845
        %876 = vst.msk [vmem:[%s874] ss:$8 sm:$0x0] %vm754, %v845
        %877 = vset.pattern.permute.xlu0 1
        %878 = vperm.xlu0 %877, %v812
        %v879 = vpop.permute.xlu0 %878
        %v881 = vmul.f32 %v879, %v713
        %v882 = vmul.f32 %v879, %v714
        %883 = vset.pattern.permute.xlu0 9
        %884 = vperm.xlu0 %883, %v812
        %v885 = vpop.permute.xlu0 %884
        %v887 = vmul.f32 %v885, %v715
        %v888 = vmul.f32 %v885, %v716
        %v889 = vadd.f32 %v881, %v887
        %v890 = vadd.f32 %v882, %v888
        %v893 = vrot.slane %v890, 7
        %v894 = vsel %vm720, %v889, %v893
        %v895 = vsel %vm722, %v889, %v893
        %v896 = vrot.slane %v895, 1
        %v897 = vsel %vm725, %v889, %v893
        %v898 = vrot.slane %v897, 2
        %v899 = vsel %vm728, %v889, %v893
        %v900 = vrot.slane %v899, 3
        %v901 = vsel %vm731, %v889, %v893
        %v902 = vrot.slane %v901, 4
        %v903 = vsel %vm734, %v889, %v893
        %v904 = vrot.slane %v903, 5
        %v905 = vsel %vm737, %v889, %v893
        %v906 = vrot.slane %v905, 6
        %v907 = vsel %vm740, %v893, %v889
        %v908 = vrot.slane %v907, 7
        %s917 = scalar_lea.vmem %s450, 1 [#allocation13]
        %918 = vst.msk [vmem:[%s917] ss:$8 sm:$0x3] %vm754, %v894
        %919 = vst.msk [vmem:[%s917] ss:$8 sm:$0x0] %vm754, %v894
        %s920 = scalar_lea.vmem %s450, 17 [#allocation13]
        %921 = vst.msk [vmem:[%s920] ss:$8 sm:$0x3] %vm754, %v896
        %922 = vst.msk [vmem:[%s920] ss:$8 sm:$0x0] %vm754, %v896
        %s923 = scalar_lea.vmem %s450, 33 [#allocation13]
        %924 = vst.msk [vmem:[%s923] ss:$8 sm:$0x3] %vm754, %v898
        %925 = vst.msk [vmem:[%s923] ss:$8 sm:$0x0] %vm754, %v898
        %s926 = scalar_lea.vmem %s450, 49 [#allocation13]
        %927 = vst.msk [vmem:[%s926] ss:$8 sm:$0x3] %vm754, %v900
        %928 = vst.msk [vmem:[%s926] ss:$8 sm:$0x0] %vm754, %v900
        %s929 = scalar_lea.vmem %s450, 65 [#allocation13]
        %930 = vst.msk [vmem:[%s929] ss:$8 sm:$0x3] %vm754, %v902
        %931 = vst.msk [vmem:[%s929] ss:$8 sm:$0x0] %vm754, %v902
        %s932 = scalar_lea.vmem %s450, 81 [#allocation13]
        %933 = vst.msk [vmem:[%s932] ss:$8 sm:$0x3] %vm754, %v904
        %934 = vst.msk [vmem:[%s932] ss:$8 sm:$0x0] %vm754, %v904
        %s935 = scalar_lea.vmem %s450, 97 [#allocation13]
        %936 = vst.msk [vmem:[%s935] ss:$8 sm:$0x3] %vm754, %v906
        %937 = vst.msk [vmem:[%s935] ss:$8 sm:$0x0] %vm754, %v906
        %s938 = scalar_lea.vmem %s450, 113 [#allocation13]
        %939 = vst.msk [vmem:[%s938] ss:$8 sm:$0x3] %vm754, %v908
        %940 = vst.msk [vmem:[%s938] ss:$8 sm:$0x0] %vm754, %v908
        %941 = vset.pattern.permute.xlu0 2
        %942 = vperm.xlu0 %941, %v812
        %v943 = vpop.permute.xlu0 %942
        %v945 = vmul.f32 %v943, %v713
        %v946 = vmul.f32 %v943, %v714
        %947 = vset.pattern.permute.xlu0 10
        %948 = vperm.xlu0 %947, %v812
        %v949 = vpop.permute.xlu0 %948
        %v951 = vmul.f32 %v949, %v715
        %v952 = vmul.f32 %v949, %v716
        %v953 = vadd.f32 %v945, %v951
        %v954 = vadd.f32 %v946, %v952
        %v957 = vrot.slane %v954, 7
        %v958 = vsel %vm720, %v953, %v957
        %v959 = vsel %vm722, %v953, %v957
        %v960 = vrot.slane %v959, 1
        %v961 = vsel %vm725, %v953, %v957
        %v962 = vrot.slane %v961, 2
        %v963 = vsel %vm728, %v953, %v957
        %v964 = vrot.slane %v963, 3
        %v965 = vsel %vm731, %v953, %v957
        %v966 = vrot.slane %v965, 4
        %v967 = vsel %vm734, %v953, %v957
        %v968 = vrot.slane %v967, 5
        %v969 = vsel %vm737, %v953, %v957
        %v970 = vrot.slane %v969, 6
        %v971 = vsel %vm740, %v957, %v953
        %v972 = vrot.slane %v971, 7
        %s981 = scalar_lea.vmem %s450, 2 [#allocation13]
        %982 = vst.msk [vmem:[%s981] ss:$8 sm:$0x3] %vm754, %v958
        %983 = vst.msk [vmem:[%s981] ss:$8 sm:$0x0] %vm754, %v958
        %s984 = scalar_lea.vmem %s450, 18 [#allocation13]
        %985 = vst.msk [vmem:[%s984] ss:$8 sm:$0x3] %vm754, %v960
        %986 = vst.msk [vmem:[%s984] ss:$8 sm:$0x0] %vm754, %v960
        %s987 = scalar_lea.vmem %s450, 34 [#allocation13]
        %988 = vst.msk [vmem:[%s987] ss:$8 sm:$0x3] %vm754, %v962
        %989 = vst.msk [vmem:[%s987] ss:$8 sm:$0x0] %vm754, %v962
        %s990 = scalar_lea.vmem %s450, 50 [#allocation13]
        %991 = vst.msk [vmem:[%s990] ss:$8 sm:$0x3] %vm754, %v964
        %992 = vst.msk [vmem:[%s990] ss:$8 sm:$0x0] %vm754, %v964
        %s993 = scalar_lea.vmem %s450, 66 [#allocation13]
        %994 = vst.msk [vmem:[%s993] ss:$8 sm:$0x3] %vm754, %v966
        %995 = vst.msk [vmem:[%s993] ss:$8 sm:$0x0] %vm754, %v966
        %s996 = scalar_lea.vmem %s450, 82 [#allocation13]
        %997 = vst.msk [vmem:[%s996] ss:$8 sm:$0x3] %vm754, %v968
        %998 = vst.msk [vmem:[%s996] ss:$8 sm:$0x0] %vm754, %v968
        %s999 = scalar_lea.vmem %s450, 98 [#allocation13]
        %1000 = vst.msk [vmem:[%s999] ss:$8 sm:$0x3] %vm754, %v970
        %1001 = vst.msk [vmem:[%s999] ss:$8 sm:$0x0] %vm754, %v970
        %s1002 = scalar_lea.vmem %s450, 114 [#allocation13]
        %1003 = vst.msk [vmem:[%s1002] ss:$8 sm:$0x3] %vm754, %v972
        %1004 = vst.msk [vmem:[%s1002] ss:$8 sm:$0x0] %vm754, %v972
        %1005 = vset.pattern.permute.xlu0 3
        %1006 = vperm.xlu0 %1005, %v812
        %v1007 = vpop.permute.xlu0 %1006
        %v1009 = vmul.f32 %v1007, %v713
        %v1010 = vmul.f32 %v1007, %v714
        %1011 = vset.pattern.permute.xlu0 11
        %1012 = vperm.xlu0 %1011, %v812
        %v1013 = vpop.permute.xlu0 %1012
        %v1015 = vmul.f32 %v1013, %v715
        %v1016 = vmul.f32 %v1013, %v716
        %v1017 = vadd.f32 %v1009, %v1015
        %v1018 = vadd.f32 %v1010, %v1016
        %v1021 = vrot.slane %v1018, 7
        %v1022 = vsel %vm720, %v1017, %v1021
        %v1023 = vsel %vm722, %v1017, %v1021
        %v1024 = vrot.slane %v1023, 1
        %v1025 = vsel %vm725, %v1017, %v1021
        %v1026 = vrot.slane %v1025, 2
        %v1027 = vsel %vm728, %v1017, %v1021
        %v1028 = vrot.slane %v1027, 3
        %v1029 = vsel %vm731, %v1017, %v1021
        %v1030 = vrot.slane %v1029, 4
        %v1031 = vsel %vm734, %v1017, %v1021
        %v1032 = vrot.slane %v1031, 5
        %v1033 = vsel %vm737, %v1017, %v1021
        %v1034 = vrot.slane %v1033, 6
        %v1035 = vsel %vm740, %v1021, %v1017
        %v1036 = vrot.slane %v1035, 7
        %s1045 = scalar_lea.vmem %s450, 3 [#allocation13]
        %1046 = vst.msk [vmem:[%s1045] ss:$8 sm:$0x3] %vm754, %v1022
        %1047 = vst.msk [vmem:[%s1045] ss:$8 sm:$0x0] %vm754, %v1022
        %s1048 = scalar_lea.vmem %s450, 19 [#allocation13]
        %1049 = vst.msk [vmem:[%s1048] ss:$8 sm:$0x3] %vm754, %v1024
        %1050 = vst.msk [vmem:[%s1048] ss:$8 sm:$0x0] %vm754, %v1024
        %s1051 = scalar_lea.vmem %s450, 35 [#allocation13]
        %1052 = vst.msk [vmem:[%s1051] ss:$8 sm:$0x3] %vm754, %v1026
        %1053 = vst.msk [vmem:[%s1051] ss:$8 sm:$0x0] %vm754, %v1026
        %s1054 = scalar_lea.vmem %s450, 51 [#allocation13]
        %1055 = vst.msk [vmem:[%s1054] ss:$8 sm:$0x3] %vm754, %v1028
        %1056 = vst.msk [vmem:[%s1054] ss:$8 sm:$0x0] %vm754, %v1028
        %s1057 = scalar_lea.vmem %s450, 67 [#allocation13]
        %1058 = vst.msk [vmem:[%s1057] ss:$8 sm:$0x3] %vm754, %v1030
        %1059 = vst.msk [vmem:[%s1057] ss:$8 sm:$0x0] %vm754, %v1030
        %s1060 = scalar_lea.vmem %s450, 83 [#allocation13]
        %1061 = vst.msk [vmem:[%s1060] ss:$8 sm:$0x3] %vm754, %v1032
        %1062 = vst.msk [vmem:[%s1060] ss:$8 sm:$0x0] %vm754, %v1032
        %s1063 = scalar_lea.vmem %s450, 99 [#allocation13]
        %1064 = vst.msk [vmem:[%s1063] ss:$8 sm:$0x3] %vm754, %v1034
        %1065 = vst.msk [vmem:[%s1063] ss:$8 sm:$0x0] %vm754, %v1034
        %s1066 = scalar_lea.vmem %s450, 115 [#allocation13]
        %1067 = vst.msk [vmem:[%s1066] ss:$8 sm:$0x3] %vm754, %v1036
        %1068 = vst.msk [vmem:[%s1066] ss:$8 sm:$0x0] %vm754, %v1036
        %1069 = vset.pattern.permute.xlu0 4
        %1070 = vperm.xlu0 %1069, %v812
        %v1071 = vpop.permute.xlu0 %1070
        %v1073 = vmul.f32 %v1071, %v713
        %v1074 = vmul.f32 %v1071, %v714
        %1075 = vset.pattern.permute.xlu0 12
        %1076 = vperm.xlu0 %1075, %v812
        %v1077 = vpop.permute.xlu0 %1076
        %v1079 = vmul.f32 %v1077, %v715
        %v1080 = vmul.f32 %v1077, %v716
        %v1081 = vadd.f32 %v1073, %v1079
        %v1082 = vadd.f32 %v1074, %v1080
        %v1085 = vrot.slane %v1082, 7
        %v1086 = vsel %vm720, %v1081, %v1085
        %v1087 = vsel %vm722, %v1081, %v1085
        %v1088 = vrot.slane %v1087, 1
        %v1089 = vsel %vm725, %v1081, %v1085
        %v1090 = vrot.slane %v1089, 2
        %v1091 = vsel %vm728, %v1081, %v1085
        %v1092 = vrot.slane %v1091, 3
        %v1093 = vsel %vm731, %v1081, %v1085
        %v1094 = vrot.slane %v1093, 4
        %v1095 = vsel %vm734, %v1081, %v1085
        %v1096 = vrot.slane %v1095, 5
        %v1097 = vsel %vm737, %v1081, %v1085
        %v1098 = vrot.slane %v1097, 6
        %v1099 = vsel %vm740, %v1085, %v1081
        %v1100 = vrot.slane %v1099, 7
        %s1109 = scalar_lea.vmem %s450, 4 [#allocation13]
        %1110 = vst.msk [vmem:[%s1109] ss:$8 sm:$0x3] %vm754, %v1086
        %1111 = vst.msk [vmem:[%s1109] ss:$8 sm:$0x0] %vm754, %v1086
        %s1112 = scalar_lea.vmem %s450, 20 [#allocation13]
        %1113 = vst.msk [vmem:[%s1112] ss:$8 sm:$0x3] %vm754, %v1088
        %1114 = vst.msk [vmem:[%s1112] ss:$8 sm:$0x0] %vm754, %v1088
        %s1115 = scalar_lea.vmem %s450, 36 [#allocation13]
        %1116 = vst.msk [vmem:[%s1115] ss:$8 sm:$0x3] %vm754, %v1090
        %1117 = vst.msk [vmem:[%s1115] ss:$8 sm:$0x0] %vm754, %v1090
        %s1118 = scalar_lea.vmem %s450, 52 [#allocation13]
        %1119 = vst.msk [vmem:[%s1118] ss:$8 sm:$0x3] %vm754, %v1092
        %1120 = vst.msk [vmem:[%s1118] ss:$8 sm:$0x0] %vm754, %v1092
        %s1121 = scalar_lea.vmem %s450, 68 [#allocation13]
        %1122 = vst.msk [vmem:[%s1121] ss:$8 sm:$0x3] %vm754, %v1094
        %1123 = vst.msk [vmem:[%s1121] ss:$8 sm:$0x0] %vm754, %v1094
        %s1124 = scalar_lea.vmem %s450, 84 [#allocation13]
        %1125 = vst.msk [vmem:[%s1124] ss:$8 sm:$0x3] %vm754, %v1096
        %1126 = vst.msk [vmem:[%s1124] ss:$8 sm:$0x0] %vm754, %v1096
        %s1127 = scalar_lea.vmem %s450, 100 [#allocation13]
        %1128 = vst.msk [vmem:[%s1127] ss:$8 sm:$0x3] %vm754, %v1098
        %1129 = vst.msk [vmem:[%s1127] ss:$8 sm:$0x0] %vm754, %v1098
        %s1130 = scalar_lea.vmem %s450, 116 [#allocation13]
        %1131 = vst.msk [vmem:[%s1130] ss:$8 sm:$0x3] %vm754, %v1100
        %1132 = vst.msk [vmem:[%s1130] ss:$8 sm:$0x0] %vm754, %v1100
        %1133 = vset.pattern.permute.xlu0 5
        %1134 = vperm.xlu0 %1133, %v812
        %v1135 = vpop.permute.xlu0 %1134
        %v1137 = vmul.f32 %v1135, %v713
        %v1138 = vmul.f32 %v1135, %v714
        %1139 = vset.pattern.permute.xlu0 13
        %1140 = vperm.xlu0 %1139, %v812
        %v1141 = vpop.permute.xlu0 %1140
        %v1143 = vmul.f32 %v1141, %v715
        %v1144 = vmul.f32 %v1141, %v716
        %v1145 = vadd.f32 %v1137, %v1143
        %v1146 = vadd.f32 %v1138, %v1144
        %v1149 = vrot.slane %v1146, 7
        %v1150 = vsel %vm720, %v1145, %v1149
        %v1151 = vsel %vm722, %v1145, %v1149
        %v1152 = vrot.slane %v1151, 1
        %v1153 = vsel %vm725, %v1145, %v1149
        %v1154 = vrot.slane %v1153, 2
        %v1155 = vsel %vm728, %v1145, %v1149
        %v1156 = vrot.slane %v1155, 3
        %v1157 = vsel %vm731, %v1145, %v1149
        %v1158 = vrot.slane %v1157, 4
        %v1159 = vsel %vm734, %v1145, %v1149
        %v1160 = vrot.slane %v1159, 5
        %v1161 = vsel %vm737, %v1145, %v1149
        %v1162 = vrot.slane %v1161, 6
        %v1163 = vsel %vm740, %v1149, %v1145
        %v1164 = vrot.slane %v1163, 7
        %s1173 = scalar_lea.vmem %s450, 5 [#allocation13]
        %1174 = vst.msk [vmem:[%s1173] ss:$8 sm:$0x3] %vm754, %v1150
        %1175 = vst.msk [vmem:[%s1173] ss:$8 sm:$0x0] %vm754, %v1150
        %s1176 = scalar_lea.vmem %s450, 21 [#allocation13]
        %1177 = vst.msk [vmem:[%s1176] ss:$8 sm:$0x3] %vm754, %v1152
        %1178 = vst.msk [vmem:[%s1176] ss:$8 sm:$0x0] %vm754, %v1152
        %s1179 = scalar_lea.vmem %s450, 37 [#allocation13]
        %1180 = vst.msk [vmem:[%s1179] ss:$8 sm:$0x3] %vm754, %v1154
        %1181 = vst.msk [vmem:[%s1179] ss:$8 sm:$0x0] %vm754, %v1154
        %s1182 = scalar_lea.vmem %s450, 53 [#allocation13]
        %1183 = vst.msk [vmem:[%s1182] ss:$8 sm:$0x3] %vm754, %v1156
        %1184 = vst.msk [vmem:[%s1182] ss:$8 sm:$0x0] %vm754, %v1156
        %s1185 = scalar_lea.vmem %s450, 69 [#allocation13]
        %1186 = vst.msk [vmem:[%s1185] ss:$8 sm:$0x3] %vm754, %v1158
        %1187 = vst.msk [vmem:[%s1185] ss:$8 sm:$0x0] %vm754, %v1158
        %s1188 = scalar_lea.vmem %s450, 85 [#allocation13]
        %1189 = vst.msk [vmem:[%s1188] ss:$8 sm:$0x3] %vm754, %v1160
        %1190 = vst.msk [vmem:[%s1188] ss:$8 sm:$0x0] %vm754, %v1160
        %s1191 = scalar_lea.vmem %s450, 101 [#allocation13]
        %1192 = vst.msk [vmem:[%s1191] ss:$8 sm:$0x3] %vm754, %v1162
        %1193 = vst.msk [vmem:[%s1191] ss:$8 sm:$0x0] %vm754, %v1162
        %s1194 = scalar_lea.vmem %s450, 117 [#allocation13]
        %1195 = vst.msk [vmem:[%s1194] ss:$8 sm:$0x3] %vm754, %v1164
        %1196 = vst.msk [vmem:[%s1194] ss:$8 sm:$0x0] %vm754, %v1164
        %1197 = vset.pattern.permute.xlu0 6
        %1198 = vperm.xlu0 %1197, %v812
        %v1199 = vpop.permute.xlu0 %1198
        %v1201 = vmul.f32 %v1199, %v713
        %v1202 = vmul.f32 %v1199, %v714
        %1203 = vset.pattern.permute.xlu0 14
        %1204 = vperm.xlu0 %1203, %v812
        %v1205 = vpop.permute.xlu0 %1204
        %v1207 = vmul.f32 %v1205, %v715
        %v1208 = vmul.f32 %v1205, %v716
        %v1209 = vadd.f32 %v1201, %v1207
        %v1210 = vadd.f32 %v1202, %v1208
        %v1213 = vrot.slane %v1210, 7
        %v1214 = vsel %vm720, %v1209, %v1213
        %v1215 = vsel %vm722, %v1209, %v1213
        %v1216 = vrot.slane %v1215, 1
        %v1217 = vsel %vm725, %v1209, %v1213
        %v1218 = vrot.slane %v1217, 2
        %v1219 = vsel %vm728, %v1209, %v1213
        %v1220 = vrot.slane %v1219, 3
        %v1221 = vsel %vm731, %v1209, %v1213
        %v1222 = vrot.slane %v1221, 4
        %v1223 = vsel %vm734, %v1209, %v1213
        %v1224 = vrot.slane %v1223, 5
        %v1225 = vsel %vm737, %v1209, %v1213
        %v1226 = vrot.slane %v1225, 6
        %v1227 = vsel %vm740, %v1213, %v1209
        %v1228 = vrot.slane %v1227, 7
        %s1237 = scalar_lea.vmem %s450, 6 [#allocation13]
        %1238 = vst.msk [vmem:[%s1237] ss:$8 sm:$0x3] %vm754, %v1214
        %1239 = vst.msk [vmem:[%s1237] ss:$8 sm:$0x0] %vm754, %v1214
        %s1240 = scalar_lea.vmem %s450, 22 [#allocation13]
        %1241 = vst.msk [vmem:[%s1240] ss:$8 sm:$0x3] %vm754, %v1216
        %1242 = vst.msk [vmem:[%s1240] ss:$8 sm:$0x0] %vm754, %v1216
        %s1243 = scalar_lea.vmem %s450, 38 [#allocation13]
        %1244 = vst.msk [vmem:[%s1243] ss:$8 sm:$0x3] %vm754, %v1218
        %1245 = vst.msk [vmem:[%s1243] ss:$8 sm:$0x0] %vm754, %v1218
        %s1246 = scalar_lea.vmem %s450, 54 [#allocation13]
        %1247 = vst.msk [vmem:[%s1246] ss:$8 sm:$0x3] %vm754, %v1220
        %1248 = vst.msk [vmem:[%s1246] ss:$8 sm:$0x0] %vm754, %v1220
        %s1249 = scalar_lea.vmem %s450, 70 [#allocation13]
        %1250 = vst.msk [vmem:[%s1249] ss:$8 sm:$0x3] %vm754, %v1222
        %1251 = vst.msk [vmem:[%s1249] ss:$8 sm:$0x0] %vm754, %v1222
        %s1252 = scalar_lea.vmem %s450, 86 [#allocation13]
        %1253 = vst.msk [vmem:[%s1252] ss:$8 sm:$0x3] %vm754, %v1224
        %1254 = vst.msk [vmem:[%s1252] ss:$8 sm:$0x0] %vm754, %v1224
        %s1255 = scalar_lea.vmem %s450, 102 [#allocation13]
        %1256 = vst.msk [vmem:[%s1255] ss:$8 sm:$0x3] %vm754, %v1226
        %1257 = vst.msk [vmem:[%s1255] ss:$8 sm:$0x0] %vm754, %v1226
        %s1258 = scalar_lea.vmem %s450, 118 [#allocation13]
        %1259 = vst.msk [vmem:[%s1258] ss:$8 sm:$0x3] %vm754, %v1228
        %1260 = vst.msk [vmem:[%s1258] ss:$8 sm:$0x0] %vm754, %v1228
        %1261 = vset.pattern.permute.xlu0 7
        %1262 = vperm.xlu0 %1261, %v812
        %v1263 = vpop.permute.xlu0 %1262
        %v1265 = vmul.f32 %v1263, %v713
        %v1266 = vmul.f32 %v1263, %v714
        %1267 = vset.pattern.permute.xlu0 15
        %1268 = vperm.xlu0 %1267, %v812
        %v1269 = vpop.permute.xlu0 %1268
        %v1271 = vmul.f32 %v1269, %v715
        %v1272 = vmul.f32 %v1269, %v716
        %v1273 = vadd.f32 %v1265, %v1271
        %v1274 = vadd.f32 %v1266, %v1272
        %v1277 = vrot.slane %v1274, 7
        %v1278 = vsel %vm720, %v1273, %v1277
        %v1279 = vsel %vm722, %v1273, %v1277
        %v1280 = vrot.slane %v1279, 1
        %v1281 = vsel %vm725, %v1273, %v1277
        %v1282 = vrot.slane %v1281, 2
        %v1283 = vsel %vm728, %v1273, %v1277
        %v1284 = vrot.slane %v1283, 3
        %v1285 = vsel %vm731, %v1273, %v1277
        %v1286 = vrot.slane %v1285, 4
        %v1287 = vsel %vm734, %v1273, %v1277
        %v1288 = vrot.slane %v1287, 5
        %v1289 = vsel %vm737, %v1273, %v1277
        %v1290 = vrot.slane %v1289, 6
        %v1291 = vsel %vm740, %v1277, %v1273
        %v1292 = vrot.slane %v1291, 7
        %s1301 = scalar_lea.vmem %s450, 7 [#allocation13]
        %1302 = vst.msk [vmem:[%s1301] ss:$8 sm:$0x3] %vm754, %v1278
        %1303 = vst.msk [vmem:[%s1301] ss:$8 sm:$0x0] %vm754, %v1278
        %s1304 = scalar_lea.vmem %s450, 23 [#allocation13]
        %1305 = vst.msk [vmem:[%s1304] ss:$8 sm:$0x3] %vm754, %v1280
        %1306 = vst.msk [vmem:[%s1304] ss:$8 sm:$0x0] %vm754, %v1280
        %s1307 = scalar_lea.vmem %s450, 39 [#allocation13]
        %1308 = vst.msk [vmem:[%s1307] ss:$8 sm:$0x3] %vm754, %v1282
        %1309 = vst.msk [vmem:[%s1307] ss:$8 sm:$0x0] %vm754, %v1282
        %s1310 = scalar_lea.vmem %s450, 55 [#allocation13]
        %1311 = vst.msk [vmem:[%s1310] ss:$8 sm:$0x3] %vm754, %v1284
        %1312 = vst.msk [vmem:[%s1310] ss:$8 sm:$0x0] %vm754, %v1284
        %s1313 = scalar_lea.vmem %s450, 71 [#allocation13]
        %1314 = vst.msk [vmem:[%s1313] ss:$8 sm:$0x3] %vm754, %v1286
        %1315 = vst.msk [vmem:[%s1313] ss:$8 sm:$0x0] %vm754, %v1286
        %s1316 = scalar_lea.vmem %s450, 87 [#allocation13]
        %1317 = vst.msk [vmem:[%s1316] ss:$8 sm:$0x3] %vm754, %v1288
        %1318 = vst.msk [vmem:[%s1316] ss:$8 sm:$0x0] %vm754, %v1288
        %s1319 = scalar_lea.vmem %s450, 103 [#allocation13]
        %1320 = vst.msk [vmem:[%s1319] ss:$8 sm:$0x3] %vm754, %v1290
        %1321 = vst.msk [vmem:[%s1319] ss:$8 sm:$0x0] %vm754, %v1290
        %s1322 = scalar_lea.vmem %s450, 119 [#allocation13]
        %1323 = vst.msk [vmem:[%s1322] ss:$8 sm:$0x3] %vm754, %v1292
        %1324 = vst.msk [vmem:[%s1322] ss:$8 sm:$0x0] %vm754, %v1292
        %s1325 = sand.u32 %s215, 1
        %s1326 = scalar_lea.sflag [#allocation6], %s1325
        %s1327 = sand.u32 %s215, 1
        %s1328 = smul.addr %s1327, 8
        %s1329 = scalar_lea.vmem [#allocation9], %s1328
        %s1330 = sand.u32 %s33, 1
        %s1331 = scalar_lea.sflag [#allocation11], %s1330
        %s1332 = sand.u32 %s241, 1
        %s1333 = smul.addr %s1332, 8
        %s1334 = scalar_lea.vmem [#allocation10], %s1333
        %s1335 = sand.u32 %s33, 1
        %s1336 = scalar_lea.sflag [#allocation11], %s1335
        %s1337 = sand.u32 %s269, 1
        %s1338 = smul.addr %s1337, 32
        %s1339 = scalar_lea.vmem [#allocation12], %s1338
        %s1340 = sand.u32 %s297, 1
        %s1341 = scalar_lea.sflag [#allocation14], %s1340
        %s1342 = sand.u32 %s297, 1
        %s1343 = smul.addr %s1342, 128
        %s1344 = scalar_lea.vmem [#allocation13], %s1343
        // Predicated region
        $region61: #{tpu_custom_call.1} parent=47 // pred_check
          %p1345 = pneg %p225
        $region62: #{tpu_custom_call.1} parent=47 // pred_check_branch
          %1347 = sbr.rel (%p1345) target = $region64
        $region63: #{tpu_custom_call.1} parent=47 // pred_region
          %1349 = vsyncadd %s1326, 0
          %s1350 = smul.addr %s37, 8
          %s1351 = scalar_lea.hbm %s7, %s1350
          %s1353 = sshll.u32 %s1329, 4
          %s1354 = int_to_ptr.vmem [resolvable:$true] %s1353
          %s1355 = sshll.u32 %s1351, 4
          %s1356 = int_to_ptr.hbm [resolvable:$true] %s1355
          %1358 = dma.vmem_to_hbm [thread:$0]  %s1354, 128, %s1356, %s1326
        $region64: #{tpu_custom_call.1} parent=47 // pred_fallthru
          _
        // Predicated region
        $region65: #{tpu_custom_call.1} parent=47 // pred_check
          %p1359 = pneg %p251
        $region66: #{tpu_custom_call.1} parent=47 // pred_check_branch
          %1361 = sbr.rel (%p1359) target = $region68
        $region67: #{tpu_custom_call.1} parent=47 // pred_region
          %1363 = vsyncadd %s1331, 0
          %s1364 = smul.addr %s37, 8
          %s1365 = scalar_lea.hbm %s8, %s1364
          %s1367 = sshll.u32 %s1334, 4
          %s1368 = int_to_ptr.vmem [resolvable:$true] %s1367
          %s1369 = sshll.u32 %s1365, 4
          %s1370 = int_to_ptr.hbm [resolvable:$true] %s1369
          %1372 = dma.vmem_to_hbm [thread:$0]  %s1368, 128, %s1370, %s1331
        $region68: #{tpu_custom_call.1} parent=47 // pred_fallthru
          _
        // Predicated region
        $region69: #{tpu_custom_call.1} parent=47 // pred_check
          %p1373 = pneg %p279
        $region70: #{tpu_custom_call.1} parent=47 // pred_check_branch
          %1375 = sbr.rel (%p1373) target = $region72
        $region71: #{tpu_custom_call.1} parent=47 // pred_region
          %s1376 = smul.u32 8, %s37
          %s1377 = smul.u32 2, %s38
          %1379 = vsyncadd %s1336, 0
          %s1380 = smul.addr %s1376, 2
          %s1381 = sadd.s32 %s1377, %s1380
          %s1382 = smul.addr %s1381, 2
          %s1383 = scalar_lea.hbm %s9, %s1382
          %s1384 = sshll.u32 %s1339, 4
          %s1385 = int_to_ptr.vmem [resolvable:$true] %s1384
          %s1386 = sshll.u32 %s1383, 4
          %s1387 = int_to_ptr.hbm [resolvable:$true] %s1386
          %1392 = dma.vmem_to_hbm [thread:$0]  %s1385, 512, %s1387, %s1336, 64, 64, 4
        $region72: #{tpu_custom_call.1} parent=47 // pred_fallthru
          _
        // Predicated region
        $region73: #{tpu_custom_call.1} parent=47 // pred_check
          %p1393 = pneg %p307
        $region74: #{tpu_custom_call.1} parent=47 // pred_check_branch
          %1395 = sbr.rel (%p1393) target = $region76
        $region75: #{tpu_custom_call.1} parent=47 // pred_region
          %s1396 = smul.u32 8, %s37
          %s1397 = smul.u32 2, %s38
          %1399 = vsyncadd %s1341, 0
          %s1400 = smul.addr %s1396, 2
          %s1401 = sadd.s32 %s1397, %s1400
          %s1402 = smul.addr %s1401, 8
          %s1403 = scalar_lea.hbm %s10, %s1402
          %s1404 = sshll.u32 %s1344, 4
          %s1405 = int_to_ptr.vmem [resolvable:$true] %s1404
          %s1406 = sshll.u32 %s1403, 4
          %s1407 = int_to_ptr.hbm [resolvable:$true] %s1406
          %1412 = dma.vmem_to_hbm [thread:$0]  %s1405, 2048, %s1407, %s1341, 256, 256, 16
        $region76: #{tpu_custom_call.1} parent=47 // pred_fallthru
          _
      $region48: #{tpu_custom_call.1} parent=5 // pred_fallthru
        _
      %p1413 = scmp.le.s32.totalorder 2, %s28
      // Predicated region
      $region77: #{tpu_custom_call.1} parent=5 // pred_check
        %p1414 = pneg %p1413
      $region78: #{tpu_custom_call.1} parent=5 // pred_check_branch
        %1416 = sbr.rel (%p1414) target = $region80
      $region79: #{tpu_custom_call.1} parent=5 // pred_region
        %s1417 = ssub.s32 %s28, 2
        // Predicated region
        $region81: #{tpu_custom_call.1} parent=79 // pred_check
          %p1418 = pneg %p231
        $region82: #{tpu_custom_call.1} parent=79 // pred_check_branch
          %1420 = sbr.rel (%p1418) target = $region84
        $region83: #{tpu_custom_call.1} parent=79 // pred_region
          %s1421 = sand.u32 %s216, 1
          %s1422 = scalar_lea.sflag [#allocation6], %s1421
          %s1423 = sand.u32 %s216, 1
          %s1424 = smul.addr %s1423, 8
          %s1425 = scalar_lea.vmem [#allocation9], %s1424
          %1427 = dma.done %s1422, 128
        $region84: #{tpu_custom_call.1} parent=79 // pred_fallthru
          _
        // Predicated region
        $region85: #{tpu_custom_call.1} parent=79 // pred_check
          %p1428 = pneg %p257
        $region86: #{tpu_custom_call.1} parent=79 // pred_check_branch
          %1430 = sbr.rel (%p1428) target = $region88
        $region87: #{tpu_custom_call.1} parent=79 // pred_region
          %s1431 = sand.u32 %s34, 1
          %s1432 = scalar_lea.sflag [#allocation11], %s1431
          %s1433 = sand.u32 %s242, 1
          %s1434 = smul.addr %s1433, 8
          %s1435 = scalar_lea.vmem [#allocation10], %s1434
          %1437 = dma.done %s1432, 128
        $region88: #{tpu_custom_call.1} parent=79 // pred_fallthru
          _
        // Predicated region
        $region89: #{tpu_custom_call.1} parent=79 // pred_check
          %p1438 = pneg %p285
        $region90: #{tpu_custom_call.1} parent=79 // pred_check_branch
          %1440 = sbr.rel (%p1438) target = $region92
        $region91: #{tpu_custom_call.1} parent=79 // pred_region
          %s1441 = sand.u32 %s34, 1
          %s1442 = scalar_lea.sflag [#allocation11], %s1441
          %s1443 = sand.u32 %s270, 1
          %s1444 = smul.addr %s1443, 32
          %s1445 = scalar_lea.vmem [#allocation12], %s1444
          %1447 = dma.done %s1442, 512
        $region92: #{tpu_custom_call.1} parent=79 // pred_fallthru
          _
        // Predicated region
        $region93: #{tpu_custom_call.1} parent=79 // pred_check
          %p1448 = pneg %p313
        $region94: #{tpu_custom_call.1} parent=79 // pred_check_branch
          %1450 = sbr.rel (%p1448) target = $region96
        $region95: #{tpu_custom_call.1} parent=79 // pred_region
          %s1451 = sand.u32 %s298, 1
          %s1452 = scalar_lea.sflag [#allocation14], %s1451
          %s1453 = sand.u32 %s298, 1
          %s1454 = smul.addr %s1453, 128
          %s1455 = scalar_lea.vmem [#allocation13], %s1454
          %1457 = dma.done %s1452, 2048
        $region96: #{tpu_custom_call.1} parent=79 // pred_fallthru
          _
      $region80: #{tpu_custom_call.1} parent=5 // pred_fallthru
        _
    $region6: #{tpu_custom_call.1} parent=1 // loop_footer
      %s32 = sadd.s32 1, %s28
    $region7: #{tpu_custom_call.1} parent=1 // loop_footer_branch
      %27 = sbr.rel target = $region3
    $region8: #{tpu_custom_call.1} parent=1 // loop_exit
      _
    %1458 = vsyncpa [#allocation5], 1
    %s1459 = scalar_lea.sflag [#allocation5], 1
    %1460 = vsyncpa %s1459, 1
    %1461 = vsyncpa [#allocation8], 1
    %1462 = vsyncpa [#allocation6], 1
    %s1463 = scalar_lea.sflag [#allocation6], 1
    %1464 = vsyncpa %s1463, 1
    %1465 = vsyncpa [#allocation11], 1
    %s1466 = scalar_lea.sflag [#allocation11], 1
    %1467 = vsyncpa %s1466, 1
    %1468 = vsyncpa [#allocation14], 1
    %s1469 = scalar_lea.sflag [#allocation14], 1
    %1470 = vsyncpa %s1469, 1

// kernel: tpu_custom_call.1
$region0: #{tpu_custom_call.1}
  #allocation0 [shape = 'u32[]', space=smem, size = 0x4, offset = 0x4, fixed_abs, tag = 'smem constant byte address 0x4 - core index']
  #allocation1 [shape = 'u32[72,128]{1,0:T(1,128)}', space=vmem, size = 0x9000, scoped, tag = 'internal scratch']
  #allocation2 [shape = 'bf16[8,32]{1,0:T(8,128)(2,1)}', space=vmem, size = 0x800, scoped, tag = 'scratch operand']
  #allocation3 [shape = 'f32[8,16]{1,0:T(8,128)}', space=vmem, size = 0x1000, scoped, tag = 'scratch operand']
  %s0 = inlined_call_operand.vmem [shape: f32[16,3], index: 0, kind: input, shape index: {}]
  %s1 = inlined_call_operand.vmem [shape: bf16[3,32], index: 1, kind: input, shape index: {}]
  %s2 = inlined_call_operand.hbm [shape: f32[1,32], index: 2, kind: input, shape index: {}]
  %s3 = inlined_call_operand.vmem [shape: bf16[32,48], index: 3, kind: input, shape index: {}]
  %s4 = inlined_call_operand.vmem [shape: f32[1,48], index: 4, kind: input, shape index: {}]
  %s5 = inlined_call_operand.hbm [shape: bf16[2,32,256], index: 5, kind: input, shape index: {}]
  %s6 = inlined_call_operand.vmem [shape: f32[2,256], index: 6, kind: input, shape index: {}]
  %s7 = inlined_call_operand.hbm [shape: f32[16,32], index: 7, kind: output, shape index: {0}]
  %s8 = inlined_call_operand.hbm [shape: f32[16,32], index: 8, kind: output, shape index: {1}]
  %s9 = inlined_call_operand.hbm [shape: f32[16,2,256], index: 9, kind: output, shape index: {2}]
  %s10 = inlined_call_operand.hbm [shape: f32[16,8,256], index: 10, kind: output, shape index: {3}]
  %11 = xla_tuple %s7, %s8, %s9, %s10
  %s12 = sld [smem:[#allocation0]]
  $region97: #{tpu_custom_call.1} parent=0
    _
  %s14 = ssub.s32 1, %s12
  %s15 = scalar_select 0, %s14, %s12
  $region1: #{tpu_custom_call.1} parent=0
    #allocation4 [shape = 'u8[512]{0}', space=vmem, size = 0x400, scoped, tag = 'input window, operand 2, single buffered']
    #allocation5 [shape = 's32[2]{0}', space=sflag, size = 0x8, scoped, tag = 'scoped memory for tpu_custom_call.1']
    #allocation6 [shape = 's32[2]{0}', space=sflag, size = 0x8, scoped, tag = 'scoped memory for tpu_custom_call.1']
    #allocation7 [shape = 'u8[32768]{0}', space=vmem, size = 0x8000, scoped, tag = 'input window, operand 5, single buffered']
    #allocation8 [shape = 's32[1]{0}', space=sflag, size = 0x4, scoped, tag = 'scoped memory for tpu_custom_call.1']
    #allocation9 [shape = 'u8[8192]{0}', space=vmem, size = 0x2000, scoped, tag = 'output window, operand 0']
    #allocation10 [shape = 'u8[8192]{0}', space=vmem, size = 0x2000, scoped, tag = 'output window, operand 1']
    #allocation11 [shape = 's32[2]{0}', space=sflag, size = 0x8, scoped, tag = 'scoped memory for tpu_custom_call.1']
    #allocation12 [shape = 'u8[32768]{0}', space=vmem, size = 0x8000, scoped, tag = 'output window, operand 2']
    #allocation13 [shape = 'u8[131072]{0}', space=vmem, size = 0x20000, scoped, tag = 'output window, operand 3']
    #allocation14 [shape = 's32[2]{0}', space=sflag, size = 0x8, scoped, tag = 'scoped memory for tpu_custom_call.1']
    %16 = vsyncpa [#allocation5], 0
    %17 = vsyncpa [#allocation8], 0
    %18 = vsyncpa [#allocation6], 0
    %s19 = scalar_lea.sflag [#allocation6], 1
    %20 = vsyncpa %s19, 0
    %21 = vsyncpa [#allocation11], 0
    %s22 = scalar_lea.sflag [#allocation11], 1
    %23 = vsyncpa %s22, 0
    %24 = vsyncpa [#allocation14], 0
    %s25 = scalar_lea.sflag [#allocation14], 1
    %26 = vsyncpa %s25, 0
    loop: start=0, step=1, limit=4
    $region2: #{tpu_custom_call.1} parent=1 // loop_pre_header
      _
    $region3: #{tpu_custom_call.1} parent=1 // loop_header
      %s28 = sphi 0, %s32
      %p29 = scmp.ge.s32.totalorder %s28, 4
      %s35 = sphi 0, %s47
      %s36 = sphi 0, %s43
      %s37 = sphi 0, %s35
      %s38 = sphi 0, %s36
      %s39 = sphi 0, %s37
      %s40 = sphi 0, %s38
      %s50 = sphi 0, %s52
      %s53 = sphi 0, %s50
      %s54 = sphi 0, %s53
      %s70 = sphi 0, %s54
      %s74 = sphi 0, %s74
      %s76 = sphi 0, %s74
      %s77 = sphi 0, %s76
      %s91 = sphi 0, %s77
      %s95 = sphi 0, %s95
      %s97 = sphi 0, %s95
      %s98 = sphi 0, %s97
      %s112 = sphi 0, %s98
      %s116 = sphi 0, %s116
      %s118 = sphi 0, %s116
      %s119 = sphi 0, %s118
      %s133 = sphi 0, %s119
      %s137 = sphi 0, %s137
      %s139 = sphi 0, %s137
      %s140 = sphi 0, %s139
      %s154 = sphi 0, %s140
      %s160 = sphi 0, %s162
      %s163 = sphi 0, %s160
      %s164 = sphi 0, %s163
      %s180 = sphi 0, %s164
      %s186 = sphi 0, %s188
      %s189 = sphi 0, %s186
      %s190 = sphi 0, %s189
      %s206 = sphi 0, %s190
      %s212 = sphi 0, %s214
      %s215 = sphi 0, %s212
      %s216 = sphi 0, %s215
      %s232 = sphi 0, %s216
      %s238 = sphi 0, %s240
      %s241 = sphi 0, %s238
      %s242 = sphi 0, %s241
      %s258 = sphi 0, %s242
      %s266 = sphi 0, %s268
      %s269 = sphi 0, %s266
      %s270 = sphi 0, %s269
      %s286 = sphi 0, %s270
      %s294 = sphi 0, %s296
      %s297 = sphi 0, %s294
      %s298 = sphi 0, %s297
      %s314 = sphi 0, %s298
    $region4: #{tpu_custom_call.1} parent=1 // loop_header_branch
      %31 = sbr.rel (%p29) target = $region8
    $region5: #{tpu_custom_call.1} parent=1 // loop_body
      %s33 = ssub.s32 %s28, 1
      %s34 = ssub.s32 %s28, 2
      %s41 = sadd.s32 1, %s36
      %p42 = scmp.ge.s32.totalorder %s41, 1
      %s43 = scalar_select %p42, 0, %s41
      %s44 = sadd.s32 1, %s35
      %s45 = scalar_select %p42, %s44, %s35
      %p46 = scmp.ge.s32.totalorder %s45, 2
      %s47 = scalar_select %p46, 0, %s45
      %s48 = ssub.s32 %s35, %s47
      %p49 = scmp.eq.s32.totalorder %s48, 0
      %s51 = sadd.s32 %s50, 1
      %s52 = scalar_select %p49, %s50, %s51
      %p55 = pneg %p49
      %p56 = scmp.eq.s32.totalorder %s28, 1
      %p57 = por %p55, %p56
      %p58 = scmp.ne.s32.totalorder %s50, %s53
      %p59 = scmp.eq.s32.totalorder %s28, 0
      %p60 = por %p58, %p59
      %p61 = scmp.ne.s32.totalorder %s50, %s53
      %p62 = scmp.eq.s32.totalorder %s33, 1
      %p63 = por %p61, %p62
      %p64 = scmp.ne.s32.totalorder %s53, %s54
      %p65 = scmp.eq.s32.totalorder %s33, 0
      %p66 = por %p64, %p65
      %p67 = scmp.ne.s32.totalorder %s53, %s54
      %p68 = scmp.eq.s32.totalorder %s34, 1
      %p69 = por %p67, %p68
      %p71 = scmp.ne.s32.totalorder %s54, %s70
      %p72 = scmp.eq.s32.totalorder %s34, 0
      %p73 = por %p71, %p72
      %s75 = sadd.s32 %s74, 1
      %p78 = scmp.eq.s32.totalorder %s28, 1
      %p79 = scmp.ne.s32.totalorder %s74, %s76
      %p80 = scmp.eq.s32.totalorder %s28, 0
      %p81 = por %p79, %p80
      %p82 = scmp.ne.s32.totalorder %s74, %s76
      %p83 = scmp.eq.s32.totalorder %s33, 1
      %p84 = por %p82, %p83
      %p85 = scmp.ne.s32.totalorder %s76, %s77
      %p86 = scmp.eq.s32.totalorder %s33, 0
      %p87 = por %p85, %p86
      %p88 = scmp.ne.s32.totalorder %s76, %s77
      %p89 = scmp.eq.s32.totalorder %s34, 1
      %p90 = por %p88, %p89
      %p92 = scmp.ne.s32.totalorder %s77, %s91
      %p93 = scmp.eq.s32.totalorder %s34, 0
      %p94 = por %p92, %p93
      %s96 = sadd.s32 %s95, 1
      %p99 = scmp.eq.s32.totalorder %s28, 1
      %p100 = scmp.ne.s32.totalorder %s95, %s97
      %p101 = scmp.eq.s32.totalorder %s28, 0
      %p102 = por %p100, %p101
      %p103 = scmp.ne.s32.totalorder %s95, %s97
      %p104 = scmp.eq.s32.totalorder %s33, 1
      %p105 = por %p103, %p104
      %p106 = scmp.ne.s32.totalorder %s97, %s98
      %p107 = scmp.eq.s32.totalorder %s33, 0
      %p108 = por %p106, %p107
      %p109 = scmp.ne.s32.totalorder %s97, %s98
      %p110 = scmp.eq.s32.totalorder %s34, 1
      %p111 = por %p109, %p110
      %p113 = scmp.ne.s32.totalorder %s98, %s112
      %p114 = scmp.eq.s32.totalorder %s34, 0
      %p115 = por %p113, %p114
      %s117 = sadd.s32 %s116, 1
      %p120 = scmp.eq.s32.totalorder %s28, 1
      %p121 = scmp.ne.s32.totalorder %s116, %s118
      %p122 = scmp.eq.s32.totalorder %s28, 0
      %p123 = por %p121, %p122
      %p124 = scmp.ne.s32.totalorder %s116, %s118
      %p125 = scmp.eq.s32.totalorder %s33, 1
      %p126 = por %p124, %p125
      %p127 = scmp.ne.s32.totalorder %s118, %s119
      %p128 = scmp.eq.s32.totalorder %s33, 0
      %p129 = por %p127, %p128
      %p130 = scmp.ne.s32.totalorder %s118, %s119
      %p131 = scmp.eq.s32.totalorder %s34, 1
      %p132 = por %p130, %p131
      %p134 = scmp.ne.s32.totalorder %s119, %s133
      %p135 = scmp.eq.s32.totalorder %s34, 0
      %p136 = por %p134, %p135
      %s138 = sadd.s32 %s137, 1
      %p141 = scmp.eq.s32.totalorder %s28, 1
      %p142 = scmp.ne.s32.totalorder %s137, %s139
      %p143 = scmp.eq.s32.totalorder %s28, 0
      %p144 = por %p142, %p143
      %p145 = scmp.ne.s32.totalorder %s137, %s139
      %p146 = scmp.eq.s32.totalorder %s33, 1
      %p147 = por %p145, %p146
      %p148 = scmp.ne.s32.totalorder %s139, %s140
      %p149 = scmp.eq.s32.totalorder %s33, 0
      %p150 = por %p148, %p149
      %p151 = scmp.ne.s32.totalorder %s139, %s140
      %p152 = scmp.eq.s32.totalorder %s34, 1
      %p153 = por %p151, %p152
      %p155 = scmp.ne.s32.totalorder %s140, %s154
      %p156 = scmp.eq.s32.totalorder %s34, 0
      %p157 = por %p155, %p156
      %s158 = ssub.s32 %s36, %s43
      %p159 = scmp.eq.s32.totalorder %s158, 0
      %s161 = sadd.s32 %s160, 1
      %s162 = scalar_select %p159, %s160, %s161
      %p165 = pneg %p159
      %p166 = scmp.eq.s32.totalorder %s28, 1
      %p167 = por %p165, %p166
      %p168 = scmp.ne.s32.totalorder %s160, %s163
      %p169 = scmp.eq.s32.totalorder %s28, 0
      %p170 = por %p168, %p169
      %p171 = scmp.ne.s32.totalorder %s160, %s163
      %p172 = scmp.eq.s32.totalorder %s33, 1
      %p173 = por %p171, %p172
      %p174 = scmp.ne.s32.totalorder %s163, %s164
      %p175 = scmp.eq.s32.totalorder %s33, 0
      %p176 = por %p174, %p175
      %p177 = scmp.ne.s32.totalorder %s163, %s164
      %p178 = scmp.eq.s32.totalorder %s34, 1
      %p179 = por %p177, %p178
      %p181 = scmp.ne.s32.totalorder %s164, %s180
      %p182 = scmp.eq.s32.totalorder %s34, 0
      %p183 = por %p181, %p182
      %s184 = ssub.s32 %s36, %s43
      %p185 = scmp.eq.s32.totalorder %s184, 0
      %s187 = sadd.s32 %s186, 1
      %s188 = scalar_select %p185, %s186, %s187
      %p191 = pneg %p185
      %p192 = scmp.eq.s32.totalorder %s28, 1
      %p193 = por %p191, %p192
      %p194 = scmp.ne.s32.totalorder %s186, %s189
      %p195 = scmp.eq.s32.totalorder %s28, 0
      %p196 = por %p194, %p195
      %p197 = scmp.ne.s32.totalorder %s186, %s189
      %p198 = scmp.eq.s32.totalorder %s33, 1
      %p199 = por %p197, %p198
      %p200 = scmp.ne.s32.totalorder %s189, %s190
      %p201 = scmp.eq.s32.totalorder %s33, 0
      %p202 = por %p200, %p201
      %p203 = scmp.ne.s32.totalorder %s189, %s190
      %p204 = scmp.eq.s32.totalorder %s34, 1
      %p205 = por %p203, %p204
      %p207 = scmp.ne.s32.totalorder %s190, %s206
      %p208 = scmp.eq.s32.totalorder %s34, 0
      %p209 = por %p207, %p208
      %s210 = ssub.s32 %s35, %s47
      %p211 = scmp.eq.s32.totalorder %s210, 0
      %s213 = sadd.s32 %s212, 1
      %s214 = scalar_select %p211, %s212, %s213
      %p217 = pneg %p211
      %p218 = scmp.eq.s32.totalorder %s28, 1
      %p219 = por %p217, %p218
      %p220 = scmp.ne.s32.totalorder %s212, %s215
      %p221 = scmp.eq.s32.totalorder %s28, 0
      %p222 = por %p220, %p221
      %p223 = scmp.ne.s32.totalorder %s212, %s215
      %p224 = scmp.eq.s32.totalorder %s33, 1
      %p225 = por %p223, %p224
      %p226 = scmp.ne.s32.totalorder %s215, %s216
      %p227 = scmp.eq.s32.totalorder %s33, 0
      %p228 = por %p226, %p227
      %p229 = scmp.ne.s32.totalorder %s215, %s216
      %p230 = scmp.eq.s32.totalorder %s34, 1
      %p231 = por %p229, %p230
      %p233 = scmp.ne.s32.totalorder %s216, %s232
      %p234 = scmp.eq.s32.totalorder %s34, 0
      %p235 = por %p233, %p234
      %s236 = ssub.s32 %s35, %s47
      %p237 = scmp.eq.s32.totalorder %s236, 0
      %s239 = sadd.s32 %s238, 1
      %s240 = scalar_select %p237, %s238, %s239
      %p243 = pneg %p237
      %p244 = scmp.eq.s32.totalorder %s28, 1
      %p245 = por %p243, %p244
      %p246 = scmp.ne.s32.totalorder %s238, %s241
      %p247 = scmp.eq.s32.totalorder %s28, 0
      %p248 = por %p246, %p247
      %p249 = scmp.ne.s32.totalorder %s238, %s241
      %p250 = scmp.eq.s32.totalorder %s33, 1
      %p251 = por %p249, %p250
      %p252 = scmp.ne.s32.totalorder %s241, %s242
      %p253 = scmp.eq.s32.totalorder %s33, 0
      %p254 = por %p252, %p253
      %p255 = scmp.ne.s32.totalorder %s241, %s242
      %p256 = scmp.eq.s32.totalorder %s34, 1
      %p257 = por %p255, %p256
      %p259 = scmp.ne.s32.totalorder %s242, %s258
      %p260 = scmp.eq.s32.totalorder %s34, 0
      %p261 = por %p259, %p260
      %s262 = ssub.s32 %s35, %s47
      %s263 = ssub.s32 %s36, %s43
      %s264 = sor.u32 %s262, %s263
      %p265 = scmp.eq.s32.totalorder %s264, 0
      %s267 = sadd.s32 %s266, 1
      %s268 = scalar_select %p265, %s266, %s267
      %p271 = pneg %p265
      %p272 = scmp.eq.s32.totalorder %s28, 1
      %p273 = por %p271, %p272
      %p274 = scmp.ne.s32.totalorder %s266, %s269
      %p275 = scmp.eq.s32.totalorder %s28, 0
      %p276 = por %p274, %p275
      %p277 = scmp.ne.s32.totalorder %s266, %s269
      %p278 = scmp.eq.s32.totalorder %s33, 1
      %p279 = por %p277, %p278
      %p280 = scmp.ne.s32.totalorder %s269, %s270
      %p281 = scmp.eq.s32.totalorder %s33, 0
      %p282 = por %p280, %p281
      %p283 = scmp.ne.s32.totalorder %s269, %s270
      %p284 = scmp.eq.s32.totalorder %s34, 1
      %p285 = por %p283, %p284
      %p287 = scmp.ne.s32.totalorder %s270, %s286
      %p288 = scmp.eq.s32.totalorder %s34, 0
      %p289 = por %p287, %p288
      %s290 = ssub.s32 %s35, %s47
      %s291 = ssub.s32 %s36, %s43
      %s292 = sor.u32 %s290, %s291
      %p293 = scmp.eq.s32.totalorder %s292, 0
      %s295 = sadd.s32 %s294, 1
      %s296 = scalar_select %p293, %s294, %s295
      %p299 = pneg %p293
      %p300 = scmp.eq.s32.totalorder %s28, 1
      %p301 = por %p299, %p300
      %p302 = scmp.ne.s32.totalorder %s294, %s297
      %p303 = scmp.eq.s32.totalorder %s28, 0
      %p304 = por %p302, %p303
      %p305 = scmp.ne.s32.totalorder %s294, %s297
      %p306 = scmp.eq.s32.totalorder %s33, 1
      %p307 = por %p305, %p306
      %p308 = scmp.ne.s32.totalorder %s297, %s298
      %p309 = scmp.eq.s32.totalorder %s33, 0
      %p310 = por %p308, %p309
      %p311 = scmp.ne.s32.totalorder %s297, %s298
      %p312 = scmp.eq.s32.totalorder %s34, 1
      %p313 = por %p311, %p312
      %p315 = scmp.ne.s32.totalorder %s298, %s314
      %p316 = scmp.eq.s32.totalorder %s34, 0
      %p317 = por %p315, %p316
      %p318 = scmp.le.s32.totalorder 1, %s28
      %p319 = scmp.lt.s32.totalorder %s28, 3
      %p320 = pnand %p318, %p319
      %p321 = pneg %p320
      // Predicated region
      $region9: #{tpu_custom_call.1} parent=5 // pred_check
        _
      $region10: #{tpu_custom_call.1} parent=5 // pred_check_branch
        %323 = sbr.rel (%p320) target = $region12
      $region11: #{tpu_custom_call.1} parent=5 // pred_region
        %s324 = ssub.s32 %s28, 1
        // Predicated region
        $region13: #{tpu_custom_call.1} parent=11 // pred_check
          %p325 = pneg %p87
        $region14: #{tpu_custom_call.1} parent=11 // pred_check_branch
          %327 = sbr.rel (%p325) target = $region16
        $region15: #{tpu_custom_call.1} parent=11 // pred_region
          _
        $region16: #{tpu_custom_call.1} parent=11 // pred_fallthru
          _
        // Predicated region
        $region17: #{tpu_custom_call.1} parent=11 // pred_check
          %p328 = pneg %p108
        $region18: #{tpu_custom_call.1} parent=11 // pred_check_branch
          %330 = sbr.rel (%p328) target = $region20
        $region19: #{tpu_custom_call.1} parent=11 // pred_region
          %332 = vsyncadd [#allocation5], 0
          %s334 = sshll.u32 %s2, 4
          %s335 = int_to_ptr.hbm [resolvable:$true] %s334
          %s336 = sshll.u32 [#allocation4], 4
          %s337 = int_to_ptr.vmem [resolvable:$true] %s336
          %339 = dma.hbm_to_vmem [thread:$0]  %s335, 16, %s337, [#allocation5]
        $region20: #{tpu_custom_call.1} parent=11 // pred_fallthru
          _
        // Predicated region
        $region21: #{tpu_custom_call.1} parent=11 // pred_check
          %p340 = pneg %p129
        $region22: #{tpu_custom_call.1} parent=11 // pred_check_branch
          %342 = sbr.rel (%p340) target = $region24
        $region23: #{tpu_custom_call.1} parent=11 // pred_region
          _
        $region24: #{tpu_custom_call.1} parent=11 // pred_fallthru
          _
        // Predicated region
        $region25: #{tpu_custom_call.1} parent=11 // pred_check
          %p343 = pneg %p150
        $region26: #{tpu_custom_call.1} parent=11 // pred_check_branch
          %345 = sbr.rel (%p343) target = $region28
        $region27: #{tpu_custom_call.1} parent=11 // pred_region
          _
        $region28: #{tpu_custom_call.1} parent=11 // pred_fallthru
          _
        // Predicated region
        $region29: #{tpu_custom_call.1} parent=11 // pred_check
          %p346 = pneg %p176
        $region30: #{tpu_custom_call.1} parent=11 // pred_check_branch
          %348 = sbr.rel (%p346) target = $region32
        $region31: #{tpu_custom_call.1} parent=11 // pred_region
          %s349 = smul.u32 2, %s38
          %351 = vsyncadd [#allocation8], 0
          %s352 = smul.addr %s349, 4
          %s353 = scalar_lea.hbm %s5, %s352
          %s354 = sshll.u32 %s353, 4
          %s355 = int_to_ptr.hbm [resolvable:$true] %s354
          %s356 = sshll.u32 [#allocation7], 4
          %s357 = int_to_ptr.vmem [resolvable:$true] %s356
          %362 = dma.hbm_to_vmem [thread:$0]  %s355, 1024, %s357, [#allocation8], 128, 128, 8
        $region32: #{tpu_custom_call.1} parent=11 // pred_fallthru
          _
        // Predicated region
        $region33: #{tpu_custom_call.1} parent=11 // pred_check
          %p363 = pneg %p202
        $region34: #{tpu_custom_call.1} parent=11 // pred_check_branch
          %365 = sbr.rel (%p363) target = $region36
        $region35: #{tpu_custom_call.1} parent=11 // pred_region
          %s366 = smul.u32 2, %s38
          %p367 = scmp.lt.s32.totalorder %s366, 1
          %s368 = scalar_select %p367, %s366, 1
          %s369 = smul.addr %s368, 2
          %s370 = scalar_lea.vmem %s6, %s369
          %s371 = smul.u32 2, %s38
        $region36: #{tpu_custom_call.1} parent=11 // pred_fallthru
          _
      $region12: #{tpu_custom_call.1} parent=5 // pred_fallthru
        _
      %p372 = scmp.lt.s32.totalorder %s28, 2
      // Predicated region
      $region37: #{tpu_custom_call.1} parent=5 // pred_check
        %p373 = pneg %p372
      $region38: #{tpu_custom_call.1} parent=5 // pred_check_branch
        %375 = sbr.rel (%p373) target = $region40
      $region39: #{tpu_custom_call.1} parent=5 // pred_region
        // Predicated region
        $region41: #{tpu_custom_call.1} parent=39 // pred_check
          %p376 = pneg %p60
        $region42: #{tpu_custom_call.1} parent=39 // pred_check_branch
          %378 = sbr.rel (%p376) target = $region44
        $region43: #{tpu_custom_call.1} parent=39 // pred_region
          %p379 = scmp.lt.s32.totalorder %s35, 1
          %s380 = scalar_select %p379, %s35, 1
          %s381 = smul.addr %s380, 8
          %s382 = scalar_lea.vmem %s0, %s381
        $region44: #{tpu_custom_call.1} parent=39 // pred_fallthru
          _
      $region40: #{tpu_custom_call.1} parent=5 // pred_fallthru
        _
      %p383 = scmp.le.s32.totalorder 1, %s28
      %p384 = scmp.lt.s32.totalorder %s28, 3
      %p385 = pnand %p383, %p384
      %p386 = pneg %p385
      // Predicated region
      $region45: #{tpu_custom_call.1} parent=5 // pred_check
        _
      $region46: #{tpu_custom_call.1} parent=5 // pred_check_branch
        %388 = sbr.rel (%p385) target = $region48
      $region47: #{tpu_custom_call.1} parent=5 // pred_region
        %s389 = ssub.s32 %s28, 1
        // Predicated region
        $region49: #{tpu_custom_call.1} parent=47 // pred_check
          %p390 = pneg %p108
        $region50: #{tpu_custom_call.1} parent=47 // pred_check_branch
          %392 = sbr.rel (%p390) target = $region52
        $region51: #{tpu_custom_call.1} parent=47 // pred_region
          %394 = dma.done [#allocation5], 16
        $region52: #{tpu_custom_call.1} parent=47 // pred_fallthru
          _
        // Predicated region
        $region53: #{tpu_custom_call.1} parent=47 // pred_check
          %p395 = pneg %p176
        $region54: #{tpu_custom_call.1} parent=47 // pred_check_branch
          %397 = sbr.rel (%p395) target = $region56
        $region55: #{tpu_custom_call.1} parent=47 // pred_region
          %399 = dma.done [#allocation8], 1024
        $region56: #{tpu_custom_call.1} parent=47 // pred_fallthru
          _
        %p400 = scmp.lt.s32.totalorder %s37, 1
        %s401 = scalar_select %p400, %s37, 1
        %s402 = smul.addr %s401, 8
        %s403 = scalar_lea.vmem %s0, %s402
        %p404 = pneg %p66
        %p405 = pneg %p63
        %p406 = pneg %p87
        %p407 = pneg %p84
        %p408 = pneg %p108
        %p409 = pneg %p105
        %p410 = pneg %p129
        %p411 = pneg %p126
        %p412 = pneg %p150
        %p413 = pneg %p147
        %p414 = pneg %p176
        %p415 = pneg %p173
        %s416 = smul.u32 2, %s38
        %p417 = scmp.lt.s32.totalorder %s416, 1
        %s418 = scalar_select %p417, %s416, 1
        %s419 = smul.addr %s418, 2
        %s420 = scalar_lea.vmem %s6, %s419
        %p421 = pneg %p202
        %p422 = pneg %p199
        %p423 = pneg %p228
        %p424 = pneg %p225
        %s425 = sand.u32 %s215, 1
        %s426 = scalar_lea.sflag [#allocation6], %s425
        %s427 = sand.u32 %s215, 1
        %s428 = smul.addr %s427, 8
        %s429 = scalar_lea.vmem [#allocation9], %s428
        %p430 = pneg %p254
        %p431 = pneg %p251
        %s432 = sand.u32 %s33, 1
        %s433 = scalar_lea.sflag [#allocation11], %s432
        %s434 = sand.u32 %s241, 1
        %s435 = smul.addr %s434, 8
        %s436 = scalar_lea.vmem [#allocation10], %s435
        %p437 = pneg %p282
        %p438 = pneg %p279
        %s439 = sand.u32 %s33, 1
        %s440 = scalar_lea.sflag [#allocation11], %s439
        %s441 = sand.u32 %s269, 1
        %s442 = smul.addr %s441, 32
        %s443 = scalar_lea.vmem [#allocation12], %s442
        %p444 = pneg %p310
        %p445 = pneg %p307
        %s446 = sand.u32 %s297, 1
        %s447 = scalar_lea.sflag [#allocation14], %s446
        %s448 = sand.u32 %s297, 1
        %s449 = smul.addr %s448, 128
        %s450 = scalar_lea.vmem [#allocation13], %s449
        %p451 = scmp.lt.s32.totalorder %s37, 1
        %s452 = scalar_select %p451, %s37, 1
        %s453 = smul.addr %s452, 8
        %s454 = scalar_lea.vmem %s0, %s453
        %s455 = smul.u32 2, %s38
        %s456 = smul.u32 2, %s38
        %p457 = scmp.lt.s32.totalorder %s456, 1
        %s458 = scalar_select %p457, %s456, 1
        %s459 = smul.addr %s458, 2
        %s460 = scalar_lea.vmem %s6, %s459
        %s461 = smul.u32 2, %s38
        %s462 = smul.u32 8, %s37
        %s463 = smul.u32 2, %s38
        %s464 = smul.u32 8, %s37
        %s465 = smul.u32 2, %s38
        %p467 = scmp.eq.s32.totalorder %s38, 0
        // Predicated region
        $region57: #{tpu_custom_call.1} parent=47 // pred_check
          %p468 = pneg %p467
        $region58: #{tpu_custom_call.1} parent=47 // pred_check_branch
          %470 = sbr.rel (%p468) target = $region60
        $region59: #{tpu_custom_call.1} parent=47 // pred_region
          %v471 = vld [vmem:[%s454] sm:$0xff]
          %v472 = vpack.c.bf16 %v471, %v471
          %v473 = vld [vmem:[%s1] sm:$0x3]
          %v474 = vld [vmem:[#allocation4] sm:$0x1]
          %v476 = vperm.slane %v474, 0
          %vm478 = vcmask 23552
          %v480 = vsel %vm478, %v472, 0
          %vm482 = vcmask 1040384
          %vm483 = vcmask 1041408
          %v484 = vsel %vm482, 4294967295, 65535
          %v485 = vsel %vm483, %v484, 0
          %v487 = vand.u32 %v473, %v485
          %489 = vmatpush.bf16.msra.mxu0 0
          %490 = vmatpush.bf16.msra.mxu0 0
          %491 = vmatpush.bf16.msra.mxu0 0
          %492 = vmatpush.bf16.msra.mxu0 0
          %493 = vmatpush.bf16.msra.mxu0 0
          %494 = vmatpush.bf16.msra.mxu0 0
          %495 = vmatpush.bf16.msra.mxu0 0
          %496 = vmatpush.bf16.msra.mxu0 %v487
          %497 = vmatmul.bf16.gmra.mxu0 %v480
          %v498 = vpop.f32.mrf.mxu0
          %v499 = vadd.f32 %v476, %v498
          %v500 = vpop.f32.mrf.mxu0
          %501 = vdwg.mxu0
          %vm502 = vcmask 261120
          %503 = vst.msk [vmem:[%s429] sm:$0xff] %vm502, %v499
          %v504 = vpack.c.bf16 %v499, %v499
          %vm505 = vcmask 257024
          %506 = vst.msk [vmem:[#allocation2] sm:$0xf] %vm505, %v504
          %v507 = vld [vmem:[%s3] sm:$0xf]
          %v508 = vld [vmem:[%s3 + $0x4] sm:$0xf]
          %v509 = vld [vmem:[%s3 + $0x8] sm:$0xf]
          %v510 = vld [vmem:[%s3 + $0xc] sm:$0xf]
          %v511 = vld [vmem:[%s4] sm:$0x1]
          %v513 = vperm.slane %v511, 0
          %v519 = vunpack.c.l.b16 %v507
          %v520 = vunpack.c.l.b16 %v508
          %v521 = vunpack.c.l.b16 %v509
          %v522 = vunpack.c.l.b16 %v510
          %v523 = vpack.c.b16 %v520, %v519
          %v524 = vpack.c.b16 %v522, %v521
          %v528 = vsel %vm502, %v504, 0
          %530 = vmatpush.bf16.msra.mxu0 0
          %531 = vmatpush.bf16.msra.mxu0 0
          %532 = vmatpush.bf16.msra.mxu0 0
          %533 = vmatpush.bf16.msra.mxu0 0
          %534 = vmatpush.bf16.msra.mxu0 0
          %535 = vmatpush.bf16.msra.mxu0 0
          %536 = vmatpush.bf16.msra.mxu0 %v524
          %537 = vmatpush.bf16.msra.mxu0 %v523
          %538 = vmatmul.bf16.gmra.mxu0 %v528
          %v539 = vpop.f32.mrf.mxu0
          %v540 = vadd.f32 %v513, %v539
          %v541 = vpop.f32.mrf.mxu0
          %542 = vdwg.mxu0
          %543 = vst.msk [vmem:[%s436] sm:$0xff] %vm502, %v540
          %545 = vrot.lane.b32.xlu0 %v540, 96
          %v546 = vpop.permute.xlu0 %545
          %vm548 = vcmask 130048
          %549 = vst.msk [vmem:[#allocation3] sm:$0xff] %vm548, %v546
        $region60: #{tpu_custom_call.1} parent=47 // pred_fallthru
          _
        %v550 = vld [vmem:[#allocation2] sm:$0xf]
        %v551 = vld [vmem:[#allocation7] sm:$0xff]
        %v552 = vld [vmem:[#allocation7 + $0x8] sm:$0xff]
        %v553 = vld [vmem:[#allocation7 + $0x10] sm:$0xff]
        %v554 = vld [vmem:[#allocation7 + $0x18] sm:$0xff]
        %v555 = vld [vmem:[%s460] ss:$2 sm:$0x3]
        %v557 = vperm.slane %v555, 0
        %v558 = vperm.slane %v555, 1
        %v565 = vunpack.c.l.b16 %v551
        %v566 = vunpack.c.h.b16 %v551
        %v567 = vunpack.c.l.b16 %v552
        %v568 = vunpack.c.h.b16 %v552
        %v569 = vunpack.c.l.b16 %v553
        %v570 = vunpack.c.h.b16 %v553
        %v571 = vunpack.c.l.b16 %v554
        %v572 = vunpack.c.h.b16 %v554
        %v573 = vpack.c.b16 %v567, %v565
        %v574 = vpack.c.b16 %v568, %v566
        %v575 = vpack.c.b16 %v571, %v569
        %v576 = vpack.c.b16 %v572, %v570
        %vm581 = vcmask 261120
        %v583 = vsel %vm581, %v550, 0
        %585 = vmatpush.bf16.msra.mxu0 0
        %586 = vmatpush.bf16.msra.mxu0 0
        %587 = vmatpush.bf16.msra.mxu0 0
        %588 = vmatpush.bf16.msra.mxu0 0
        %589 = vmatpush.bf16.msra.mxu0 0
        %590 = vmatpush.bf16.msra.mxu0 0
        %591 = vmatpush.bf16.msra.mxu0 %v575
        %592 = vmatpush.bf16.msra.mxu0 %v573
        %593 = vmatmul.bf16.gmra.mxu0 %v583
        %v594 = vpop.f32.mrf.mxu0
        %v595 = vadd.f32 %v557, %v594
        %v596 = vpop.f32.mrf.mxu0
        %597 = vdwg.mxu0
        %598 = vmatpush.bf16.msra.mxu0 0
        %599 = vmatpush.bf16.msra.mxu0 0
        %600 = vmatpush.bf16.msra.mxu0 0
        %601 = vmatpush.bf16.msra.mxu0 0
        %602 = vmatpush.bf16.msra.mxu0 0
        %603 = vmatpush.bf16.msra.mxu0 0
        %604 = vmatpush.bf16.msra.mxu0 %v576
        %605 = vmatpush.bf16.msra.mxu0 %v574
        %606 = vmatmul.bf16.gmra.mxu0 %v583
        %v607 = vpop.f32.mrf.mxu0
        %v608 = vadd.f32 %v558, %v607
        %v609 = vpop.f32.mrf.mxu0
        %610 = vdwg.mxu0
        %s611 = scalar_lea.vmem [#allocation7], 32
        %v612 = vld [vmem:[%s611] sm:$0xff]
        %v613 = vld [vmem:[%s611 + $0x8] sm:$0xff]
        %v614 = vld [vmem:[%s611 + $0x10] sm:$0xff]
        %v615 = vld [vmem:[%s611 + $0x18] sm:$0xff]
        %s616 = scalar_lea.vmem %s460, 1
        %v617 = vld [vmem:[%s616] ss:$2 sm:$0x3]
        %v619 = vperm.slane %v617, 0
        %v620 = vperm.slane %v617, 1
        %v627 = vunpack.c.l.b16 %v612
        %v628 = vunpack.c.h.b16 %v612
        %v629 = vunpack.c.l.b16 %v613
        %v630 = vunpack.c.h.b16 %v613
        %v631 = vunpack.c.l.b16 %v614
        %v632 = vunpack.c.h.b16 %v614
        %v633 = vunpack.c.l.b16 %v615
        %v634 = vunpack.c.h.b16 %v615
        %v635 = vpack.c.b16 %v629, %v627
        %v636 = vpack.c.b16 %v630, %v628
        %v637 = vpack.c.b16 %v633, %v631
        %v638 = vpack.c.b16 %v634, %v632
        %643 = vmatpush.bf16.msra.mxu0 0
        %644 = vmatpush.bf16.msra.mxu0 0
        %645 = vmatpush.bf16.msra.mxu0 0
        %646 = vmatpush.bf16.msra.mxu0 0
        %647 = vmatpush.bf16.msra.mxu0 0
        %648 = vmatpush.bf16.msra.mxu0 0
        %649 = vmatpush.bf16.msra.mxu0 %v637
        %650 = vmatpush.bf16.msra.mxu0 %v635
        %651 = vmatmul.bf16.gmra.mxu0 %v583
        %v652 = vpop.f32.mrf.mxu0
        %v653 = vadd.f32 %v619, %v652
        %v654 = vpop.f32.mrf.mxu0
        %655 = vdwg.mxu0
        %656 = vmatpush.bf16.msra.mxu0 0
        %657 = vmatpush.bf16.msra.mxu0 0
        %658 = vmatpush.bf16.msra.mxu0 0
        %659 = vmatpush.bf16.msra.mxu0 0
        %660 = vmatpush.bf16.msra.mxu0 0
        %661 = vmatpush.bf16.msra.mxu0 0
        %662 = vmatpush.bf16.msra.mxu0 %v638
        %663 = vmatpush.bf16.msra.mxu0 %v636
        %664 = vmatmul.bf16.gmra.mxu0 %v583
        %v665 = vpop.f32.mrf.mxu0
        %v666 = vadd.f32 %v620, %v665
        %v667 = vpop.f32.mrf.mxu0
        %668 = vdwg.mxu0
        %v669 = vmax.f32 %v595, %v653
        %v670 = vmax.f32 %v608, %v666
        %v671 = vsub.f32 %v595, %v669
        %v672 = vsub.f32 %v608, %v670
        %v673 = vmul.f32 %v671, 1.442695
        %v674 = vpow.pop %v673
        %v675 = vmul.f32 %v672, 1.442695
        %v676 = vpow.pop %v675
        %v677 = vsub.f32 %v653, %v669
        %v678 = vsub.f32 %v666, %v670
        %v679 = vmul.f32 %v677, 1.442695
        %v680 = vpow.pop %v679
        %v681 = vmul.f32 %v678, 1.442695
        %v682 = vpow.pop %v681
        %v683 = vadd.f32 %v674, %v680
        %v684 = vadd.f32 %v676, %v682
        %v685 = vrcp.pop %v683
        %v686 = vmul.f32 %v683, %v685
        %v687 = vsub.f32 1.0, %v686
        %v688 = vmul.f32 %v685, %v687
        %v689 = vadd.f32 %v685, %v688
        %vm690 = vweird.f32 %v683
        %vm691 = vweird.f32 %v685
        %vm692 = vmor %vm690, %vm691
        %v693 = vsel %vm692, %v685, %v689
        %v694 = vand.u32 2147483647, %v683
        %vm695 = vcmp.eq.f32.partialorder %v694, 8.507059e+37
        %v696 = vand.u32 %v683, 2147483648
        %v697 = vor.u32 1.1754944e-38, %v696
        %v698 = vsel %vm695, %v697, %v693
        %v699 = vrcp.pop %v684
        %v700 = vmul.f32 %v684, %v699
        %v701 = vsub.f32 1.0, %v700
        %v702 = vmul.f32 %v699, %v701
        %v703 = vadd.f32 %v699, %v702
        %vm704 = vweird.f32 %v684
        %vm705 = vweird.f32 %v699
        %vm706 = vmor %vm704, %vm705
        %v707 = vsel %vm706, %v699, %v703
        %v708 = vand.u32 2147483647, %v684
        %vm709 = vcmp.eq.f32.partialorder %v708, 8.507059e+37
        %v710 = vand.u32 %v684, 2147483648
        %v711 = vor.u32 1.1754944e-38, %v710
        %v712 = vsel %vm709, %v711, %v707
        %v713 = vmul.f32 %v674, %v698
        %v714 = vmul.f32 %v676, %v712
        %v715 = vmul.f32 %v680, %v698
        %v716 = vmul.f32 %v682, %v712
        %v719 = vrot.slane %v714, 7
        %vm720 = vcmask 1040384
        %v721 = vsel %vm720, %v713, %v719
        %vm722 = vcmask 1041409
        %v723 = vsel %vm722, %v713, %v719
        %v724 = vrot.slane %v723, 1
        %vm725 = vcmask 1042434
        %v726 = vsel %vm725, %v713, %v719
        %v727 = vrot.slane %v726, 2
        %vm728 = vcmask 1043459
        %v729 = vsel %vm728, %v713, %v719
        %v730 = vrot.slane %v729, 3
        %vm731 = vcmask 1044484
        %v732 = vsel %vm731, %v713, %v719
        %v733 = vrot.slane %v732, 4
        %vm734 = vcmask 1045509
        %v735 = vsel %vm734, %v713, %v719
        %v736 = vrot.slane %v735, 5
        %vm737 = vcmask 1046534
        %v738 = vsel %vm737, %v713, %v719
        %v739 = vrot.slane %v738, 6
        %vm740 = vcmask 1046528
        %v741 = vsel %vm740, %v719, %v713
        %v742 = vrot.slane %v741, 7
        %v751 = vlaneseq
        %vm752 = vcmp.ge.s32.totalorder %v751, 0
        %vm753 = vcmp.lt.s32.totalorder %v751, 256
        %vm754 = vmand %vm752, %vm753
        %755 = vst.msk [vmem:[%s443] ss:$2 sm:$0x3] %vm754, %v721
        %s756 = scalar_lea.vmem %s443, 4 [#allocation12]
        %757 = vst.msk [vmem:[%s756] ss:$2 sm:$0x3] %vm754, %v724
        %s758 = scalar_lea.vmem %s443, 8 [#allocation12]
        %759 = vst.msk [vmem:[%s758] ss:$2 sm:$0x3] %vm754, %v727
        %s760 = scalar_lea.vmem %s443, 12 [#allocation12]
        %761 = vst.msk [vmem:[%s760] ss:$2 sm:$0x3] %vm754, %v730
        %s762 = scalar_lea.vmem %s443, 16 [#allocation12]
        %763 = vst.msk [vmem:[%s762] ss:$2 sm:$0x3] %vm754, %v733
        %s764 = scalar_lea.vmem %s443, 20 [#allocation12]
        %765 = vst.msk [vmem:[%s764] ss:$2 sm:$0x3] %vm754, %v736
        %s766 = scalar_lea.vmem %s443, 24 [#allocation12]
        %767 = vst.msk [vmem:[%s766] ss:$2 sm:$0x3] %vm754, %v739
        %s768 = scalar_lea.vmem %s443, 28 [#allocation12]
        %769 = vst.msk [vmem:[%s768] ss:$2 sm:$0x3] %vm754, %v742
        %v772 = vrot.slane %v716, 7
        %v773 = vsel %vm720, %v715, %v772
        %v774 = vsel %vm722, %v715, %v772
        %v775 = vrot.slane %v774, 1
        %v776 = vsel %vm725, %v715, %v772
        %v777 = vrot.slane %v776, 2
        %v778 = vsel %vm728, %v715, %v772
        %v779 = vrot.slane %v778, 3
        %v780 = vsel %vm731, %v715, %v772
        %v781 = vrot.slane %v780, 4
        %v782 = vsel %vm734, %v715, %v772
        %v783 = vrot.slane %v782, 5
        %v784 = vsel %vm737, %v715, %v772
        %v785 = vrot.slane %v784, 6
        %v786 = vsel %vm740, %v772, %v715
        %v787 = vrot.slane %v786, 7
        %s796 = scalar_lea.vmem %s443, 1 [#allocation12]
        %797 = vst.msk [vmem:[%s796] ss:$2 sm:$0x3] %vm754, %v773
        %s798 = scalar_lea.vmem %s443, 5 [#allocation12]
        %799 = vst.msk [vmem:[%s798] ss:$2 sm:$0x3] %vm754, %v775
        %s800 = scalar_lea.vmem %s443, 9 [#allocation12]
        %801 = vst.msk [vmem:[%s800] ss:$2 sm:$0x3] %vm754, %v777
        %s802 = scalar_lea.vmem %s443, 13 [#allocation12]
        %803 = vst.msk [vmem:[%s802] ss:$2 sm:$0x3] %vm754, %v779
        %s804 = scalar_lea.vmem %s443, 17 [#allocation12]
        %805 = vst.msk [vmem:[%s804] ss:$2 sm:$0x3] %vm754, %v781
        %s806 = scalar_lea.vmem %s443, 21 [#allocation12]
        %807 = vst.msk [vmem:[%s806] ss:$2 sm:$0x3] %vm754, %v783
        %s808 = scalar_lea.vmem %s443, 25 [#allocation12]
        %809 = vst.msk [vmem:[%s808] ss:$2 sm:$0x3] %vm754, %v785
        %s810 = scalar_lea.vmem %s443, 29 [#allocation12]
        %811 = vst.msk [vmem:[%s810] ss:$2 sm:$0x3] %vm754, %v787
        %v812 = vld [vmem:[#allocation3] sm:$0xff]
        %814 = vset.pattern.permute.xlu0 0
        %815 = vperm.xlu0 %814, %v812
        %v816 = vpop.permute.xlu0 %815
        %v818 = vmul.f32 %v816, %v713
        %v819 = vmul.f32 %v816, %v714
        %820 = vset.pattern.permute.xlu0 8
        %821 = vperm.xlu0 %820, %v812
        %v822 = vpop.permute.xlu0 %821
        %v824 = vmul.f32 %v822, %v715
        %v825 = vmul.f32 %v822, %v716
        %v826 = vadd.f32 %v818, %v824
        %v827 = vadd.f32 %v819, %v825
        %v830 = vrot.slane %v827, 7
        %v831 = vsel %vm720, %v826, %v830
        %v832 = vsel %vm722, %v826, %v830
        %v833 = vrot.slane %v832, 1
        %v834 = vsel %vm725, %v826, %v830
        %v835 = vrot.slane %v834, 2
        %v836 = vsel %vm728, %v826, %v830
        %v837 = vrot.slane %v836, 3
        %v838 = vsel %vm731, %v826, %v830
        %v839 = vrot.slane %v838, 4
        %v840 = vsel %vm734, %v826, %v830
        %v841 = vrot.slane %v840, 5
        %v842 = vsel %vm737, %v826, %v830
        %v843 = vrot.slane %v842, 6
        %v844 = vsel %vm740, %v830, %v826
        %v845 = vrot.slane %v844, 7
        %854 = vst.msk [vmem:[%s450] ss:$8 sm:$0x3] %vm754, %v831
        %855 = vst.msk [vmem:[%s450] ss:$8 sm:$0x0] %vm754, %v831
        %s856 = scalar_lea.vmem %s450, 16 [#allocation13]
        %857 = vst.msk [vmem:[%s856] ss:$8 sm:$0x3] %vm754, %v833
        %858 = vst.msk [vmem:[%s856] ss:$8 sm:$0x0] %vm754, %v833
        %s859 = scalar_lea.vmem %s450, 32 [#allocation13]
        %860 = vst.msk [vmem:[%s859] ss:$8 sm:$0x3] %vm754, %v835
        %861 = vst.msk [vmem:[%s859] ss:$8 sm:$0x0] %vm754, %v835
        %s862 = scalar_lea.vmem %s450, 48 [#allocation13]
        %863 = vst.msk [vmem:[%s862] ss:$8 sm:$0x3] %vm754, %v837
        %864 = vst.msk [vmem:[%s862] ss:$8 sm:$0x0] %vm754, %v837
        %s865 = scalar_lea.vmem %s450, 64 [#allocation13]
        %866 = vst.msk [vmem:[%s865] ss:$8 sm:$0x3] %vm754, %v839
        %867 = vst.msk [vmem:[%s865] ss:$8 sm:$0x0] %vm754, %v839
        %s868 = scalar_lea.vmem %s450, 80 [#allocation13]
        %869 = vst.msk [vmem:[%s868] ss:$8 sm:$0x3] %vm754, %v841
        %870 = vst.msk [vmem:[%s868] ss:$8 sm:$0x0] %vm754, %v841
        %s871 = scalar_lea.vmem %s450, 96 [#allocation13]
        %872 = vst.msk [vmem:[%s871] ss:$8 sm:$0x3] %vm754, %v843
        %873 = vst.msk [vmem:[%s871] ss:$8 sm:$0x0] %vm754, %v843
        %s874 = scalar_lea.vmem %s450, 112 [#allocation13]
        %875 = vst.msk [vmem:[%s874] ss:$8 sm:$0x3] %vm754, %v845
        %876 = vst.msk [vmem:[%s874] ss:$8 sm:$0x0] %vm754, %v845
        %877 = vset.pattern.permute.xlu0 1
        %878 = vperm.xlu0 %877, %v812
        %v879 = vpop.permute.xlu0 %878
        %v881 = vmul.f32 %v879, %v713
        %v882 = vmul.f32 %v879, %v714
        %883 = vset.pattern.permute.xlu0 9
        %884 = vperm.xlu0 %883, %v812
        %v885 = vpop.permute.xlu0 %884
        %v887 = vmul.f32 %v885, %v715
        %v888 = vmul.f32 %v885, %v716
        %v889 = vadd.f32 %v881, %v887
        %v890 = vadd.f32 %v882, %v888
        %v893 = vrot.slane %v890, 7
        %v894 = vsel %vm720, %v889, %v893
        %v895 = vsel %vm722, %v889, %v893
        %v896 = vrot.slane %v895, 1
        %v897 = vsel %vm725, %v889, %v893
        %v898 = vrot.slane %v897, 2
        %v899 = vsel %vm728, %v889, %v893
        %v900 = vrot.slane %v899, 3
        %v901 = vsel %vm731, %v889, %v893
        %v902 = vrot.slane %v901, 4
        %v903 = vsel %vm734, %v889, %v893
        %v904 = vrot.slane %v903, 5
        %v905 = vsel %vm737, %v889, %v893
        %v906 = vrot.slane %v905, 6
        %v907 = vsel %vm740, %v893, %v889
        %v908 = vrot.slane %v907, 7
        %s917 = scalar_lea.vmem %s450, 1 [#allocation13]
        %918 = vst.msk [vmem:[%s917] ss:$8 sm:$0x3] %vm754, %v894
        %919 = vst.msk [vmem:[%s917] ss:$8 sm:$0x0] %vm754, %v894
        %s920 = scalar_lea.vmem %s450, 17 [#allocation13]
        %921 = vst.msk [vmem:[%s920] ss:$8 sm:$0x3] %vm754, %v896
        %922 = vst.msk [vmem:[%s920] ss:$8 sm:$0x0] %vm754, %v896
        %s923 = scalar_lea.vmem %s450, 33 [#allocation13]
        %924 = vst.msk [vmem:[%s923] ss:$8 sm:$0x3] %vm754, %v898
        %925 = vst.msk [vmem:[%s923] ss:$8 sm:$0x0] %vm754, %v898
        %s926 = scalar_lea.vmem %s450, 49 [#allocation13]
        %927 = vst.msk [vmem:[%s926] ss:$8 sm:$0x3] %vm754, %v900
        %928 = vst.msk [vmem:[%s926] ss:$8 sm:$0x0] %vm754, %v900
        %s929 = scalar_lea.vmem %s450, 65 [#allocation13]
        %930 = vst.msk [vmem:[%s929] ss:$8 sm:$0x3] %vm754, %v902
        %931 = vst.msk [vmem:[%s929] ss:$8 sm:$0x0] %vm754, %v902
        %s932 = scalar_lea.vmem %s450, 81 [#allocation13]
        %933 = vst.msk [vmem:[%s932] ss:$8 sm:$0x3] %vm754, %v904
        %934 = vst.msk [vmem:[%s932] ss:$8 sm:$0x0] %vm754, %v904
        %s935 = scalar_lea.vmem %s450, 97 [#allocation13]
        %936 = vst.msk [vmem:[%s935] ss:$8 sm:$0x3] %vm754, %v906
        %937 = vst.msk [vmem:[%s935] ss:$8 sm:$0x0] %vm754, %v906
        %s938 = scalar_lea.vmem %s450, 113 [#allocation13]
        %939 = vst.msk [vmem:[%s938] ss:$8 sm:$0x3] %vm754, %v908
        %940 = vst.msk [vmem:[%s938] ss:$8 sm:$0x0] %vm754, %v908
        %941 = vset.pattern.permute.xlu0 2
        %942 = vperm.xlu0 %941, %v812
        %v943 = vpop.permute.xlu0 %942
        %v945 = vmul.f32 %v943, %v713
        %v946 = vmul.f32 %v943, %v714
        %947 = vset.pattern.permute.xlu0 10
        %948 = vperm.xlu0 %947, %v812
        %v949 = vpop.permute.xlu0 %948
        %v951 = vmul.f32 %v949, %v715
        %v952 = vmul.f32 %v949, %v716
        %v953 = vadd.f32 %v945, %v951
        %v954 = vadd.f32 %v946, %v952
        %v957 = vrot.slane %v954, 7
        %v958 = vsel %vm720, %v953, %v957
        %v959 = vsel %vm722, %v953, %v957
        %v960 = vrot.slane %v959, 1
        %v961 = vsel %vm725, %v953, %v957
        %v962 = vrot.slane %v961, 2
        %v963 = vsel %vm728, %v953, %v957
        %v964 = vrot.slane %v963, 3
        %v965 = vsel %vm731, %v953, %v957
        %v966 = vrot.slane %v965, 4
        %v967 = vsel %vm734, %v953, %v957
        %v968 = vrot.slane %v967, 5
        %v969 = vsel %vm737, %v953, %v957
        %v970 = vrot.slane %v969, 6
        %v971 = vsel %vm740, %v957, %v953
        %v972 = vrot.slane %v971, 7
        %s981 = scalar_lea.vmem %s450, 2 [#allocation13]
        %982 = vst.msk [vmem:[%s981] ss:$8 sm:$0x3] %vm754, %v958
        %983 = vst.msk [vmem:[%s981] ss:$8 sm:$0x0] %vm754, %v958
        %s984 = scalar_lea.vmem %s450, 18 [#allocation13]
        %985 = vst.msk [vmem:[%s984] ss:$8 sm:$0x3] %vm754, %v960
        %986 = vst.msk [vmem:[%s984] ss:$8 sm:$0x0] %vm754, %v960
        %s987 = scalar_lea.vmem %s450, 34 [#allocation13]
        %988 = vst.msk [vmem:[%s987] ss:$8 sm:$0x3] %vm754, %v962
        %989 = vst.msk [vmem:[%s987] ss:$8 sm:$0x0] %vm754, %v962
        %s990 = scalar_lea.vmem %s450, 50 [#allocation13]
        %991 = vst.msk [vmem:[%s990] ss:$8 sm:$0x3] %vm754, %v964
        %992 = vst.msk [vmem:[%s990] ss:$8 sm:$0x0] %vm754, %v964
        %s993 = scalar_lea.vmem %s450, 66 [#allocation13]
        %994 = vst.msk [vmem:[%s993] ss:$8 sm:$0x3] %vm754, %v966
        %995 = vst.msk [vmem:[%s993] ss:$8 sm:$0x0] %vm754, %v966
        %s996 = scalar_lea.vmem %s450, 82 [#allocation13]
        %997 = vst.msk [vmem:[%s996] ss:$8 sm:$0x3] %vm754, %v968
        %998 = vst.msk [vmem:[%s996] ss:$8 sm:$0x0] %vm754, %v968
        %s999 = scalar_lea.vmem %s450, 98 [#allocation13]
        %1000 = vst.msk [vmem:[%s999] ss:$8 sm:$0x3] %vm754, %v970
        %1001 = vst.msk [vmem:[%s999] ss:$8 sm:$0x0] %vm754, %v970
        %s1002 = scalar_lea.vmem %s450, 114 [#allocation13]
        %1003 = vst.msk [vmem:[%s1002] ss:$8 sm:$0x3] %vm754, %v972
        %1004 = vst.msk [vmem:[%s1002] ss:$8 sm:$0x0] %vm754, %v972
        %1005 = vset.pattern.permute.xlu0 3
        %1006 = vperm.xlu0 %1005, %v812
        %v1007 = vpop.permute.xlu0 %1006
        %v1009 = vmul.f32 %v1007, %v713
        %v1010 = vmul.f32 %v1007, %v714
        %1011 = vset.pattern.permute.xlu0 11
        %1012 = vperm.xlu0 %1011, %v812
        %v1013 = vpop.permute.xlu0 %1012
        %v1015 = vmul.f32 %v1013, %v715
        %v1016 = vmul.f32 %v1013, %v716
        %v1017 = vadd.f32 %v1009, %v1015
        %v1018 = vadd.f32 %v1010, %v1016
        %v1021 = vrot.slane %v1018, 7
        %v1022 = vsel %vm720, %v1017, %v1021
        %v1023 = vsel %vm722, %v1017, %v1021
        %v1024 = vrot.slane %v1023, 1
        %v1025 = vsel %vm725, %v1017, %v1021
        %v1026 = vrot.slane %v1025, 2
        %v1027 = vsel %vm728, %v1017, %v1021
        %v1028 = vrot.slane %v1027, 3
        %v1029 = vsel %vm731, %v1017, %v1021
        %v1030 = vrot.slane %v1029, 4
        %v1031 = vsel %vm734, %v1017, %v1021
        %v1032 = vrot.slane %v1031, 5
        %v1033 = vsel %vm737, %v1017, %v1021
        %v1034 = vrot.slane %v1033, 6
        %v1035 = vsel %vm740, %v1021, %v1017
        %v1036 = vrot.slane %v1035, 7
        %s1045 = scalar_lea.vmem %s450, 3 [#allocation13]
        %1046 = vst.msk [vmem:[%s1045] ss:$8 sm:$0x3] %vm754, %v1022
        %1047 = vst.msk [vmem:[%s1045] ss:$8 sm:$0x0] %vm754, %v1022
        %s1048 = scalar_lea.vmem %s450, 19 [#allocation13]
        %1049 = vst.msk [vmem:[%s1048] ss:$8 sm:$0x3] %vm754, %v1024
        %1050 = vst.msk [vmem:[%s1048] ss:$8 sm:$0x0] %vm754, %v1024
        %s1051 = scalar_lea.vmem %s450, 35 [#allocation13]
        %1052 = vst.msk [vmem:[%s1051] ss:$8 sm:$0x3] %vm754, %v1026
        %1053 = vst.msk [vmem:[%s1051] ss:$8 sm:$0x0] %vm754, %v1026
        %s1054 = scalar_lea.vmem %s450, 51 [#allocation13]
        %1055 = vst.msk [vmem:[%s1054] ss:$8 sm:$0x3] %vm754, %v1028
        %1056 = vst.msk [vmem:[%s1054] ss:$8 sm:$0x0] %vm754, %v1028
        %s1057 = scalar_lea.vmem %s450, 67 [#allocation13]
        %1058 = vst.msk [vmem:[%s1057] ss:$8 sm:$0x3] %vm754, %v1030
        %1059 = vst.msk [vmem:[%s1057] ss:$8 sm:$0x0] %vm754, %v1030
        %s1060 = scalar_lea.vmem %s450, 83 [#allocation13]
        %1061 = vst.msk [vmem:[%s1060] ss:$8 sm:$0x3] %vm754, %v1032
        %1062 = vst.msk [vmem:[%s1060] ss:$8 sm:$0x0] %vm754, %v1032
        %s1063 = scalar_lea.vmem %s450, 99 [#allocation13]
        %1064 = vst.msk [vmem:[%s1063] ss:$8 sm:$0x3] %vm754, %v1034
        %1065 = vst.msk [vmem:[%s1063] ss:$8 sm:$0x0] %vm754, %v1034
        %s1066 = scalar_lea.vmem %s450, 115 [#allocation13]
        %1067 = vst.msk [vmem:[%s1066] ss:$8 sm:$0x3] %vm754, %v1036
        %1068 = vst.msk [vmem:[%s1066] ss:$8 sm:$0x0] %vm754, %v1036
        %1069 = vset.pattern.permute.xlu0 4
        %1070 = vperm.xlu0 %1069, %v812
        %v1071 = vpop.permute.xlu0 %1070
        %v1073 = vmul.f32 %v1071, %v713
        %v1074 = vmul.f32 %v1071, %v714
        %1075 = vset.pattern.permute.xlu0 12
        %1076 = vperm.xlu0 %1075, %v812
        %v1077 = vpop.permute.xlu0 %1076
        %v1079 = vmul.f32 %v1077, %v715
        %v1080 = vmul.f32 %v1077, %v716
        %v1081 = vadd.f32 %v1073, %v1079
        %v1082 = vadd.f32 %v1074, %v1080
        %v1085 = vrot.slane %v1082, 7
        %v1086 = vsel %vm720, %v1081, %v1085
        %v1087 = vsel %vm722, %v1081, %v1085
        %v1088 = vrot.slane %v1087, 1
        %v1089 = vsel %vm725, %v1081, %v1085
        %v1090 = vrot.slane %v1089, 2
        %v1091 = vsel %vm728, %v1081, %v1085
        %v1092 = vrot.slane %v1091, 3
        %v1093 = vsel %vm731, %v1081, %v1085
        %v1094 = vrot.slane %v1093, 4
        %v1095 = vsel %vm734, %v1081, %v1085
        %v1096 = vrot.slane %v1095, 5
        %v1097 = vsel %vm737, %v1081, %v1085
        %v1098 = vrot.slane %v1097, 6
        %v1099 = vsel %vm740, %v1085, %v1081
        %v1100 = vrot.slane %v1099, 7
        %s1109 = scalar_lea.vmem %s450, 4 [#allocation13]
        %1110 = vst.msk [vmem:[%s1109] ss:$8 sm:$0x3] %vm754, %v1086
        %1111 = vst.msk [vmem:[%s1109] ss:$8 sm:$0x0] %vm754, %v1086
        %s1112 = scalar_lea.vmem %s450, 20 [#allocation13]
        %1113 = vst.msk [vmem:[%s1112] ss:$8 sm:$0x3] %vm754, %v1088
        %1114 = vst.msk [vmem:[%s1112] ss:$8 sm:$0x0] %vm754, %v1088
        %s1115 = scalar_lea.vmem %s450, 36 [#allocation13]
        %1116 = vst.msk [vmem:[%s1115] ss:$8 sm:$0x3] %vm754, %v1090
        %1117 = vst.msk [vmem:[%s1115] ss:$8 sm:$0x0] %vm754, %v1090
        %s1118 = scalar_lea.vmem %s450, 52 [#allocation13]
        %1119 = vst.msk [vmem:[%s1118] ss:$8 sm:$0x3] %vm754, %v1092
        %1120 = vst.msk [vmem:[%s1118] ss:$8 sm:$0x0] %vm754, %v1092
        %s1121 = scalar_lea.vmem %s450, 68 [#allocation13]
        %1122 = vst.msk [vmem:[%s1121] ss:$8 sm:$0x3] %vm754, %v1094
        %1123 = vst.msk [vmem:[%s1121] ss:$8 sm:$0x0] %vm754, %v1094
        %s1124 = scalar_lea.vmem %s450, 84 [#allocation13]
        %1125 = vst.msk [vmem:[%s1124] ss:$8 sm:$0x3] %vm754, %v1096
        %1126 = vst.msk [vmem:[%s1124] ss:$8 sm:$0x0] %vm754, %v1096
        %s1127 = scalar_lea.vmem %s450, 100 [#allocation13]
        %1128 = vst.msk [vmem:[%s1127] ss:$8 sm:$0x3] %vm754, %v1098
        %1129 = vst.msk [vmem:[%s1127] ss:$8 sm:$0x0] %vm754, %v1098
        %s1130 = scalar_lea.vmem %s450, 116 [#allocation13]
        %1131 = vst.msk [vmem:[%s1130] ss:$8 sm:$0x3] %vm754, %v1100
        %1132 = vst.msk [vmem:[%s1130] ss:$8 sm:$0x0] %vm754, %v1100
        %1133 = vset.pattern.permute.xlu0 5
        %1134 = vperm.xlu0 %1133, %v812
        %v1135 = vpop.permute.xlu0 %1134
        %v1137 = vmul.f32 %v1135, %v713
        %v1138 = vmul.f32 %v1135, %v714
        %1139 = vset.pattern.permute.xlu0 13
        %1140 = vperm.xlu0 %1139, %v812
        %v1141 = vpop.permute.xlu0 %1140
        %v1143 = vmul.f32 %v1141, %v715
        %v1144 = vmul.f32 %v1141, %v716
        %v1145 = vadd.f32 %v1137, %v1143
        %v1146 = vadd.f32 %v1138, %v1144
        %v1149 = vrot.slane %v1146, 7
        %v1150 = vsel %vm720, %v1145, %v1149
        %v1151 = vsel %vm722, %v1145, %v1149
        %v1152 = vrot.slane %v1151, 1
        %v1153 = vsel %vm725, %v1145, %v1149
        %v1154 = vrot.slane %v1153, 2
        %v1155 = vsel %vm728, %v1145, %v1149
        %v1156 = vrot.slane %v1155, 3
        %v1157 = vsel %vm731, %v1145, %v1149
        %v1158 = vrot.slane %v1157, 4
        %v1159 = vsel %vm734, %v1145, %v1149
        %v1160 = vrot.slane %v1159, 5
        %v1161 = vsel %vm737, %v1145, %v1149
        %v1162 = vrot.slane %v1161, 6
        %v1163 = vsel %vm740, %v1149, %v1145
        %v1164 = vrot.slane %v1163, 7
        %s1173 = scalar_lea.vmem %s450, 5 [#allocation13]
        %1174 = vst.msk [vmem:[%s1173] ss:$8 sm:$0x3] %vm754, %v1150
        %1175 = vst.msk [vmem:[%s1173] ss:$8 sm:$0x0] %vm754, %v1150
        %s1176 = scalar_lea.vmem %s450, 21 [#allocation13]
        %1177 = vst.msk [vmem:[%s1176] ss:$8 sm:$0x3] %vm754, %v1152
        %1178 = vst.msk [vmem:[%s1176] ss:$8 sm:$0x0] %vm754, %v1152
        %s1179 = scalar_lea.vmem %s450, 37 [#allocation13]
        %1180 = vst.msk [vmem:[%s1179] ss:$8 sm:$0x3] %vm754, %v1154
        %1181 = vst.msk [vmem:[%s1179] ss:$8 sm:$0x0] %vm754, %v1154
        %s1182 = scalar_lea.vmem %s450, 53 [#allocation13]
        %1183 = vst.msk [vmem:[%s1182] ss:$8 sm:$0x3] %vm754, %v1156
        %1184 = vst.msk [vmem:[%s1182] ss:$8 sm:$0x0] %vm754, %v1156
        %s1185 = scalar_lea.vmem %s450, 69 [#allocation13]
        %1186 = vst.msk [vmem:[%s1185] ss:$8 sm:$0x3] %vm754, %v1158
        %1187 = vst.msk [vmem:[%s1185] ss:$8 sm:$0x0] %vm754, %v1158
        %s1188 = scalar_lea.vmem %s450, 85 [#allocation13]
        %1189 = vst.msk [vmem:[%s1188] ss:$8 sm:$0x3] %vm754, %v1160
        %1190 = vst.msk [vmem:[%s1188] ss:$8 sm:$0x0] %vm754, %v1160
        %s1191 = scalar_lea.vmem %s450, 101 [#allocation13]
        %1192 = vst.msk [vmem:[%s1191] ss:$8 sm:$0x3] %vm754, %v1162
        %1193 = vst.msk [vmem:[%s1191] ss:$8 sm:$0x0] %vm754, %v1162
        %s1194 = scalar_lea.vmem %s450, 117 [#allocation13]
        %1195 = vst.msk [vmem:[%s1194] ss:$8 sm:$0x3] %vm754, %v1164
        %1196 = vst.msk [vmem:[%s1194] ss:$8 sm:$0x0] %vm754, %v1164
        %1197 = vset.pattern.permute.xlu0 6
        %1198 = vperm.xlu0 %1197, %v812
        %v1199 = vpop.permute.xlu0 %1198
        %v1201 = vmul.f32 %v1199, %v713
        %v1202 = vmul.f32 %v1199, %v714
        %1203 = vset.pattern.permute.xlu0 14
        %1204 = vperm.xlu0 %1203, %v812
        %v1205 = vpop.permute.xlu0 %1204
        %v1207 = vmul.f32 %v1205, %v715
        %v1208 = vmul.f32 %v1205, %v716
        %v1209 = vadd.f32 %v1201, %v1207
        %v1210 = vadd.f32 %v1202, %v1208
        %v1213 = vrot.slane %v1210, 7
        %v1214 = vsel %vm720, %v1209, %v1213
        %v1215 = vsel %vm722, %v1209, %v1213
        %v1216 = vrot.slane %v1215, 1
        %v1217 = vsel %vm725, %v1209, %v1213
        %v1218 = vrot.slane %v1217, 2
        %v1219 = vsel %vm728, %v1209, %v1213
        %v1220 = vrot.slane %v1219, 3
        %v1221 = vsel %vm731, %v1209, %v1213
        %v1222 = vrot.slane %v1221, 4
        %v1223 = vsel %vm734, %v1209, %v1213
        %v1224 = vrot.slane %v1223, 5
        %v1225 = vsel %vm737, %v1209, %v1213
        %v1226 = vrot.slane %v1225, 6
        %v1227 = vsel %vm740, %v1213, %v1209
        %v1228 = vrot.slane %v1227, 7
        %s1237 = scalar_lea.vmem %s450, 6 [#allocation13]
        %1238 = vst.msk [vmem:[%s1237] ss:$8 sm:$0x3] %vm754, %v1214
        %1239 = vst.msk [vmem:[%s1237] ss:$8 sm:$0x0] %vm754, %v1214
        %s1240 = scalar_lea.vmem %s450, 22 [#allocation13]
        %1241 = vst.msk [vmem:[%s1240] ss:$8 sm:$0x3] %vm754, %v1216
        %1242 = vst.msk [vmem:[%s1240] ss:$8 sm:$0x0] %vm754, %v1216
        %s1243 = scalar_lea.vmem %s450, 38 [#allocation13]
        %1244 = vst.msk [vmem:[%s1243] ss:$8 sm:$0x3] %vm754, %v1218
        %1245 = vst.msk [vmem:[%s1243] ss:$8 sm:$0x0] %vm754, %v1218
        %s1246 = scalar_lea.vmem %s450, 54 [#allocation13]
        %1247 = vst.msk [vmem:[%s1246] ss:$8 sm:$0x3] %vm754, %v1220
        %1248 = vst.msk [vmem:[%s1246] ss:$8 sm:$0x0] %vm754, %v1220
        %s1249 = scalar_lea.vmem %s450, 70 [#allocation13]
        %1250 = vst.msk [vmem:[%s1249] ss:$8 sm:$0x3] %vm754, %v1222
        %1251 = vst.msk [vmem:[%s1249] ss:$8 sm:$0x0] %vm754, %v1222
        %s1252 = scalar_lea.vmem %s450, 86 [#allocation13]
        %1253 = vst.msk [vmem:[%s1252] ss:$8 sm:$0x3] %vm754, %v1224
        %1254 = vst.msk [vmem:[%s1252] ss:$8 sm:$0x0] %vm754, %v1224
        %s1255 = scalar_lea.vmem %s450, 102 [#allocation13]
        %1256 = vst.msk [vmem:[%s1255] ss:$8 sm:$0x3] %vm754, %v1226
        %1257 = vst.msk [vmem:[%s1255] ss:$8 sm:$0x0] %vm754, %v1226
        %s1258 = scalar_lea.vmem %s450, 118 [#allocation13]
        %1259 = vst.msk [vmem:[%s1258] ss:$8 sm:$0x3] %vm754, %v1228
        %1260 = vst.msk [vmem:[%s1258] ss:$8 sm:$0x0] %vm754, %v1228
        %1261 = vset.pattern.permute.xlu0 7
        %1262 = vperm.xlu0 %1261, %v812
        %v1263 = vpop.permute.xlu0 %1262
        %v1265 = vmul.f32 %v1263, %v713
        %v1266 = vmul.f32 %v1263, %v714
        %1267 = vset.pattern.permute.xlu0 15
        %1268 = vperm.xlu0 %1267, %v812
        %v1269 = vpop.permute.xlu0 %1268
        %v1271 = vmul.f32 %v1269, %v715
        %v1272 = vmul.f32 %v1269, %v716
        %v1273 = vadd.f32 %v1265, %v1271
        %v1274 = vadd.f32 %v1266, %v1272
        %v1277 = vrot.slane %v1274, 7
        %v1278 = vsel %vm720, %v1273, %v1277
        %v1279 = vsel %vm722, %v1273, %v1277
        %v1280 = vrot.slane %v1279, 1
        %v1281 = vsel %vm725, %v1273, %v1277
        %v1282 = vrot.slane %v1281, 2
        %v1283 = vsel %vm728, %v1273, %v1277
        %v1284 = vrot.slane %v1283, 3
        %v1285 = vsel %vm731, %v1273, %v1277
        %v1286 = vrot.slane %v1285, 4
        %v1287 = vsel %vm734, %v1273, %v1277
        %v1288 = vrot.slane %v1287, 5
        %v1289 = vsel %vm737, %v1273, %v1277
        %v1290 = vrot.slane %v1289, 6
        %v1291 = vsel %vm740, %v1277, %v1273
        %v1292 = vrot.slane %v1291, 7
        %s1301 = scalar_lea.vmem %s450, 7 [#allocation13]
        %1302 = vst.msk [vmem:[%s1301] ss:$8 sm:$0x3] %vm754, %v1278
        %1303 = vst.msk [vmem:[%s1301] ss:$8 sm:$0x0] %vm754, %v1278
        %s1304 = scalar_lea.vmem %s450, 23 [#allocation13]
        %1305 = vst.msk [vmem:[%s1304] ss:$8 sm:$0x3] %vm754, %v1280
        %1306 = vst.msk [vmem:[%s1304] ss:$8 sm:$0x0] %vm754, %v1280
        %s1307 = scalar_lea.vmem %s450, 39 [#allocation13]
        %1308 = vst.msk [vmem:[%s1307] ss:$8 sm:$0x3] %vm754, %v1282
        %1309 = vst.msk [vmem:[%s1307] ss:$8 sm:$0x0] %vm754, %v1282
        %s1310 = scalar_lea.vmem %s450, 55 [#allocation13]
        %1311 = vst.msk [vmem:[%s1310] ss:$8 sm:$0x3] %vm754, %v1284
        %1312 = vst.msk [vmem:[%s1310] ss:$8 sm:$0x0] %vm754, %v1284
        %s1313 = scalar_lea.vmem %s450, 71 [#allocation13]
        %1314 = vst.msk [vmem:[%s1313] ss:$8 sm:$0x3] %vm754, %v1286
        %1315 = vst.msk [vmem:[%s1313] ss:$8 sm:$0x0] %vm754, %v1286
        %s1316 = scalar_lea.vmem %s450, 87 [#allocation13]
        %1317 = vst.msk [vmem:[%s1316] ss:$8 sm:$0x3] %vm754, %v1288
        %1318 = vst.msk [vmem:[%s1316] ss:$8 sm:$0x0] %vm754, %v1288
        %s1319 = scalar_lea.vmem %s450, 103 [#allocation13]
        %1320 = vst.msk [vmem:[%s1319] ss:$8 sm:$0x3] %vm754, %v1290
        %1321 = vst.msk [vmem:[%s1319] ss:$8 sm:$0x0] %vm754, %v1290
        %s1322 = scalar_lea.vmem %s450, 119 [#allocation13]
        %1323 = vst.msk [vmem:[%s1322] ss:$8 sm:$0x3] %vm754, %v1292
        %1324 = vst.msk [vmem:[%s1322] ss:$8 sm:$0x0] %vm754, %v1292
        %s1325 = sand.u32 %s215, 1
        %s1326 = scalar_lea.sflag [#allocation6], %s1325
        %s1327 = sand.u32 %s215, 1
        %s1328 = smul.addr %s1327, 8
        %s1329 = scalar_lea.vmem [#allocation9], %s1328
        %s1330 = sand.u32 %s33, 1
        %s1331 = scalar_lea.sflag [#allocation11], %s1330
        %s1332 = sand.u32 %s241, 1
        %s1333 = smul.addr %s1332, 8
        %s1334 = scalar_lea.vmem [#allocation10], %s1333
        %s1335 = sand.u32 %s33, 1
        %s1336 = scalar_lea.sflag [#allocation11], %s1335
        %s1337 = sand.u32 %s269, 1
        %s1338 = smul.addr %s1337, 32
        %s1339 = scalar_lea.vmem [#allocation12], %s1338
        %s1340 = sand.u32 %s297, 1
        %s1341 = scalar_lea.sflag [#allocation14], %s1340
        %s1342 = sand.u32 %s297, 1
        %s1343 = smul.addr %s1342, 128
        %s1344 = scalar_lea.vmem [#allocation13], %s1343
        // Predicated region
        $region61: #{tpu_custom_call.1} parent=47 // pred_check
          %p1345 = pneg %p225
        $region62: #{tpu_custom_call.1} parent=47 // pred_check_branch
          %1347 = sbr.rel (%p1345) target = $region64
        $region63: #{tpu_custom_call.1} parent=47 // pred_region
          %1349 = vsyncadd %s1326, 0
          %s1350 = smul.addr %s37, 8
          %s1351 = scalar_lea.hbm %s7, %s1350
          %s1353 = sshll.u32 %s1329, 4
          %s1354 = int_to_ptr.vmem [resolvable:$true] %s1353
          %s1355 = sshll.u32 %s1351, 4
          %s1356 = int_to_ptr.hbm [resolvable:$true] %s1355
          %1358 = dma.vmem_to_hbm [thread:$0]  %s1354, 128, %s1356, %s1326
        $region64: #{tpu_custom_call.1} parent=47 // pred_fallthru
          _
        // Predicated region
        $region65: #{tpu_custom_call.1} parent=47 // pred_check
          %p1359 = pneg %p251
        $region66: #{tpu_custom_call.1} parent=47 // pred_check_branch
          %1361 = sbr.rel (%p1359) target = $region68
        $region67: #{tpu_custom_call.1} parent=47 // pred_region
          %1363 = vsyncadd %s1331, 0
          %s1364 = smul.addr %s37, 8
          %s1365 = scalar_lea.hbm %s8, %s1364
          %s1367 = sshll.u32 %s1334, 4
          %s1368 = int_to_ptr.vmem [resolvable:$true] %s1367
          %s1369 = sshll.u32 %s1365, 4
          %s1370 = int_to_ptr.hbm [resolvable:$true] %s1369
          %1372 = dma.vmem_to_hbm [thread:$0]  %s1368, 128, %s1370, %s1331
        $region68: #{tpu_custom_call.1} parent=47 // pred_fallthru
          _
        // Predicated region
        $region69: #{tpu_custom_call.1} parent=47 // pred_check
          %p1373 = pneg %p279
        $region70: #{tpu_custom_call.1} parent=47 // pred_check_branch
          %1375 = sbr.rel (%p1373) target = $region72
        $region71: #{tpu_custom_call.1} parent=47 // pred_region
          %s1376 = smul.u32 8, %s37
          %s1377 = smul.u32 2, %s38
          %1379 = vsyncadd %s1336, 0
          %s1380 = smul.addr %s1376, 2
          %s1381 = sadd.s32 %s1377, %s1380
          %s1382 = smul.addr %s1381, 2
          %s1383 = scalar_lea.hbm %s9, %s1382
          %s1384 = sshll.u32 %s1339, 4
          %s1385 = int_to_ptr.vmem [resolvable:$true] %s1384
          %s1386 = sshll.u32 %s1383, 4
          %s1387 = int_to_ptr.hbm [resolvable:$true] %s1386
          %1392 = dma.vmem_to_hbm [thread:$0]  %s1385, 512, %s1387, %s1336, 64, 64, 4
        $region72: #{tpu_custom_call.1} parent=47 // pred_fallthru
          _
        // Predicated region
        $region73: #{tpu_custom_call.1} parent=47 // pred_check
          %p1393 = pneg %p307
        $region74: #{tpu_custom_call.1} parent=47 // pred_check_branch
          %1395 = sbr.rel (%p1393) target = $region76
        $region75: #{tpu_custom_call.1} parent=47 // pred_region
          %s1396 = smul.u32 8, %s37
          %s1397 = smul.u32 2, %s38
          %1399 = vsyncadd %s1341, 0
          %s1400 = smul.addr %s1396, 2
          %s1401 = sadd.s32 %s1397, %s1400
          %s1402 = smul.addr %s1401, 8
          %s1403 = scalar_lea.hbm %s10, %s1402
          %s1404 = sshll.u32 %s1344, 4
          %s1405 = int_to_ptr.vmem [resolvable:$true] %s1404
          %s1406 = sshll.u32 %s1403, 4
          %s1407 = int_to_ptr.hbm [resolvable:$true] %s1406
          %1412 = dma.vmem_to_hbm [thread:$0]  %s1405, 2048, %s1407, %s1341, 256, 256, 16
        $region76: #{tpu_custom_call.1} parent=47 // pred_fallthru
          _
      $region48: #{tpu_custom_call.1} parent=5 // pred_fallthru
        _
      %p1413 = scmp.le.s32.totalorder 2, %s28
      // Predicated region
      $region77: #{tpu_custom_call.1} parent=5 // pred_check
        %p1414 = pneg %p1413
      $region78: #{tpu_custom_call.1} parent=5 // pred_check_branch
        %1416 = sbr.rel (%p1414) target = $region80
      $region79: #{tpu_custom_call.1} parent=5 // pred_region
        %s1417 = ssub.s32 %s28, 2
        // Predicated region
        $region81: #{tpu_custom_call.1} parent=79 // pred_check
          %p1418 = pneg %p231
        $region82: #{tpu_custom_call.1} parent=79 // pred_check_branch
          %1420 = sbr.rel (%p1418) target = $region84
        $region83: #{tpu_custom_call.1} parent=79 // pred_region
          %s1421 = sand.u32 %s216, 1
          %s1422 = scalar_lea.sflag [#allocation6], %s1421
          %s1423 = sand.u32 %s216, 1
          %s1424 = smul.addr %s1423, 8
          %s1425 = scalar_lea.vmem [#allocation9], %s1424
          %1427 = dma.done %s1422, 128
        $region84: #{tpu_custom_call.1} parent=79 // pred_fallthru
          _
        // Predicated region
        $region85: #{tpu_custom_call.1} parent=79 // pred_check
          %p1428 = pneg %p257
        $region86: #{tpu_custom_call.1} parent=79 // pred_check_branch
          %1430 = sbr.rel (%p1428) target = $region88
        $region87: #{tpu_custom_call.1} parent=79 // pred_region
          %s1431 = sand.u32 %s34, 1
          %s1432 = scalar_lea.sflag [#allocation11], %s1431
          %s1433 = sand.u32 %s242, 1
          %s1434 = smul.addr %s1433, 8
          %s1435 = scalar_lea.vmem [#allocation10], %s1434
          %1437 = dma.done %s1432, 128
        $region88: #{tpu_custom_call.1} parent=79 // pred_fallthru
          _
        // Predicated region
        $region89: #{tpu_custom_call.1} parent=79 // pred_check
          %p1438 = pneg %p285
        $region90: #{tpu_custom_call.1} parent=79 // pred_check_branch
          %1440 = sbr.rel (%p1438) target = $region92
        $region91: #{tpu_custom_call.1} parent=79 // pred_region
          %s1441 = sand.u32 %s34, 1
          %s1442 = scalar_lea.sflag [#allocation11], %s1441
          %s1443 = sand.u32 %s270, 1
          %s1444 = smul.addr %s1443, 32
          %s1445 = scalar_lea.vmem [#allocation12], %s1444
          %1447 = dma.done %s1442, 512
        $region92: #{tpu_custom_call.1} parent=79 // pred_fallthru
          _
        // Predicated region
        $region93: #{tpu_custom_call.1} parent=79 // pred_check
          %p1448 = pneg %p313
        $region94: #{tpu_custom_call.1} parent=79 // pred_check_branch
          %1450 = sbr.rel (%p1448) target = $region96
        $region95: #{tpu_custom_call.1} parent=79 // pred_region
          %s1451 = sand.u32 %s298, 1
          %s1452 = scalar_lea.sflag [#allocation14], %s1451
          %s1453 = sand.u32 %s298, 1
          %s1454 = smul.addr %s1453, 128
          %s1455 = scalar_lea.vmem [#allocation13], %s1454
          %1457 = dma.done %s1452, 2048
        $region96: #{tpu_custom_call.1} parent=79 // pred_fallthru
          _
      $region80: #{tpu_custom_call.1} parent=5 // pred_fallthru
        _
    $region6: #{tpu_custom_call.1} parent=1 // loop_footer
      %s32 = sadd.s32 1, %s28
    $region7: #{tpu_custom_call.1} parent=1 // loop_footer_branch
      %27 = sbr.rel target = $region3
    $region8: #{tpu_custom_call.1} parent=1 // loop_exit
      _
    %1458 = vsyncpa [#allocation5], 1
    %s1459 = scalar_lea.sflag [#allocation5], 1
    %1460 = vsyncpa %s1459, 1
    %1461 = vsyncpa [#allocation8], 1
    %1462 = vsyncpa [#allocation6], 1
    %s1463 = scalar_lea.sflag [#allocation6], 1
    %1464 = vsyncpa %s1463, 1
    %1465 = vsyncpa [#allocation11], 1
    %s1466 = scalar_lea.sflag [#allocation11], 1
    %1467 = vsyncpa %s1466, 1
    %1468 = vsyncpa [#allocation14], 1
    %s1469 = scalar_lea.sflag [#allocation14], 1
    %1470 = vsyncpa %s1469, 1

</llo_original>
